<compile_context>
chip_gen: v7x
topology: tpu7x:2x2x1
jax: 0.10.0
libtpu: 0.0.40
codegen_flags: <defaults>
</compile_context>

<pallas_src>
import functools

import numpy as np
import jax
import jax.numpy as jnp
from jax import lax
from jax.experimental import pallas as pl
from jax.experimental.pallas import tpu as pltpu


def _rup(n, m):
    return ((n + m - 1) // m) * m


# --------------------------------------------------------------------------- kernel
def _conv_elu_kernel(kh, kw, dil, oh, ow, apply_elu,
                     x_ref, w_ref, b_ref, o_ref):
    """Implicit-GEMM dilated conv + bias + ELU for one (batch, Cout-tile) block.

    x_ref: (1, Hp, Wp, Cin)      bf16   padded input image (VMEM resident)
    w_ref: (kh*kw, Cin, CO_T)    bf16   per-tap weight matrices
    b_ref: (1, CO_T)             f32    bias
    o_ref: (1, OH*OW, CO_T)      f32    output (lane-dense, CO_T % 128 == 0)
    """
    cin = x_ref.shape[-1]
    co_t = o_ref.shape[-1]

    acc = jnp.zeros((oh * ow, co_t), jnp.float32)
    # Static (trace-time) tap loop: each tap is one bf16 MXU matmul accumulated in f32.
    for ky in range(kh):
        for kx in range(kw):
            win = x_ref[0, ky * dil:ky * dil + oh, kx * dil:kx * dil + ow, :]
            patch = win.reshape(oh * ow, cin)              # VMEM-only "im2col"
            acc = acc + jnp.dot(patch, w_ref[ky * kw + kx],
                                preferred_element_type=jnp.float32)

    # Fused epilogue: bias + ELU(alpha=1) in f32, then lane-dense store.
    y = acc + b_ref[...]
    if apply_elu:
        y = jnp.where(y > 0, y, jnp.exp(y) - 1.0)
    o_ref[...] = y[None].astype(o_ref.dtype)


# --------------------------------------------------------------------------- wrapper
def conv_elu(x_nchw, w_oihw, bias, dilation=1, apply_elu=True, co_tile=128):
    """PyTorch ConvELU forward: ELU(Conv2d(x, w, b, padding=dilation, dilation=dilation)).

    x_nchw: (B, Cin, H, W) f32 ; w_oihw: (Cout, Cin, kh, kw) ; bias: (Cout,)
    Returns (B, Cout, H, W) f32.
    """
    B, Cin, H, W = x_nchw.shape
    Cout, Cin2, kh, kw = w_oihw.shape
    assert Cin == Cin2
    d = int(dilation)
    pad = d                                   # ConvELU: padding = dilation
    OH = H + 2 * pad - d * (kh - 1)
    OW = W + 2 * pad - d * (kw - 1)
    Hp, Wp = H + 2 * pad, W + 2 * pad

    # NCHW -> NHWC (channels on lanes), spatial zero-pad, bf16 for the MXU.
    x = jnp.transpose(x_nchw, (0, 2, 3, 1)).astype(jnp.bfloat16)
    x = jnp.pad(x, ((0, 0), (pad, pad), (pad, pad), (0, 0)))

    # OIHW -> (kh*kw, Cin, Cout_pad); pad Cout to a lane-dense multiple of 128.
    Cout_p = _rup(Cout, 128)
    w = jnp.transpose(w_oihw, (2, 3, 1, 0)).reshape(kh * kw, Cin, Cout)
    w = jnp.pad(w.astype(jnp.bfloat16), ((0, 0), (0, 0), (0, Cout_p - Cout)))
    b = jnp.pad(bias.astype(jnp.float32), (0, Cout_p - Cout)).reshape(1, Cout_p)

    co_t = min(co_tile, Cout_p)
    assert Cout_p % co_t == 0
    n_co = Cout_p // co_t

    # TODO(synk): for very large H*W the whole padded image / output slab would not
    # fit VMEM; that case needs an extra OH-tiled grid axis (overlapping input windows
    # via memory_space=pl.ANY + manual make_async_copy).  Not needed at these sizes.
    out = pl.pallas_call(
        functools.partial(_conv_elu_kernel, kh, kw, d, OH, OW, apply_elu),
        out_shape=jax.ShapeDtypeStruct((B, OH * OW, Cout_p), jnp.float32),
        grid=(B, n_co),
        in_specs=[
            pl.BlockSpec((1, Hp, Wp, Cin), lambda bi, j: (bi, 0, 0, 0)),
            pl.BlockSpec((kh * kw, Cin, co_t), lambda bi, j: (0, 0, j)),
            pl.BlockSpec((1, co_t), lambda bi, j: (0, j)),
        ],
        out_specs=pl.BlockSpec((1, OH * OW, co_t), lambda bi, j: (bi, 0, j)),
        compiler_params=pltpu.CompilerParams(
            dimension_semantics=("parallel", "parallel")),
    )(x, w, b)

    out = out[:, :, :Cout].reshape(B, OH, OW, Cout)
    return jnp.transpose(out, (0, 3, 1, 2))   # NHWC -> NCHW


# --------------------------------------------------------------------------- main
if __name__ == "__main__":
    B, CIN, COUT, H, W = 2, 4, 8, 16, 16
    KSIZE, DIL = 3, 2

    key = jax.random.PRNGKey(0)
    kx, kw_, kb = jax.random.split(key, 3)
    x = jax.random.normal(kx, (B, CIN, H, W), dtype=jnp.float32)
    fan_in = CIN * KSIZE * KSIZE
    w = jax.random.normal(kw_, (COUT, CIN, KSIZE, KSIZE), dtype=jnp.float32) / np.sqrt(fan_in)
    b = 0.1 * jax.random.normal(kb, (COUT,), dtype=jnp.float32)

    fwd = jax.jit(functools.partial(conv_elu, dilation=DIL))
    out = jax.block_until_ready(fwd(x, w, b))
    assert out.shape == (B, COUT, H, W), out.shape
    assert bool(jnp.all(jnp.isfinite(out)))

    # Reference: same bf16-quantized inputs, f32 accumulation, identical epilogue.
    ref = lax.conv_general_dilated(
        x.astype(jnp.bfloat16), w.astype(jnp.bfloat16),
        window_strides=(1, 1), padding=[(DIL, DIL), (DIL, DIL)],
        rhs_dilation=(DIL, DIL),
        dimension_numbers=("NCHW", "OIHW", "NCHW"),
        preferred_element_type=jnp.float32,
    ) + b[None, :, None, None]
    ref = jnp.where(ref > 0, ref, jnp.exp(ref) - 1.0)
    err = float(jnp.max(jnp.abs(out - ref)))
    assert np.isfinite(err) and err < 1e-2, f"max abs error {err}"

    print("KERNEL_OK")
</pallas_src>

<mosaic_0001>
module attributes {stable_mosaic.version = 11 : i64} {
  func.func @_conv_elu_kernel(%arg0: i32, %arg1: i32, %arg2: memref<1x20x20x4xbf16, #tpu.memory_space<vmem>>, %arg3: memref<9x4x128xbf16, #tpu.memory_space<vmem>>, %arg4: memref<1x128xf32, #tpu.memory_space<vmem>>, %arg5: memref<1x256x128xf32, #tpu.memory_space<vmem>>) attributes {dimension_semantics = [#tpu.dimension_semantics<parallel>, #tpu.dimension_semantics<parallel>], iteration_bounds = array<i64: 2, 1>, scalar_prefetch = 0 : i64, scratch_operands = 0 : i64, tpu.core_type = #tpu.core_type<tc>, window_params = [{transform_indices = @transform_0, window_bounds = array<i64: 1, 20, 20, 4>}, {transform_indices = @transform_1, window_bounds = array<i64: 9, 4, 128>}, {transform_indices = @transform_2, window_bounds = array<i64: 1, 128>}, {transform_indices = @transform_3, window_bounds = array<i64: 1, 256, 128>}]} {
    %cst = arith.constant 0.000000e+00 : f32
    %0 = vector.broadcast %cst : f32 to vector<256x128xf32>
    %c0 = arith.constant 0 : index
    %c0_0 = arith.constant 0 : index
    %c0_1 = arith.constant 0 : index
    %c0_2 = arith.constant 0 : index
    %1 = vector.load %arg2[%c0, %c0_0, %c0_1, %c0_2] : memref<1x20x20x4xbf16, #tpu.memory_space<vmem>>, vector<1x16x16x4xbf16>
    %2 = vector.shape_cast %1 : vector<1x16x16x4xbf16> to vector<16x16x4xbf16>
    %3 = vector.shape_cast %2 : vector<16x16x4xbf16> to vector<256x4xbf16>
    %c0_3 = arith.constant 0 : index
    %c0_4 = arith.constant 0 : index
    %c0_5 = arith.constant 0 : index
    %4 = vector.load %arg3[%c0_3, %c0_4, %c0_5] : memref<9x4x128xbf16, #tpu.memory_space<vmem>>, vector<1x4x128xbf16>
    %5 = vector.shape_cast %4 : vector<1x4x128xbf16> to vector<4x128xbf16>
    %cst_6 = arith.constant dense<0.000000e+00> : vector<256x128xf32>
    %6 = tpu.matmul %3, %5, %cst_6 {dimension_numbers = #tpu.dot_dimension_numbers<[1], [0], [0], [1], [0, 0, 1, 1], [], []>} : vector<256x4xbf16>, vector<4x128xbf16>, vector<256x128xf32> -> vector<256x128xf32>
    %7 = arith.addf %0, %6 : vector<256x128xf32>
    %c0_7 = arith.constant 0 : index
    %c0_8 = arith.constant 0 : index
    %c2 = arith.constant 2 : index
    %c0_9 = arith.constant 0 : index
    %8 = vector.load %arg2[%c0_7, %c0_8, %c2, %c0_9] : memref<1x20x20x4xbf16, #tpu.memory_space<vmem>>, vector<1x16x16x4xbf16>
    %9 = vector.shape_cast %8 : vector<1x16x16x4xbf16> to vector<16x16x4xbf16>
    %10 = vector.shape_cast %9 : vector<16x16x4xbf16> to vector<256x4xbf16>
    %c1 = arith.constant 1 : index
    %c0_10 = arith.constant 0 : index
    %c0_11 = arith.constant 0 : index
    %11 = vector.load %arg3[%c1, %c0_10, %c0_11] : memref<9x4x128xbf16, #tpu.memory_space<vmem>>, vector<1x4x128xbf16>
    %12 = vector.shape_cast %11 : vector<1x4x128xbf16> to vector<4x128xbf16>
    %cst_12 = arith.constant dense<0.000000e+00> : vector<256x128xf32>
    %13 = tpu.matmul %10, %12, %cst_12 {dimension_numbers = #tpu.dot_dimension_numbers<[1], [0], [0], [1], [0, 0, 1, 1], [], []>} : vector<256x4xbf16>, vector<4x128xbf16>, vector<256x128xf32> -> vector<256x128xf32>
    %14 = arith.addf %7, %13 : vector<256x128xf32>
    %c0_13 = arith.constant 0 : index
    %c0_14 = arith.constant 0 : index
    %c4 = arith.constant 4 : index
    %c0_15 = arith.constant 0 : index
    %15 = vector.load %arg2[%c0_13, %c0_14, %c4, %c0_15] : memref<1x20x20x4xbf16, #tpu.memory_space<vmem>>, vector<1x16x16x4xbf16>
    %16 = vector.shape_cast %15 : vector<1x16x16x4xbf16> to vector<16x16x4xbf16>
    %17 = vector.shape_cast %16 : vector<16x16x4xbf16> to vector<256x4xbf16>
    %c2_16 = arith.constant 2 : index
    %c0_17 = arith.constant 0 : index
    %c0_18 = arith.constant 0 : index
    %18 = vector.load %arg3[%c2_16, %c0_17, %c0_18] : memref<9x4x128xbf16, #tpu.memory_space<vmem>>, vector<1x4x128xbf16>
    %19 = vector.shape_cast %18 : vector<1x4x128xbf16> to vector<4x128xbf16>
    %cst_19 = arith.constant dense<0.000000e+00> : vector<256x128xf32>
    %20 = tpu.matmul %17, %19, %cst_19 {dimension_numbers = #tpu.dot_dimension_numbers<[1], [0], [0], [1], [0, 0, 1, 1], [], []>} : vector<256x4xbf16>, vector<4x128xbf16>, vector<256x128xf32> -> vector<256x128xf32>
    %21 = arith.addf %14, %20 : vector<256x128xf32>
    %c0_20 = arith.constant 0 : index
    %c2_21 = arith.constant 2 : index
    %c0_22 = arith.constant 0 : index
    %c0_23 = arith.constant 0 : index
    %22 = vector.load %arg2[%c0_20, %c2_21, %c0_22, %c0_23] : memref<1x20x20x4xbf16, #tpu.memory_space<vmem>>, vector<1x16x16x4xbf16>
    %23 = vector.shape_cast %22 : vector<1x16x16x4xbf16> to vector<16x16x4xbf16>
    %24 = vector.shape_cast %23 : vector<16x16x4xbf16> to vector<256x4xbf16>
    %c3 = arith.constant 3 : index
    %c0_24 = arith.constant 0 : index
    %c0_25 = arith.constant 0 : index
    %25 = vector.load %arg3[%c3, %c0_24, %c0_25] : memref<9x4x128xbf16, #tpu.memory_space<vmem>>, vector<1x4x128xbf16>
    %26 = vector.shape_cast %25 : vector<1x4x128xbf16> to vector<4x128xbf16>
    %cst_26 = arith.constant dense<0.000000e+00> : vector<256x128xf32>
    %27 = tpu.matmul %24, %26, %cst_26 {dimension_numbers = #tpu.dot_dimension_numbers<[1], [0], [0], [1], [0, 0, 1, 1], [], []>} : vector<256x4xbf16>, vector<4x128xbf16>, vector<256x128xf32> -> vector<256x128xf32>
    %28 = arith.addf %21, %27 : vector<256x128xf32>
    %c0_27 = arith.constant 0 : index
    %c2_28 = arith.constant 2 : index
    %c2_29 = arith.constant 2 : index
    %c0_30 = arith.constant 0 : index
    %29 = vector.load %arg2[%c0_27, %c2_28, %c2_29, %c0_30] : memref<1x20x20x4xbf16, #tpu.memory_space<vmem>>, vector<1x16x16x4xbf16>
    %30 = vector.shape_cast %29 : vector<1x16x16x4xbf16> to vector<16x16x4xbf16>
    %31 = vector.shape_cast %30 : vector<16x16x4xbf16> to vector<256x4xbf16>
    %c4_31 = arith.constant 4 : index
    %c0_32 = arith.constant 0 : index
    %c0_33 = arith.constant 0 : index
    %32 = vector.load %arg3[%c4_31, %c0_32, %c0_33] : memref<9x4x128xbf16, #tpu.memory_space<vmem>>, vector<1x4x128xbf16>
    %33 = vector.shape_cast %32 : vector<1x4x128xbf16> to vector<4x128xbf16>
    %cst_34 = arith.constant dense<0.000000e+00> : vector<256x128xf32>
    %34 = tpu.matmul %31, %33, %cst_34 {dimension_numbers = #tpu.dot_dimension_numbers<[1], [0], [0], [1], [0, 0, 1, 1], [], []>} : vector<256x4xbf16>, vector<4x128xbf16>, vector<256x128xf32> -> vector<256x128xf32>
    %35 = arith.addf %28, %34 : vector<256x128xf32>
    %c0_35 = arith.constant 0 : index
    %c2_36 = arith.constant 2 : index
    %c4_37 = arith.constant 4 : index
    %c0_38 = arith.constant 0 : index
    %36 = vector.load %arg2[%c0_35, %c2_36, %c4_37, %c0_38] : memref<1x20x20x4xbf16, #tpu.memory_space<vmem>>, vector<1x16x16x4xbf16>
    %37 = vector.shape_cast %36 : vector<1x16x16x4xbf16> to vector<16x16x4xbf16>
    %38 = vector.shape_cast %37 : vector<16x16x4xbf16> to vector<256x4xbf16>
    %c5 = arith.constant 5 : index
    %c0_39 = arith.constant 0 : index
    %c0_40 = arith.constant 0 : index
    %39 = vector.load %arg3[%c5, %c0_39, %c0_40] : memref<9x4x128xbf16, #tpu.memory_space<vmem>>, vector<1x4x128xbf16>
    %40 = vector.shape_cast %39 : vector<1x4x128xbf16> to vector<4x128xbf16>
    %cst_41 = arith.constant dense<0.000000e+00> : vector<256x128xf32>
    %41 = tpu.matmul %38, %40, %cst_41 {dimension_numbers = #tpu.dot_dimension_numbers<[1], [0], [0], [1], [0, 0, 1, 1], [], []>} : vector<256x4xbf16>, vector<4x128xbf16>, vector<256x128xf32> -> vector<256x128xf32>
    %42 = arith.addf %35, %41 : vector<256x128xf32>
    %c0_42 = arith.constant 0 : index
    %c4_43 = arith.constant 4 : index
    %c0_44 = arith.constant 0 : index
    %c0_45 = arith.constant 0 : index
    %43 = vector.load %arg2[%c0_42, %c4_43, %c0_44, %c0_45] : memref<1x20x20x4xbf16, #tpu.memory_space<vmem>>, vector<1x16x16x4xbf16>
    %44 = vector.shape_cast %43 : vector<1x16x16x4xbf16> to vector<16x16x4xbf16>
    %45 = vector.shape_cast %44 : vector<16x16x4xbf16> to vector<256x4xbf16>
    %c6 = arith.constant 6 : index
    %c0_46 = arith.constant 0 : index
    %c0_47 = arith.constant 0 : index
    %46 = vector.load %arg3[%c6, %c0_46, %c0_47] : memref<9x4x128xbf16, #tpu.memory_space<vmem>>, vector<1x4x128xbf16>
    %47 = vector.shape_cast %46 : vector<1x4x128xbf16> to vector<4x128xbf16>
    %cst_48 = arith.constant dense<0.000000e+00> : vector<256x128xf32>
    %48 = tpu.matmul %45, %47, %cst_48 {dimension_numbers = #tpu.dot_dimension_numbers<[1], [0], [0], [1], [0, 0, 1, 1], [], []>} : vector<256x4xbf16>, vector<4x128xbf16>, vector<256x128xf32> -> vector<256x128xf32>
    %49 = arith.addf %42, %48 : vector<256x128xf32>
    %c0_49 = arith.constant 0 : index
    %c4_50 = arith.constant 4 : index
    %c2_51 = arith.constant 2 : index
    %c0_52 = arith.constant 0 : index
    %50 = vector.load %arg2[%c0_49, %c4_50, %c2_51, %c0_52] : memref<1x20x20x4xbf16, #tpu.memory_space<vmem>>, vector<1x16x16x4xbf16>
    %51 = vector.shape_cast %50 : vector<1x16x16x4xbf16> to vector<16x16x4xbf16>
    %52 = vector.shape_cast %51 : vector<16x16x4xbf16> to vector<256x4xbf16>
    %c7 = arith.constant 7 : index
    %c0_53 = arith.constant 0 : index
    %c0_54 = arith.constant 0 : index
    %53 = vector.load %arg3[%c7, %c0_53, %c0_54] : memref<9x4x128xbf16, #tpu.memory_space<vmem>>, vector<1x4x128xbf16>
    %54 = vector.shape_cast %53 : vector<1x4x128xbf16> to vector<4x128xbf16>
    %cst_55 = arith.constant dense<0.000000e+00> : vector<256x128xf32>
    %55 = tpu.matmul %52, %54, %cst_55 {dimension_numbers = #tpu.dot_dimension_numbers<[1], [0], [0], [1], [0, 0, 1, 1], [], []>} : vector<256x4xbf16>, vector<4x128xbf16>, vector<256x128xf32> -> vector<256x128xf32>
    %56 = arith.addf %49, %55 : vector<256x128xf32>
    %c0_56 = arith.constant 0 : index
    %c4_57 = arith.constant 4 : index
    %c4_58 = arith.constant 4 : index
    %c0_59 = arith.constant 0 : index
    %57 = vector.load %arg2[%c0_56, %c4_57, %c4_58, %c0_59] : memref<1x20x20x4xbf16, #tpu.memory_space<vmem>>, vector<1x16x16x4xbf16>
    %58 = vector.shape_cast %57 : vector<1x16x16x4xbf16> to vector<16x16x4xbf16>
    %59 = vector.shape_cast %58 : vector<16x16x4xbf16> to vector<256x4xbf16>
    %c8 = arith.constant 8 : index
    %c0_60 = arith.constant 0 : index
    %c0_61 = arith.constant 0 : index
    %60 = vector.load %arg3[%c8, %c0_60, %c0_61] : memref<9x4x128xbf16, #tpu.memory_space<vmem>>, vector<1x4x128xbf16>
    %61 = vector.shape_cast %60 : vector<1x4x128xbf16> to vector<4x128xbf16>
    %cst_62 = arith.constant dense<0.000000e+00> : vector<256x128xf32>
    %62 = tpu.matmul %59, %61, %cst_62 {dimension_numbers = #tpu.dot_dimension_numbers<[1], [0], [0], [1], [0, 0, 1, 1], [], []>} : vector<256x4xbf16>, vector<4x128xbf16>, vector<256x128xf32> -> vector<256x128xf32>
    %63 = arith.addf %56, %62 : vector<256x128xf32>
    %c0_63 = arith.constant 0 : index
    %c0_64 = arith.constant 0 : index
    %64 = vector.load %arg4[%c0_63, %c0_64] : memref<1x128xf32, #tpu.memory_space<vmem>>, vector<1x128xf32>
    %65 = vector.broadcast %64 : vector<1x128xf32> to vector<256x128xf32>
    %66 = arith.addf %63, %65 : vector<256x128xf32>
    %cst_65 = arith.constant 0.000000e+00 : f32
    %67 = vector.broadcast %cst_65 : f32 to vector<256x128xf32>
    %68 = arith.cmpf ogt, %66, %67 : vector<256x128xf32>
    %69 = math.exp %66 : vector<256x128xf32>
    %cst_66 = arith.constant 1.000000e+00 : f32
    %70 = vector.broadcast %cst_66 : f32 to vector<256x128xf32>
    %71 = arith.subf %69, %70 : vector<256x128xf32>
    %72 = arith.select %68, %66, %71 : vector<256x128xi1>, vector<256x128xf32>
    %73 = vector.shape_cast %72 : vector<256x128xf32> to vector<1x256x128xf32>
    %c0_67 = arith.constant 0 : index
    %c0_68 = arith.constant 0 : index
    %c0_69 = arith.constant 0 : index
    %74 = vector.load %arg5[%c0_67, %c0_68, %c0_69] : memref<1x256x128xf32, #tpu.memory_space<vmem>>, vector<1x256x128xf32>
    tpu.vector_store %arg5[%c0_67, %c0_68, %c0_69], %73 {strides = array<i32>} : memref<1x256x128xf32, #tpu.memory_space<vmem>>, vector<1x256x128xf32>,
    return
  }
  func.func @transform_0(%arg0: i32, %arg1: i32) -> (i32, i32, i32, i32) {
    %c0_i32 = arith.constant 0 : i32
    %c0_i32_0 = arith.constant 0 : i32
    %c0_i32_1 = arith.constant 0 : i32
    %c0_i32_2 = arith.constant 0 : i32
    return %arg0, %c0_i32, %c0_i32_0, %c0_i32_1 : i32, i32, i32, i32
  }
  func.func @transform_1(%arg0: i32, %arg1: i32) -> (i32, i32, i32) {
    %c0_i32 = arith.constant 0 : i32
    %c0_i32_0 = arith.constant 0 : i32
    %c0_i32_1 = arith.constant 0 : i32
    return %c0_i32, %c0_i32_0, %arg1 : i32, i32, i32
  }
  func.func @transform_2(%arg0: i32, %arg1: i32) -> (i32, i32) {
    %c0_i32 = arith.constant 0 : i32
    %c0_i32_0 = arith.constant 0 : i32
    return %c0_i32, %arg1 : i32, i32
  }
  func.func @transform_3(%arg0: i32, %arg1: i32) -> (i32, i32, i32) {
    %c0_i32 = arith.constant 0 : i32
    %c0_i32_0 = arith.constant 0 : i32
    return %arg0, %c0_i32, %arg1 : i32, i32, i32
  }
}

</mosaic_0001>

<llo_original>
// kernel: conv_elu.1
$region0: #{conv_elu.1}
  #allocation0 [shape = 'u32[]', space=smem, size = 0x4, offset = 0x4, fixed_abs, tag = 'smem constant byte address 0x4 - core index']
  #allocation1 [shape = 'u32[144,128]{1,0:T(1,128)}', space=vmem, size = 0x12000, scoped, tag = 'internal scratch']
  %s0 = inlined_call_operand.vmem [shape: bf16[2,20,20,4], index: 0, kind: input, shape index: {}]
  %s1 = inlined_call_operand.vmem [shape: bf16[9,4,128], index: 1, kind: input, shape index: {}]
  %s2 = inlined_call_operand.vmem [shape: f32[1,128], index: 2, kind: input, shape index: {}]
  %s3 = inlined_call_operand.vmem [shape: f32[2,256,128], index: 3, kind: output, shape index: {}]
  %s4 = sld [smem:[#allocation0]]
  $region45: #{conv_elu.1} parent=0
    _
  %s6 = ssub.s32 1, %s4
  %s7 = scalar_select 0, %s6, %s4
  loop: start=0, step=1, limit=4
  $region2: #{conv_elu.1} parent=0 // loop_pre_header
    _
  $region3: #{conv_elu.1} parent=0 // loop_header
    %s9 = sphi 0, %s13
    %p10 = scmp.ge.s32.totalorder %s9, 4
    %s16 = sphi 0, %s28
    %s17 = sphi 0, %s24
    %s18 = sphi 0, %s16
    %s19 = sphi 0, %s17
    %s20 = sphi 0, %s18
    %s21 = sphi 0, %s19
    %s31 = sphi 0, %s33
    %s34 = sphi 0, %s31
    %s35 = sphi 0, %s34
    %s51 = sphi 0, %s35
    %s57 = sphi 0, %s59
    %s60 = sphi 0, %s57
    %s61 = sphi 0, %s60
    %s77 = sphi 0, %s61
    %s83 = sphi 0, %s85
    %s86 = sphi 0, %s83
    %s87 = sphi 0, %s86
    %s103 = sphi 0, %s87
    %s111 = sphi 0, %s113
    %s114 = sphi 0, %s111
    %s115 = sphi 0, %s114
    %s131 = sphi 0, %s115
  $region4: #{conv_elu.1} parent=0 // loop_header_branch
    %12 = sbr.rel (%p10) target = $region8
  $region5: #{conv_elu.1} parent=0 // loop_body
    %s14 = ssub.s32 %s9, 1
    %s15 = ssub.s32 %s9, 2
    %s22 = sadd.s32 1, %s17
    %p23 = scmp.ge.s32.totalorder %s22, 1
    %s24 = scalar_select %p23, 0, %s22
    %s25 = sadd.s32 1, %s16
    %s26 = scalar_select %p23, %s25, %s16
    %p27 = scmp.ge.s32.totalorder %s26, 2
    %s28 = scalar_select %p27, 0, %s26
    %s29 = ssub.s32 %s16, %s28
    %p30 = scmp.eq.s32.totalorder %s29, 0
    %s32 = sadd.s32 %s31, 1
    %s33 = scalar_select %p30, %s31, %s32
    %p36 = pneg %p30
    %p37 = scmp.eq.s32.totalorder %s9, 1
    %p38 = por %p36, %p37
    %p39 = scmp.ne.s32.totalorder %s31, %s34
    %p40 = scmp.eq.s32.totalorder %s9, 0
    %p41 = por %p39, %p40
    %p42 = scmp.ne.s32.totalorder %s31, %s34
    %p43 = scmp.eq.s32.totalorder %s14, 1
    %p44 = por %p42, %p43
    %p45 = scmp.ne.s32.totalorder %s34, %s35
    %p46 = scmp.eq.s32.totalorder %s14, 0
    %p47 = por %p45, %p46
    %p48 = scmp.ne.s32.totalorder %s34, %s35
    %p49 = scmp.eq.s32.totalorder %s15, 1
    %p50 = por %p48, %p49
    %p52 = scmp.ne.s32.totalorder %s35, %s51
    %p53 = scmp.eq.s32.totalorder %s15, 0
    %p54 = por %p52, %p53
    %s55 = ssub.s32 %s17, %s24
    %p56 = scmp.eq.s32.totalorder %s55, 0
    %s58 = sadd.s32 %s57, 1
    %s59 = scalar_select %p56, %s57, %s58
    %p62 = pneg %p56
    %p63 = scmp.eq.s32.totalorder %s9, 1
    %p64 = por %p62, %p63
    %p65 = scmp.ne.s32.totalorder %s57, %s60
    %p66 = scmp.eq.s32.totalorder %s9, 0
    %p67 = por %p65, %p66
    %p68 = scmp.ne.s32.totalorder %s57, %s60
    %p69 = scmp.eq.s32.totalorder %s14, 1
    %p70 = por %p68, %p69
    %p71 = scmp.ne.s32.totalorder %s60, %s61
    %p72 = scmp.eq.s32.totalorder %s14, 0
    %p73 = por %p71, %p72
    %p74 = scmp.ne.s32.totalorder %s60, %s61
    %p75 = scmp.eq.s32.totalorder %s15, 1
    %p76 = por %p74, %p75
    %p78 = scmp.ne.s32.totalorder %s61, %s77
    %p79 = scmp.eq.s32.totalorder %s15, 0
    %p80 = por %p78, %p79
    %s81 = ssub.s32 %s17, %s24
    %p82 = scmp.eq.s32.totalorder %s81, 0
    %s84 = sadd.s32 %s83, 1
    %s85 = scalar_select %p82, %s83, %s84
    %p88 = pneg %p82
    %p89 = scmp.eq.s32.totalorder %s9, 1
    %p90 = por %p88, %p89
    %p91 = scmp.ne.s32.totalorder %s83, %s86
    %p92 = scmp.eq.s32.totalorder %s9, 0
    %p93 = por %p91, %p92
    %p94 = scmp.ne.s32.totalorder %s83, %s86
    %p95 = scmp.eq.s32.totalorder %s14, 1
    %p96 = por %p94, %p95
    %p97 = scmp.ne.s32.totalorder %s86, %s87
    %p98 = scmp.eq.s32.totalorder %s14, 0
    %p99 = por %p97, %p98
    %p100 = scmp.ne.s32.totalorder %s86, %s87
    %p101 = scmp.eq.s32.totalorder %s15, 1
    %p102 = por %p100, %p101
    %p104 = scmp.ne.s32.totalorder %s87, %s103
    %p105 = scmp.eq.s32.totalorder %s15, 0
    %p106 = por %p104, %p105
    %s107 = ssub.s32 %s16, %s28
    %s108 = ssub.s32 %s17, %s24
    %s109 = sor.u32 %s107, %s108
    %p110 = scmp.eq.s32.totalorder %s109, 0
    %s112 = sadd.s32 %s111, 1
    %s113 = scalar_select %p110, %s111, %s112
    %p116 = pneg %p110
    %p117 = scmp.eq.s32.totalorder %s9, 1
    %p118 = por %p116, %p117
    %p119 = scmp.ne.s32.totalorder %s111, %s114
    %p120 = scmp.eq.s32.totalorder %s9, 0
    %p121 = por %p119, %p120
    %p122 = scmp.ne.s32.totalorder %s111, %s114
    %p123 = scmp.eq.s32.totalorder %s14, 1
    %p124 = por %p122, %p123
    %p125 = scmp.ne.s32.totalorder %s114, %s115
    %p126 = scmp.eq.s32.totalorder %s14, 0
    %p127 = por %p125, %p126
    %p128 = scmp.ne.s32.totalorder %s114, %s115
    %p129 = scmp.eq.s32.totalorder %s15, 1
    %p130 = por %p128, %p129
    %p132 = scmp.ne.s32.totalorder %s115, %s131
    %p133 = scmp.eq.s32.totalorder %s15, 0
    %p134 = por %p132, %p133
    %p135 = scmp.le.s32.totalorder 1, %s9
    %p136 = scmp.lt.s32.totalorder %s9, 3
    %p137 = pnand %p135, %p136
    %p138 = pneg %p137
    // Predicated region
    $region9: #{conv_elu.1} parent=5 // pred_check
      _
    $region10: #{conv_elu.1} parent=5 // pred_check_branch
      %140 = sbr.rel (%p137) target = $region12
    $region11: #{conv_elu.1} parent=5 // pred_region
      %s141 = ssub.s32 %s9, 1
      // Predicated region
      $region13: #{conv_elu.1} parent=11 // pred_check
        %p142 = pneg %p73
      $region14: #{conv_elu.1} parent=11 // pred_check_branch
        %144 = sbr.rel (%p142) target = $region16
      $region15: #{conv_elu.1} parent=11 // pred_region
        %p145 = scmp.lt.s32.totalorder %s19, 0
        %s146 = scalar_select %p145, %s19, 0
        %s147 = smul.addr %s146, 2
        %s148 = scalar_lea.vmem %s1, %s147
      $region16: #{conv_elu.1} parent=11 // pred_fallthru
        _
      // Predicated region
      $region17: #{conv_elu.1} parent=11 // pred_check
        %p149 = pneg %p99
      $region18: #{conv_elu.1} parent=11 // pred_check_branch
        %151 = sbr.rel (%p149) target = $region20
      $region19: #{conv_elu.1} parent=11 // pred_region
        %p152 = scmp.lt.s32.totalorder %s19, 0
        %s153 = scalar_select %p152, %s19, 0
        %s154 = scalar_lea.vmem %s2, %s153
      $region20: #{conv_elu.1} parent=11 // pred_fallthru
        _
    $region12: #{conv_elu.1} parent=5 // pred_fallthru
      _
    %p155 = scmp.lt.s32.totalorder %s9, 2
    // Predicated region
    $region21: #{conv_elu.1} parent=5 // pred_check
      %p156 = pneg %p155
    $region22: #{conv_elu.1} parent=5 // pred_check_branch
      %158 = sbr.rel (%p156) target = $region24
    $region23: #{conv_elu.1} parent=5 // pred_region
      // Predicated region
      $region25: #{conv_elu.1} parent=23 // pred_check
        %p159 = pneg %p41
      $region26: #{conv_elu.1} parent=23 // pred_check_branch
        %161 = sbr.rel (%p159) target = $region28
      $region27: #{conv_elu.1} parent=23 // pred_region
        %p162 = scmp.lt.s32.totalorder %s16, 1
        %s163 = scalar_select %p162, %s16, 1
        %s164 = smul.addr %s163, 60
        %s165 = smul.addr %s164, 4
        %s166 = scalar_lea.vmem %s0, %s165
      $region28: #{conv_elu.1} parent=23 // pred_fallthru
        _
    $region24: #{conv_elu.1} parent=5 // pred_fallthru
      _
    %p167 = scmp.le.s32.totalorder 1, %s9
    %p168 = scmp.lt.s32.totalorder %s9, 3
    %p169 = pnand %p167, %p168
    %p170 = pneg %p169
    // Predicated region
    $region29: #{conv_elu.1} parent=5 // pred_check
      _
    $region30: #{conv_elu.1} parent=5 // pred_check_branch
      %172 = sbr.rel (%p169) target = $region32
    $region31: #{conv_elu.1} parent=5 // pred_region
      %s173 = ssub.s32 %s9, 1
      %p174 = scmp.lt.s32.totalorder %s18, 1
      %s175 = scalar_select %p174, %s18, 1
      %s176 = smul.addr %s175, 60
      %s177 = smul.addr %s176, 4
      %s178 = scalar_lea.vmem %s0, %s177
      %p179 = pneg %p47
      %p180 = pneg %p44
      %p181 = scmp.lt.s32.totalorder %s19, 0
      %s182 = scalar_select %p181, %s19, 0
      %s183 = smul.addr %s182, 2
      %s184 = scalar_lea.vmem %s1, %s183
      %p185 = pneg %p73
      %p186 = pneg %p70
      %p187 = scmp.lt.s32.totalorder %s19, 0
      %s188 = scalar_select %p187, %s19, 0
      %s189 = scalar_lea.vmem %s2, %s188
      %p190 = pneg %p99
      %p191 = pneg %p96
      %p192 = pneg %p127
      %p193 = pneg %p124
      %p194 = scmp.lt.s32.totalorder %s18, 1
      %s195 = scalar_select %p194, %s18, 1
      %p196 = scmp.lt.s32.totalorder %s19, 0
      %s197 = scalar_select %p196, %s19, 0
      %s198 = smul.addr %s195, 32
      %s199 = sadd.s32 %s197, %s198
      %s200 = smul.addr %s199, 8
      %s201 = scalar_lea.vmem %s3, %s200
      %p202 = scmp.lt.s32.totalorder %s18, 1
      %s203 = scalar_select %p202, %s18, 1
      %s204 = smul.addr %s203, 60
      %s205 = smul.addr %s204, 4
      %s206 = scalar_lea.vmem %s0, %s205
      %p207 = scmp.lt.s32.totalorder %s19, 0
      %s208 = scalar_select %p207, %s19, 0
      %s209 = smul.addr %s208, 2
      %s210 = scalar_lea.vmem %s1, %s209
      %p211 = scmp.lt.s32.totalorder %s19, 0
      %s212 = scalar_select %p211, %s19, 0
      %s213 = scalar_lea.vmem %s2, %s212
      %p214 = scmp.lt.s32.totalorder %s18, 1
      %s215 = scalar_select %p214, %s18, 1
      %p216 = scmp.lt.s32.totalorder %s19, 0
      %s217 = scalar_select %p216, %s19, 0
      %s218 = smul.addr %s215, 32
      %s219 = sadd.s32 %s217, %s218
      %s220 = smul.addr %s219, 8
      %s221 = scalar_lea.vmem %s3, %s220
      %v223 = vld [vmem:[%s206] sm:$0xf]
      %v224 = vld [vmem:[%s206 + $0x4] sm:$0xf]
      %v225 = vld [vmem:[%s206 + $0xc] sm:$0xf]
      %v226 = vld [vmem:[%s206 + $0x10] sm:$0xf]
      %v227 = vld [vmem:[%s206 + $0x18] sm:$0xf]
      %v228 = vld [vmem:[%s206 + $0x1c] sm:$0xf]
      %v229 = vld [vmem:[%s206 + $0x24] sm:$0xf]
      %v230 = vld [vmem:[%s206 + $0x28] sm:$0xf]
      %v231 = vld [vmem:[%s206 + $0x30] sm:$0xf]
      %v232 = vld [vmem:[%s206 + $0x34] sm:$0xf]
      %v233 = vld [vmem:[%s206 + $0x3c] sm:$0xf]
      %v234 = vld [vmem:[%s206 + $0x40] sm:$0xf]
      %v235 = vld [vmem:[%s206 + $0x48] sm:$0xf]
      %v236 = vld [vmem:[%s206 + $0x4c] sm:$0xf]
      %v237 = vld [vmem:[%s206 + $0x54] sm:$0xf]
      %v238 = vld [vmem:[%s206 + $0x58] sm:$0xf]
      %v239 = vld [vmem:[%s206 + $0x60] sm:$0xf]
      %v240 = vld [vmem:[%s206 + $0x64] sm:$0xf]
      %v241 = vld [vmem:[%s206 + $0x6c] sm:$0xf]
      %v242 = vld [vmem:[%s206 + $0x70] sm:$0xf]
      %v243 = vld [vmem:[%s206 + $0x78] sm:$0xf]
      %v244 = vld [vmem:[%s206 + $0x7c] sm:$0xf]
      %v245 = vld [vmem:[%s206 + $0x84] sm:$0xf]
      %v246 = vld [vmem:[%s206 + $0x88] sm:$0xf]
      %v247 = vld [vmem:[%s206 + $0x90] sm:$0xf]
      %v248 = vld [vmem:[%s206 + $0x94] sm:$0xf]
      %v249 = vld [vmem:[%s206 + $0x9c] sm:$0xf]
      %v250 = vld [vmem:[%s206 + $0xa0] sm:$0xf]
      %v251 = vld [vmem:[%s206 + $0xa8] sm:$0xf]
      %v252 = vld [vmem:[%s206 + $0xac] sm:$0xf]
      %v253 = vld [vmem:[%s206 + $0xb4] sm:$0xf]
      %v254 = vld [vmem:[%s206 + $0xb8] sm:$0xf]
      %v255 = vld [vmem:[%s210] sm:$0x3]
      %v256 = vld [vmem:[%s206] sm:$0xe]
      %v257 = vld [vmem:[%s206 + $0x8] sm:$0x1]
      %v258 = vld [vmem:[%s206 + $0xc] sm:$0xe]
      %v259 = vld [vmem:[%s206 + $0x14] sm:$0x1]
      %v260 = vld [vmem:[%s206 + $0x18] sm:$0xe]
      %v261 = vld [vmem:[%s206 + $0x20] sm:$0x1]
      %v262 = vld [vmem:[%s206 + $0x24] sm:$0xe]
      %v263 = vld [vmem:[%s206 + $0x2c] sm:$0x1]
      %v264 = vld [vmem:[%s206 + $0x30] sm:$0xe]
      %v265 = vld [vmem:[%s206 + $0x38] sm:$0x1]
      %v266 = vld [vmem:[%s206 + $0x3c] sm:$0xe]
      %v267 = vld [vmem:[%s206 + $0x44] sm:$0x1]
      %v268 = vld [vmem:[%s206 + $0x48] sm:$0xe]
      %v269 = vld [vmem:[%s206 + $0x50] sm:$0x1]
      %v270 = vld [vmem:[%s206 + $0x54] sm:$0xe]
      %v271 = vld [vmem:[%s206 + $0x5c] sm:$0x1]
      %v272 = vld [vmem:[%s206 + $0x60] sm:$0xe]
      %v273 = vld [vmem:[%s206 + $0x68] sm:$0x1]
      %v274 = vld [vmem:[%s206 + $0x6c] sm:$0xe]
      %v275 = vld [vmem:[%s206 + $0x74] sm:$0x1]
      %v276 = vld [vmem:[%s206 + $0x78] sm:$0xe]
      %v277 = vld [vmem:[%s206 + $0x80] sm:$0x1]
      %v278 = vld [vmem:[%s206 + $0x84] sm:$0xe]
      %v279 = vld [vmem:[%s206 + $0x8c] sm:$0x1]
      %v280 = vld [vmem:[%s206 + $0x90] sm:$0xe]
      %v281 = vld [vmem:[%s206 + $0x98] sm:$0x1]
      %v282 = vld [vmem:[%s206 + $0x9c] sm:$0xe]
      %v283 = vld [vmem:[%s206 + $0xa4] sm:$0x1]
      %v284 = vld [vmem:[%s206 + $0xa8] sm:$0xe]
      %v285 = vld [vmem:[%s206 + $0xb0] sm:$0x1]
      %v286 = vld [vmem:[%s206 + $0xb4] sm:$0xe]
      %v287 = vld [vmem:[%s206 + $0xbc] sm:$0x1]
      %vm336 = vcmask 1042432
      %vm337 = vcmask 1046532
      %vm338 = vmor %vm336, %vm337
      %v339 = vrot.slane %v256, 5
      %v340 = vrot.slane %v339, 4
      %v341 = vrot.slane %v224, 5
      %v342 = vsel %vm338, %v340, %v341
      %v343 = vrot.slane %v341, 4
      %v344 = vrot.slane %v257, 5
      %v345 = vsel %vm338, %v343, %v344
      %v346 = vrot.slane %v258, 5
      %v347 = vrot.slane %v346, 4
      %v348 = vrot.slane %v226, 5
      %v349 = vsel %vm338, %v347, %v348
      %v350 = vrot.slane %v348, 4
      %v351 = vrot.slane %v259, 5
      %v352 = vsel %vm338, %v350, %v351
      %v353 = vrot.slane %v260, 5
      %v354 = vrot.slane %v353, 4
      %v355 = vrot.slane %v228, 5
      %v356 = vsel %vm338, %v354, %v355
      %v357 = vrot.slane %v355, 4
      %v358 = vrot.slane %v261, 5
      %v359 = vsel %vm338, %v357, %v358
      %v360 = vrot.slane %v262, 5
      %v361 = vrot.slane %v360, 4
      %v362 = vrot.slane %v230, 5
      %v363 = vsel %vm338, %v361, %v362
      %v364 = vrot.slane %v362, 4
      %v365 = vrot.slane %v263, 5
      %v366 = vsel %vm338, %v364, %v365
      %v367 = vrot.slane %v264, 5
      %v368 = vrot.slane %v367, 4
      %v369 = vrot.slane %v232, 5
      %v370 = vsel %vm338, %v368, %v369
      %v371 = vrot.slane %v369, 4
      %v372 = vrot.slane %v265, 5
      %v373 = vsel %vm338, %v371, %v372
      %v374 = vrot.slane %v266, 5
      %v375 = vrot.slane %v374, 4
      %v376 = vrot.slane %v234, 5
      %v377 = vsel %vm338, %v375, %v376
      %v378 = vrot.slane %v376, 4
      %v379 = vrot.slane %v267, 5
      %v380 = vsel %vm338, %v378, %v379
      %v381 = vrot.slane %v268, 5
      %v382 = vrot.slane %v381, 4
      %v383 = vrot.slane %v236, 5
      %v384 = vsel %vm338, %v382, %v383
      %v385 = vrot.slane %v383, 4
      %v386 = vrot.slane %v269, 5
      %v387 = vsel %vm338, %v385, %v386
      %v388 = vrot.slane %v270, 5
      %v389 = vrot.slane %v388, 4
      %v390 = vrot.slane %v238, 5
      %v391 = vsel %vm338, %v389, %v390
      %v392 = vrot.slane %v390, 4
      %v393 = vrot.slane %v271, 5
      %v394 = vsel %vm338, %v392, %v393
      %v395 = vrot.slane %v272, 5
      %v396 = vrot.slane %v395, 4
      %v397 = vrot.slane %v240, 5
      %v398 = vsel %vm338, %v396, %v397
      %v399 = vrot.slane %v397, 4
      %v400 = vrot.slane %v273, 5
      %v401 = vsel %vm338, %v399, %v400
      %v402 = vrot.slane %v274, 5
      %v403 = vrot.slane %v402, 4
      %v404 = vrot.slane %v242, 5
      %v405 = vsel %vm338, %v403, %v404
      %v406 = vrot.slane %v404, 4
      %v407 = vrot.slane %v275, 5
      %v408 = vsel %vm338, %v406, %v407
      %v409 = vrot.slane %v276, 5
      %v410 = vrot.slane %v409, 4
      %v411 = vrot.slane %v244, 5
      %v412 = vsel %vm338, %v410, %v411
      %v413 = vrot.slane %v411, 4
      %v414 = vrot.slane %v277, 5
      %v415 = vsel %vm338, %v413, %v414
      %v416 = vrot.slane %v278, 5
      %v417 = vrot.slane %v416, 4
      %v418 = vrot.slane %v246, 5
      %v419 = vsel %vm338, %v417, %v418
      %v420 = vrot.slane %v418, 4
      %v421 = vrot.slane %v279, 5
      %v422 = vsel %vm338, %v420, %v421
      %v423 = vrot.slane %v280, 5
      %v424 = vrot.slane %v423, 4
      %v425 = vrot.slane %v248, 5
      %v426 = vsel %vm338, %v424, %v425
      %v427 = vrot.slane %v425, 4
      %v428 = vrot.slane %v281, 5
      %v429 = vsel %vm338, %v427, %v428
      %v430 = vrot.slane %v282, 5
      %v431 = vrot.slane %v430, 4
      %v432 = vrot.slane %v250, 5
      %v433 = vsel %vm338, %v431, %v432
      %v434 = vrot.slane %v432, 4
      %v435 = vrot.slane %v283, 5
      %v436 = vsel %vm338, %v434, %v435
      %v437 = vrot.slane %v284, 5
      %v438 = vrot.slane %v437, 4
      %v439 = vrot.slane %v252, 5
      %v440 = vsel %vm338, %v438, %v439
      %v441 = vrot.slane %v439, 4
      %v442 = vrot.slane %v285, 5
      %v443 = vsel %vm338, %v441, %v442
      %v444 = vrot.slane %v286, 5
      %v445 = vrot.slane %v444, 4
      %v446 = vrot.slane %v254, 5
      %v447 = vsel %vm338, %v445, %v446
      %v448 = vrot.slane %v446, 4
      %v449 = vrot.slane %v287, 5
      %v450 = vsel %vm338, %v448, %v449
      %s451 = scalar_lea.vmem %s210, 2
      %v452 = vld [vmem:[%s451] sm:$0x3]
      %v453 = vunpack.c.l.b16 %v342
      %v454 = vunpack.c.l.b16 %v345
      %v455 = vunpack.c.l.b16 %v349
      %v456 = vunpack.c.l.b16 %v352
      %v457 = vunpack.c.l.b16 %v356
      %v458 = vunpack.c.l.b16 %v359
      %v459 = vunpack.c.l.b16 %v363
      %v460 = vunpack.c.l.b16 %v366
      %v461 = vunpack.c.l.b16 %v370
      %v462 = vunpack.c.l.b16 %v373
      %v463 = vunpack.c.l.b16 %v377
      %v464 = vunpack.c.l.b16 %v380
      %v465 = vunpack.c.l.b16 %v384
      %v466 = vunpack.c.l.b16 %v387
      %v467 = vunpack.c.l.b16 %v391
      %v468 = vunpack.c.l.b16 %v394
      %v469 = vunpack.c.l.b16 %v398
      %v470 = vunpack.c.l.b16 %v401
      %v471 = vunpack.c.l.b16 %v405
      %v472 = vunpack.c.l.b16 %v408
      %v473 = vunpack.c.l.b16 %v412
      %v474 = vunpack.c.l.b16 %v415
      %v475 = vunpack.c.l.b16 %v419
      %v476 = vunpack.c.l.b16 %v422
      %v477 = vunpack.c.l.b16 %v426
      %v478 = vunpack.c.l.b16 %v429
      %v479 = vunpack.c.l.b16 %v433
      %v480 = vunpack.c.l.b16 %v436
      %v481 = vunpack.c.l.b16 %v440
      %v482 = vunpack.c.l.b16 %v443
      %v483 = vunpack.c.l.b16 %v447
      %v484 = vunpack.c.l.b16 %v450
      %v485 = vpack.c.b16 %v454, %v453
      %v486 = vpack.c.b16 %v456, %v455
      %v487 = vpack.c.b16 %v458, %v457
      %v488 = vpack.c.b16 %v460, %v459
      %v489 = vpack.c.b16 %v462, %v461
      %v490 = vpack.c.b16 %v464, %v463
      %v491 = vpack.c.b16 %v466, %v465
      %v492 = vpack.c.b16 %v468, %v467
      %v493 = vpack.c.b16 %v470, %v469
      %v494 = vpack.c.b16 %v472, %v471
      %v495 = vpack.c.b16 %v474, %v473
      %v496 = vpack.c.b16 %v476, %v475
      %v497 = vpack.c.b16 %v478, %v477
      %v498 = vpack.c.b16 %v480, %v479
      %v499 = vpack.c.b16 %v482, %v481
      %v500 = vpack.c.b16 %v484, %v483
      %vm501 = vcmask 31744
      %v503 = vsel %vm501, %v485, 0
      %v506 = vsel %vm501, %v486, 0
      %v509 = vsel %vm501, %v487, 0
      %v512 = vsel %vm501, %v488, 0
      %v515 = vsel %vm501, %v489, 0
      %v518 = vsel %vm501, %v490, 0
      %v521 = vsel %vm501, %v491, 0
      %v524 = vsel %vm501, %v492, 0
      %v527 = vsel %vm501, %v493, 0
      %v530 = vsel %vm501, %v494, 0
      %v533 = vsel %vm501, %v495, 0
      %v536 = vsel %vm501, %v496, 0
      %v539 = vsel %vm501, %v497, 0
      %v542 = vsel %vm501, %v498, 0
      %v545 = vsel %vm501, %v499, 0
      %v548 = vsel %vm501, %v500, 0
      %vm550 = vcmask 1041408
      %v552 = vsel %vm550, %v452, 0
      %554 = vmatprep.subr.bf16.mxu0 0
      %555 = vmatpush1.bf16.msra.mxu0 %v552
      %556 = vmatprep.subr.bf16.mxu0 0
      %557 = vmatpush1.bf16.msra.mxu0 0
      %558 = vmatprep.subr.bf16.mxu0 0
      %559 = vmatpush1.bf16.msra.mxu0 0
      %560 = vmatprep.subr.bf16.mxu0 0
      %561 = vmatpush1.bf16.msra.mxu0 0
      %562 = vmatprep.subr.bf16.mxu0 0
      %563 = vmatpush1.bf16.msra.mxu0 0
      %564 = vmatprep.subr.bf16.mxu0 0
      %565 = vmatpush1.bf16.msra.mxu0 0
      %566 = vmatprep.subr.bf16.mxu0 0
      %567 = vmatpush1.bf16.msra.mxu0 0
      %568 = vmatprep.subr.bf16.mxu0 0
      %569 = vmatpush1.bf16.msra.mxu0 0
      %570 = vmatprep.subr.bf16.mxu0 0
      %571 = vmatpush1.bf16.msra.mxu0 0
      %572 = vmatprep.subr.bf16.mxu0 0
      %573 = vmatpush1.bf16.msra.mxu0 0
      %574 = vmatprep.subr.bf16.mxu0 0
      %575 = vmatpush1.bf16.msra.mxu0 0
      %576 = vmatprep.subr.bf16.mxu0 0
      %577 = vmatpush1.bf16.msra.mxu0 0
      %578 = vmatprep.subr.bf16.mxu0 0
      %579 = vmatpush1.bf16.msra.mxu0 0
      %580 = vmatprep.subr.bf16.mxu0 0
      %581 = vmatpush1.bf16.msra.mxu0 0
      %582 = vmatprep.subr.bf16.mxu0 0
      %583 = vmatpush1.bf16.msra.mxu0 0
      %584 = vmatprep.subr.bf16.mxu0 0
      %585 = vmatpush1.bf16.msra.mxu0 0
      %586 = vmatprep.mubr.bf16.mxu0 0
      %587 = vmatmul.mubr.bf16.gmra.mrb[0].mxu0 %v503
      %v588 = vpop.f32.mrb[0].mxu0
      %v589 = vadd.f32 0.0, %v588
      %v590 = vpop.f32.mrb[0].mxu0
      %v591 = vpop.f32.mrb[0].mxu0
      %v592 = vadd.f32 0.0, %v591
      %v593 = vpop.f32.mrb[0].mxu0
      %594 = vmatprep.mubr.bf16.mxu0 0
      %595 = vmatmul.mubr.bf16.gmra.mrb[0].mxu0 %v506
      %v596 = vpop.f32.mrb[0].mxu0
      %v597 = vadd.f32 0.0, %v596
      %v598 = vpop.f32.mrb[0].mxu0
      %v599 = vpop.f32.mrb[0].mxu0
      %v600 = vadd.f32 0.0, %v599
      %v601 = vpop.f32.mrb[0].mxu0
      %602 = vmatprep.mubr.bf16.mxu0 0
      %603 = vmatmul.mubr.bf16.gmra.mrb[0].mxu0 %v509
      %v604 = vpop.f32.mrb[0].mxu0
      %v605 = vadd.f32 0.0, %v604
      %v606 = vpop.f32.mrb[0].mxu0
      %v607 = vpop.f32.mrb[0].mxu0
      %v608 = vadd.f32 0.0, %v607
      %v609 = vpop.f32.mrb[0].mxu0
      %610 = vmatprep.mubr.bf16.mxu0 0
      %611 = vmatmul.mubr.bf16.gmra.mrb[0].mxu0 %v512
      %v612 = vpop.f32.mrb[0].mxu0
      %v613 = vadd.f32 0.0, %v612
      %v614 = vpop.f32.mrb[0].mxu0
      %v615 = vpop.f32.mrb[0].mxu0
      %v616 = vadd.f32 0.0, %v615
      %v617 = vpop.f32.mrb[0].mxu0
      %618 = vmatprep.mubr.bf16.mxu0 0
      %619 = vmatmul.mubr.bf16.gmra.mrb[0].mxu0 %v515
      %v620 = vpop.f32.mrb[0].mxu0
      %v621 = vadd.f32 0.0, %v620
      %v622 = vpop.f32.mrb[0].mxu0
      %v623 = vpop.f32.mrb[0].mxu0
      %v624 = vadd.f32 0.0, %v623
      %v625 = vpop.f32.mrb[0].mxu0
      %626 = vmatprep.mubr.bf16.mxu0 0
      %627 = vmatmul.mubr.bf16.gmra.mrb[0].mxu0 %v518
      %v628 = vpop.f32.mrb[0].mxu0
      %v629 = vadd.f32 0.0, %v628
      %v630 = vpop.f32.mrb[0].mxu0
      %v631 = vpop.f32.mrb[0].mxu0
      %v632 = vadd.f32 0.0, %v631
      %v633 = vpop.f32.mrb[0].mxu0
      %634 = vmatprep.mubr.bf16.mxu0 0
      %635 = vmatmul.mubr.bf16.gmra.mrb[0].mxu0 %v521
      %v636 = vpop.f32.mrb[0].mxu0
      %v637 = vadd.f32 0.0, %v636
      %v638 = vpop.f32.mrb[0].mxu0
      %v639 = vpop.f32.mrb[0].mxu0
      %v640 = vadd.f32 0.0, %v639
      %v641 = vpop.f32.mrb[0].mxu0
      %642 = vmatprep.mubr.bf16.mxu0 0
      %643 = vmatmul.mubr.bf16.gmra.mrb[0].mxu0 %v524
      %v644 = vpop.f32.mrb[0].mxu0
      %v645 = vadd.f32 0.0, %v644
      %v646 = vpop.f32.mrb[0].mxu0
      %v647 = vpop.f32.mrb[0].mxu0
      %v648 = vadd.f32 0.0, %v647
      %v649 = vpop.f32.mrb[0].mxu0
      %650 = vmatprep.mubr.bf16.mxu0 0
      %651 = vmatmul.mubr.bf16.gmra.mrb[0].mxu0 %v527
      %v652 = vpop.f32.mrb[0].mxu0
      %v653 = vadd.f32 0.0, %v652
      %v654 = vpop.f32.mrb[0].mxu0
      %v655 = vpop.f32.mrb[0].mxu0
      %v656 = vadd.f32 0.0, %v655
      %v657 = vpop.f32.mrb[0].mxu0
      %658 = vmatprep.mubr.bf16.mxu0 0
      %659 = vmatmul.mubr.bf16.gmra.mrb[0].mxu0 %v530
      %v660 = vpop.f32.mrb[0].mxu0
      %v661 = vadd.f32 0.0, %v660
      %v662 = vpop.f32.mrb[0].mxu0
      %v663 = vpop.f32.mrb[0].mxu0
      %v664 = vadd.f32 0.0, %v663
      %v665 = vpop.f32.mrb[0].mxu0
      %666 = vmatprep.mubr.bf16.mxu0 0
      %667 = vmatmul.mubr.bf16.gmra.mrb[0].mxu0 %v533
      %v668 = vpop.f32.mrb[0].mxu0
      %v669 = vadd.f32 0.0, %v668
      %v670 = vpop.f32.mrb[0].mxu0
      %v671 = vpop.f32.mrb[0].mxu0
      %v672 = vadd.f32 0.0, %v671
      %v673 = vpop.f32.mrb[0].mxu0
      %674 = vmatprep.mubr.bf16.mxu0 0
      %675 = vmatmul.mubr.bf16.gmra.mrb[0].mxu0 %v536
      %v676 = vpop.f32.mrb[0].mxu0
      %v677 = vadd.f32 0.0, %v676
      %v678 = vpop.f32.mrb[0].mxu0
      %v679 = vpop.f32.mrb[0].mxu0
      %v680 = vadd.f32 0.0, %v679
      %v681 = vpop.f32.mrb[0].mxu0
      %682 = vmatprep.mubr.bf16.mxu0 0
      %683 = vmatmul.mubr.bf16.gmra.mrb[0].mxu0 %v539
      %v684 = vpop.f32.mrb[0].mxu0
      %v685 = vadd.f32 0.0, %v684
      %v686 = vpop.f32.mrb[0].mxu0
      %v687 = vpop.f32.mrb[0].mxu0
      %v688 = vadd.f32 0.0, %v687
      %v689 = vpop.f32.mrb[0].mxu0
      %690 = vmatprep.mubr.bf16.mxu0 0
      %691 = vmatmul.mubr.bf16.gmra.mrb[0].mxu0 %v542
      %v692 = vpop.f32.mrb[0].mxu0
      %v693 = vadd.f32 0.0, %v692
      %v694 = vpop.f32.mrb[0].mxu0
      %v695 = vpop.f32.mrb[0].mxu0
      %v696 = vadd.f32 0.0, %v695
      %v697 = vpop.f32.mrb[0].mxu0
      %698 = vmatprep.mubr.bf16.mxu0 0
      %699 = vmatmul.mubr.bf16.gmra.mrb[0].mxu0 %v545
      %v700 = vpop.f32.mrb[0].mxu0
      %v701 = vadd.f32 0.0, %v700
      %v702 = vpop.f32.mrb[0].mxu0
      %v703 = vpop.f32.mrb[0].mxu0
      %v704 = vadd.f32 0.0, %v703
      %v705 = vpop.f32.mrb[0].mxu0
      %706 = vmatprep.mubr.bf16.mxu0 0
      %707 = vmatmul.mubr.bf16.gmra.mrb[0].mxu0 %v548
      %v708 = vpop.f32.mrb[0].mxu0
      %v709 = vadd.f32 0.0, %v708
      %v710 = vpop.f32.mrb[0].mxu0
      %v711 = vpop.f32.mrb[0].mxu0
      %v712 = vadd.f32 0.0, %v711
      %v713 = vpop.f32.mrb[0].mxu0
      %714 = vdwg.mxu0
      %v731 = vunpack.c.l.b16 %v223
      %v732 = vunpack.c.l.b16 %v224
      %v733 = vunpack.c.l.b16 %v225
      %v734 = vunpack.c.l.b16 %v226
      %v735 = vunpack.c.l.b16 %v227
      %v736 = vunpack.c.l.b16 %v228
      %v737 = vunpack.c.l.b16 %v229
      %v738 = vunpack.c.l.b16 %v230
      %v739 = vunpack.c.l.b16 %v231
      %v740 = vunpack.c.l.b16 %v232
      %v741 = vunpack.c.l.b16 %v233
      %v742 = vunpack.c.l.b16 %v234
      %v743 = vunpack.c.l.b16 %v235
      %v744 = vunpack.c.l.b16 %v236
      %v745 = vunpack.c.l.b16 %v237
      %v746 = vunpack.c.l.b16 %v238
      %v747 = vunpack.c.l.b16 %v239
      %v748 = vunpack.c.l.b16 %v240
      %v749 = vunpack.c.l.b16 %v241
      %v750 = vunpack.c.l.b16 %v242
      %v751 = vunpack.c.l.b16 %v243
      %v752 = vunpack.c.l.b16 %v244
      %v753 = vunpack.c.l.b16 %v245
      %v754 = vunpack.c.l.b16 %v246
      %v755 = vunpack.c.l.b16 %v247
      %v756 = vunpack.c.l.b16 %v248
      %v757 = vunpack.c.l.b16 %v249
      %v758 = vunpack.c.l.b16 %v250
      %v759 = vunpack.c.l.b16 %v251
      %v760 = vunpack.c.l.b16 %v252
      %v761 = vunpack.c.l.b16 %v253
      %v762 = vunpack.c.l.b16 %v254
      %v763 = vpack.c.b16 %v732, %v731
      %v764 = vpack.c.b16 %v734, %v733
      %v765 = vpack.c.b16 %v736, %v735
      %v766 = vpack.c.b16 %v738, %v737
      %v767 = vpack.c.b16 %v740, %v739
      %v768 = vpack.c.b16 %v742, %v741
      %v769 = vpack.c.b16 %v744, %v743
      %v770 = vpack.c.b16 %v746, %v745
      %v771 = vpack.c.b16 %v748, %v747
      %v772 = vpack.c.b16 %v750, %v749
      %v773 = vpack.c.b16 %v752, %v751
      %v774 = vpack.c.b16 %v754, %v753
      %v775 = vpack.c.b16 %v756, %v755
      %v776 = vpack.c.b16 %v758, %v757
      %v777 = vpack.c.b16 %v760, %v759
      %v778 = vpack.c.b16 %v762, %v761
      %v780 = vsel %vm501, %v763, 0
      %v783 = vsel %vm501, %v764, 0
      %v786 = vsel %vm501, %v765, 0
      %v789 = vsel %vm501, %v766, 0
      %v792 = vsel %vm501, %v767, 0
      %v795 = vsel %vm501, %v768, 0
      %v798 = vsel %vm501, %v769, 0
      %v801 = vsel %vm501, %v770, 0
      %v804 = vsel %vm501, %v771, 0
      %v807 = vsel %vm501, %v772, 0
      %v810 = vsel %vm501, %v773, 0
      %v813 = vsel %vm501, %v774, 0
      %v816 = vsel %vm501, %v775, 0
      %v819 = vsel %vm501, %v776, 0
      %v822 = vsel %vm501, %v777, 0
      %v825 = vsel %vm501, %v778, 0
      %v828 = vsel %vm550, %v255, 0
      %830 = vmatprep.subr.bf16.mxu0 0
      %831 = vmatpush1.bf16.msra.mxu0 %v828
      %832 = vmatprep.subr.bf16.mxu0 0
      %833 = vmatpush1.bf16.msra.mxu0 0
      %834 = vmatprep.subr.bf16.mxu0 0
      %835 = vmatpush1.bf16.msra.mxu0 0
      %836 = vmatprep.subr.bf16.mxu0 0
      %837 = vmatpush1.bf16.msra.mxu0 0
      %838 = vmatprep.subr.bf16.mxu0 0
      %839 = vmatpush1.bf16.msra.mxu0 0
      %840 = vmatprep.subr.bf16.mxu0 0
      %841 = vmatpush1.bf16.msra.mxu0 0
      %842 = vmatprep.subr.bf16.mxu0 0
      %843 = vmatpush1.bf16.msra.mxu0 0
      %844 = vmatprep.subr.bf16.mxu0 0
      %845 = vmatpush1.bf16.msra.mxu0 0
      %846 = vmatprep.subr.bf16.mxu0 0
      %847 = vmatpush1.bf16.msra.mxu0 0
      %848 = vmatprep.subr.bf16.mxu0 0
      %849 = vmatpush1.bf16.msra.mxu0 0
      %850 = vmatprep.subr.bf16.mxu0 0
      %851 = vmatpush1.bf16.msra.mxu0 0
      %852 = vmatprep.subr.bf16.mxu0 0
      %853 = vmatpush1.bf16.msra.mxu0 0
      %854 = vmatprep.subr.bf16.mxu0 0
      %855 = vmatpush1.bf16.msra.mxu0 0
      %856 = vmatprep.subr.bf16.mxu0 0
      %857 = vmatpush1.bf16.msra.mxu0 0
      %858 = vmatprep.subr.bf16.mxu0 0
      %859 = vmatpush1.bf16.msra.mxu0 0
      %860 = vmatprep.subr.bf16.mxu0 0
      %861 = vmatpush1.bf16.msra.mxu0 0
      %862 = vmatprep.mubr.bf16.mxu0 0
      %863 = vmatmul.mubr.bf16.gmra.mrb[0].mxu0 %v780
      %v864 = vpop.f32.mrb[0].mxu0
      %v865 = vadd.f32 %v589, %v864
      %v866 = vpop.f32.mrb[0].mxu0
      %v867 = vpop.f32.mrb[0].mxu0
      %v868 = vadd.f32 %v592, %v867
      %v869 = vpop.f32.mrb[0].mxu0
      %870 = vmatprep.mubr.bf16.mxu0 0
      %871 = vmatmul.mubr.bf16.gmra.mrb[0].mxu0 %v783
      %v872 = vpop.f32.mrb[0].mxu0
      %v873 = vadd.f32 %v597, %v872
      %v874 = vpop.f32.mrb[0].mxu0
      %v875 = vpop.f32.mrb[0].mxu0
      %v876 = vadd.f32 %v600, %v875
      %v877 = vpop.f32.mrb[0].mxu0
      %878 = vmatprep.mubr.bf16.mxu0 0
      %879 = vmatmul.mubr.bf16.gmra.mrb[0].mxu0 %v786
      %v880 = vpop.f32.mrb[0].mxu0
      %v881 = vadd.f32 %v605, %v880
      %v882 = vpop.f32.mrb[0].mxu0
      %v883 = vpop.f32.mrb[0].mxu0
      %v884 = vadd.f32 %v608, %v883
      %v885 = vpop.f32.mrb[0].mxu0
      %886 = vmatprep.mubr.bf16.mxu0 0
      %887 = vmatmul.mubr.bf16.gmra.mrb[0].mxu0 %v789
      %v888 = vpop.f32.mrb[0].mxu0
      %v889 = vadd.f32 %v613, %v888
      %v890 = vpop.f32.mrb[0].mxu0
      %v891 = vpop.f32.mrb[0].mxu0
      %v892 = vadd.f32 %v616, %v891
      %v893 = vpop.f32.mrb[0].mxu0
      %894 = vmatprep.mubr.bf16.mxu0 0
      %895 = vmatmul.mubr.bf16.gmra.mrb[0].mxu0 %v792
      %v896 = vpop.f32.mrb[0].mxu0
      %v897 = vadd.f32 %v621, %v896
      %v898 = vpop.f32.mrb[0].mxu0
      %v899 = vpop.f32.mrb[0].mxu0
      %v900 = vadd.f32 %v624, %v899
      %v901 = vpop.f32.mrb[0].mxu0
      %902 = vmatprep.mubr.bf16.mxu0 0
      %903 = vmatmul.mubr.bf16.gmra.mrb[0].mxu0 %v795
      %v904 = vpop.f32.mrb[0].mxu0
      %v905 = vadd.f32 %v629, %v904
      %v906 = vpop.f32.mrb[0].mxu0
      %v907 = vpop.f32.mrb[0].mxu0
      %v908 = vadd.f32 %v632, %v907
      %v909 = vpop.f32.mrb[0].mxu0
      %910 = vmatprep.mubr.bf16.mxu0 0
      %911 = vmatmul.mubr.bf16.gmra.mrb[0].mxu0 %v798
      %v912 = vpop.f32.mrb[0].mxu0
      %v913 = vadd.f32 %v637, %v912
      %v914 = vpop.f32.mrb[0].mxu0
      %v915 = vpop.f32.mrb[0].mxu0
      %v916 = vadd.f32 %v640, %v915
      %v917 = vpop.f32.mrb[0].mxu0
      %918 = vmatprep.mubr.bf16.mxu0 0
      %919 = vmatmul.mubr.bf16.gmra.mrb[0].mxu0 %v801
      %v920 = vpop.f32.mrb[0].mxu0
      %v921 = vadd.f32 %v645, %v920
      %v922 = vpop.f32.mrb[0].mxu0
      %v923 = vpop.f32.mrb[0].mxu0
      %v924 = vadd.f32 %v648, %v923
      %v925 = vpop.f32.mrb[0].mxu0
      %926 = vmatprep.mubr.bf16.mxu0 0
      %927 = vmatmul.mubr.bf16.gmra.mrb[0].mxu0 %v804
      %v928 = vpop.f32.mrb[0].mxu0
      %v929 = vadd.f32 %v653, %v928
      %v930 = vpop.f32.mrb[0].mxu0
      %v931 = vpop.f32.mrb[0].mxu0
      %v932 = vadd.f32 %v656, %v931
      %v933 = vpop.f32.mrb[0].mxu0
      %934 = vmatprep.mubr.bf16.mxu0 0
      %935 = vmatmul.mubr.bf16.gmra.mrb[0].mxu0 %v807
      %v936 = vpop.f32.mrb[0].mxu0
      %v937 = vadd.f32 %v661, %v936
      %v938 = vpop.f32.mrb[0].mxu0
      %v939 = vpop.f32.mrb[0].mxu0
      %v940 = vadd.f32 %v664, %v939
      %v941 = vpop.f32.mrb[0].mxu0
      %942 = vmatprep.mubr.bf16.mxu0 0
      %943 = vmatmul.mubr.bf16.gmra.mrb[0].mxu0 %v810
      %v944 = vpop.f32.mrb[0].mxu0
      %v945 = vadd.f32 %v669, %v944
      %v946 = vpop.f32.mrb[0].mxu0
      %v947 = vpop.f32.mrb[0].mxu0
      %v948 = vadd.f32 %v672, %v947
      %v949 = vpop.f32.mrb[0].mxu0
      %950 = vmatprep.mubr.bf16.mxu0 0
      %951 = vmatmul.mubr.bf16.gmra.mrb[0].mxu0 %v813
      %v952 = vpop.f32.mrb[0].mxu0
      %v953 = vadd.f32 %v677, %v952
      %v954 = vpop.f32.mrb[0].mxu0
      %v955 = vpop.f32.mrb[0].mxu0
      %v956 = vadd.f32 %v680, %v955
      %v957 = vpop.f32.mrb[0].mxu0
      %958 = vmatprep.mubr.bf16.mxu0 0
      %959 = vmatmul.mubr.bf16.gmra.mrb[0].mxu0 %v816
      %v960 = vpop.f32.mrb[0].mxu0
      %v961 = vadd.f32 %v685, %v960
      %v962 = vpop.f32.mrb[0].mxu0
      %v963 = vpop.f32.mrb[0].mxu0
      %v964 = vadd.f32 %v688, %v963
      %v965 = vpop.f32.mrb[0].mxu0
      %966 = vmatprep.mubr.bf16.mxu0 0
      %967 = vmatmul.mubr.bf16.gmra.mrb[0].mxu0 %v819
      %v968 = vpop.f32.mrb[0].mxu0
      %v969 = vadd.f32 %v693, %v968
      %v970 = vpop.f32.mrb[0].mxu0
      %v971 = vpop.f32.mrb[0].mxu0
      %v972 = vadd.f32 %v696, %v971
      %v973 = vpop.f32.mrb[0].mxu0
      %974 = vmatprep.mubr.bf16.mxu0 0
      %975 = vmatmul.mubr.bf16.gmra.mrb[0].mxu0 %v822
      %v976 = vpop.f32.mrb[0].mxu0
      %v977 = vadd.f32 %v701, %v976
      %v978 = vpop.f32.mrb[0].mxu0
      %v979 = vpop.f32.mrb[0].mxu0
      %v980 = vadd.f32 %v704, %v979
      %v981 = vpop.f32.mrb[0].mxu0
      %982 = vmatprep.mubr.bf16.mxu0 0
      %983 = vmatmul.mubr.bf16.gmra.mrb[0].mxu0 %v825
      %v984 = vpop.f32.mrb[0].mxu0
      %v985 = vadd.f32 %v709, %v984
      %v986 = vpop.f32.mrb[0].mxu0
      %v987 = vpop.f32.mrb[0].mxu0
      %v988 = vadd.f32 %v712, %v987
      %v989 = vpop.f32.mrb[0].mxu0
      %990 = vdwg.mxu0
      %v991 = vld [vmem:[%s206] sm:$0xc]
      %v992 = vld [vmem:[%s206 + $0x8] sm:$0x3]
      %v993 = vld [vmem:[%s206 + $0xc] sm:$0xc]
      %v994 = vld [vmem:[%s206 + $0x14] sm:$0x3]
      %v995 = vld [vmem:[%s206 + $0x18] sm:$0xc]
      %v996 = vld [vmem:[%s206 + $0x20] sm:$0x3]
      %v997 = vld [vmem:[%s206 + $0x24] sm:$0xc]
      %v998 = vld [vmem:[%s206 + $0x2c] sm:$0x3]
      %v999 = vld [vmem:[%s206 + $0x30] sm:$0xc]
      %v1000 = vld [vmem:[%s206 + $0x38] sm:$0x3]
      %v1001 = vld [vmem:[%s206 + $0x3c] sm:$0xc]
      %v1002 = vld [vmem:[%s206 + $0x44] sm:$0x3]
      %v1003 = vld [vmem:[%s206 + $0x48] sm:$0xc]
      %v1004 = vld [vmem:[%s206 + $0x50] sm:$0x3]
      %v1005 = vld [vmem:[%s206 + $0x54] sm:$0xc]
      %v1006 = vld [vmem:[%s206 + $0x5c] sm:$0x3]
      %v1007 = vld [vmem:[%s206 + $0x60] sm:$0xc]
      %v1008 = vld [vmem:[%s206 + $0x68] sm:$0x3]
      %v1009 = vld [vmem:[%s206 + $0x6c] sm:$0xc]
      %v1010 = vld [vmem:[%s206 + $0x74] sm:$0x3]
      %v1011 = vld [vmem:[%s206 + $0x78] sm:$0xc]
      %v1012 = vld [vmem:[%s206 + $0x80] sm:$0x3]
      %v1013 = vld [vmem:[%s206 + $0x84] sm:$0xc]
      %v1014 = vld [vmem:[%s206 + $0x8c] sm:$0x3]
      %v1015 = vld [vmem:[%s206 + $0x90] sm:$0xc]
      %v1016 = vld [vmem:[%s206 + $0x98] sm:$0x3]
      %v1017 = vld [vmem:[%s206 + $0x9c] sm:$0xc]
      %v1018 = vld [vmem:[%s206 + $0xa4] sm:$0x3]
      %v1019 = vld [vmem:[%s206 + $0xa8] sm:$0xc]
      %v1020 = vld [vmem:[%s206 + $0xb0] sm:$0x3]
      %v1021 = vld [vmem:[%s206 + $0xb4] sm:$0xc]
      %v1022 = vld [vmem:[%s206 + $0xbc] sm:$0x3]
      %vm1055 = vcmask 1041408
      %vm1056 = vcmask 1045508
      %vm1057 = vmor %vm1055, %vm1056
      %v1058 = vrot.slane %v991, 6
      %v1059 = vrot.slane %v1058, 4
      %v1060 = vrot.slane %v224, 6
      %v1061 = vsel %vm1057, %v1059, %v1060
      %v1062 = vrot.slane %v1060, 4
      %v1063 = vrot.slane %v992, 6
      %v1064 = vsel %vm1057, %v1062, %v1063
      %v1065 = vrot.slane %v993, 6
      %v1066 = vrot.slane %v1065, 4
      %v1067 = vrot.slane %v226, 6
      %v1068 = vsel %vm1057, %v1066, %v1067
      %v1069 = vrot.slane %v1067, 4
      %v1070 = vrot.slane %v994, 6
      %v1071 = vsel %vm1057, %v1069, %v1070
      %v1072 = vrot.slane %v995, 6
      %v1073 = vrot.slane %v1072, 4
      %v1074 = vrot.slane %v228, 6
      %v1075 = vsel %vm1057, %v1073, %v1074
      %v1076 = vrot.slane %v1074, 4
      %v1077 = vrot.slane %v996, 6
      %v1078 = vsel %vm1057, %v1076, %v1077
      %v1079 = vrot.slane %v997, 6
      %v1080 = vrot.slane %v1079, 4
      %v1081 = vrot.slane %v230, 6
      %v1082 = vsel %vm1057, %v1080, %v1081
      %v1083 = vrot.slane %v1081, 4
      %v1084 = vrot.slane %v998, 6
      %v1085 = vsel %vm1057, %v1083, %v1084
      %v1086 = vrot.slane %v999, 6
      %v1087 = vrot.slane %v1086, 4
      %v1088 = vrot.slane %v232, 6
      %v1089 = vsel %vm1057, %v1087, %v1088
      %v1090 = vrot.slane %v1088, 4
      %v1091 = vrot.slane %v1000, 6
      %v1092 = vsel %vm1057, %v1090, %v1091
      %v1093 = vrot.slane %v1001, 6
      %v1094 = vrot.slane %v1093, 4
      %v1095 = vrot.slane %v234, 6
      %v1096 = vsel %vm1057, %v1094, %v1095
      %v1097 = vrot.slane %v1095, 4
      %v1098 = vrot.slane %v1002, 6
      %v1099 = vsel %vm1057, %v1097, %v1098
      %v1100 = vrot.slane %v1003, 6
      %v1101 = vrot.slane %v1100, 4
      %v1102 = vrot.slane %v236, 6
      %v1103 = vsel %vm1057, %v1101, %v1102
      %v1104 = vrot.slane %v1102, 4
      %v1105 = vrot.slane %v1004, 6
      %v1106 = vsel %vm1057, %v1104, %v1105
      %v1107 = vrot.slane %v1005, 6
      %v1108 = vrot.slane %v1107, 4
      %v1109 = vrot.slane %v238, 6
      %v1110 = vsel %vm1057, %v1108, %v1109
      %v1111 = vrot.slane %v1109, 4
      %v1112 = vrot.slane %v1006, 6
      %v1113 = vsel %vm1057, %v1111, %v1112
      %v1114 = vrot.slane %v1007, 6
      %v1115 = vrot.slane %v1114, 4
      %v1116 = vrot.slane %v240, 6
      %v1117 = vsel %vm1057, %v1115, %v1116
      %v1118 = vrot.slane %v1116, 4
      %v1119 = vrot.slane %v1008, 6
      %v1120 = vsel %vm1057, %v1118, %v1119
      %v1121 = vrot.slane %v1009, 6
      %v1122 = vrot.slane %v1121, 4
      %v1123 = vrot.slane %v242, 6
      %v1124 = vsel %vm1057, %v1122, %v1123
      %v1125 = vrot.slane %v1123, 4
      %v1126 = vrot.slane %v1010, 6
      %v1127 = vsel %vm1057, %v1125, %v1126
      %v1128 = vrot.slane %v1011, 6
      %v1129 = vrot.slane %v1128, 4
      %v1130 = vrot.slane %v244, 6
      %v1131 = vsel %vm1057, %v1129, %v1130
      %v1132 = vrot.slane %v1130, 4
      %v1133 = vrot.slane %v1012, 6
      %v1134 = vsel %vm1057, %v1132, %v1133
      %v1135 = vrot.slane %v1013, 6
      %v1136 = vrot.slane %v1135, 4
      %v1137 = vrot.slane %v246, 6
      %v1138 = vsel %vm1057, %v1136, %v1137
      %v1139 = vrot.slane %v1137, 4
      %v1140 = vrot.slane %v1014, 6
      %v1141 = vsel %vm1057, %v1139, %v1140
      %v1142 = vrot.slane %v1015, 6
      %v1143 = vrot.slane %v1142, 4
      %v1144 = vrot.slane %v248, 6
      %v1145 = vsel %vm1057, %v1143, %v1144
      %v1146 = vrot.slane %v1144, 4
      %v1147 = vrot.slane %v1016, 6
      %v1148 = vsel %vm1057, %v1146, %v1147
      %v1149 = vrot.slane %v1017, 6
      %v1150 = vrot.slane %v1149, 4
      %v1151 = vrot.slane %v250, 6
      %v1152 = vsel %vm1057, %v1150, %v1151
      %v1153 = vrot.slane %v1151, 4
      %v1154 = vrot.slane %v1018, 6
      %v1155 = vsel %vm1057, %v1153, %v1154
      %v1156 = vrot.slane %v1019, 6
      %v1157 = vrot.slane %v1156, 4
      %v1158 = vrot.slane %v252, 6
      %v1159 = vsel %vm1057, %v1157, %v1158
      %v1160 = vrot.slane %v1158, 4
      %v1161 = vrot.slane %v1020, 6
      %v1162 = vsel %vm1057, %v1160, %v1161
      %v1163 = vrot.slane %v1021, 6
      %v1164 = vrot.slane %v1163, 4
      %v1165 = vrot.slane %v254, 6
      %v1166 = vsel %vm1057, %v1164, %v1165
      %v1167 = vrot.slane %v1165, 4
      %v1168 = vrot.slane %v1022, 6
      %v1169 = vsel %vm1057, %v1167, %v1168
      %s1170 = scalar_lea.vmem %s210, 4
      %v1171 = vld [vmem:[%s1170] sm:$0x3]
      %v1172 = vunpack.c.l.b16 %v1061
      %v1173 = vunpack.c.l.b16 %v1064
      %v1174 = vunpack.c.l.b16 %v1068
      %v1175 = vunpack.c.l.b16 %v1071
      %v1176 = vunpack.c.l.b16 %v1075
      %v1177 = vunpack.c.l.b16 %v1078
      %v1178 = vunpack.c.l.b16 %v1082
      %v1179 = vunpack.c.l.b16 %v1085
      %v1180 = vunpack.c.l.b16 %v1089
      %v1181 = vunpack.c.l.b16 %v1092
      %v1182 = vunpack.c.l.b16 %v1096
      %v1183 = vunpack.c.l.b16 %v1099
      %v1184 = vunpack.c.l.b16 %v1103
      %v1185 = vunpack.c.l.b16 %v1106
      %v1186 = vunpack.c.l.b16 %v1110
      %v1187 = vunpack.c.l.b16 %v1113
      %v1188 = vunpack.c.l.b16 %v1117
      %v1189 = vunpack.c.l.b16 %v1120
      %v1190 = vunpack.c.l.b16 %v1124
      %v1191 = vunpack.c.l.b16 %v1127
      %v1192 = vunpack.c.l.b16 %v1131
      %v1193 = vunpack.c.l.b16 %v1134
      %v1194 = vunpack.c.l.b16 %v1138
      %v1195 = vunpack.c.l.b16 %v1141
      %v1196 = vunpack.c.l.b16 %v1145
      %v1197 = vunpack.c.l.b16 %v1148
      %v1198 = vunpack.c.l.b16 %v1152
      %v1199 = vunpack.c.l.b16 %v1155
      %v1200 = vunpack.c.l.b16 %v1159
      %v1201 = vunpack.c.l.b16 %v1162
      %v1202 = vunpack.c.l.b16 %v1166
      %v1203 = vunpack.c.l.b16 %v1169
      %v1204 = vpack.c.b16 %v1173, %v1172
      %v1205 = vpack.c.b16 %v1175, %v1174
      %v1206 = vpack.c.b16 %v1177, %v1176
      %v1207 = vpack.c.b16 %v1179, %v1178
      %v1208 = vpack.c.b16 %v1181, %v1180
      %v1209 = vpack.c.b16 %v1183, %v1182
      %v1210 = vpack.c.b16 %v1185, %v1184
      %v1211 = vpack.c.b16 %v1187, %v1186
      %v1212 = vpack.c.b16 %v1189, %v1188
      %v1213 = vpack.c.b16 %v1191, %v1190
      %v1214 = vpack.c.b16 %v1193, %v1192
      %v1215 = vpack.c.b16 %v1195, %v1194
      %v1216 = vpack.c.b16 %v1197, %v1196
      %v1217 = vpack.c.b16 %v1199, %v1198
      %v1218 = vpack.c.b16 %v1201, %v1200
      %v1219 = vpack.c.b16 %v1203, %v1202
      %v1221 = vsel %vm501, %v1204, 0
      %v1224 = vsel %vm501, %v1205, 0
      %v1227 = vsel %vm501, %v1206, 0
      %v1230 = vsel %vm501, %v1207, 0
      %v1233 = vsel %vm501, %v1208, 0
      %v1236 = vsel %vm501, %v1209, 0
      %v1239 = vsel %vm501, %v1210, 0
      %v1242 = vsel %vm501, %v1211, 0
      %v1245 = vsel %vm501, %v1212, 0
      %v1248 = vsel %vm501, %v1213, 0
      %v1251 = vsel %vm501, %v1214, 0
      %v1254 = vsel %vm501, %v1215, 0
      %v1257 = vsel %vm501, %v1216, 0
      %v1260 = vsel %vm501, %v1217, 0
      %v1263 = vsel %vm501, %v1218, 0
      %v1266 = vsel %vm501, %v1219, 0
      %v1269 = vsel %vm550, %v1171, 0
      %1271 = vmatprep.subr.bf16.mxu0 0
      %1272 = vmatpush1.bf16.msra.mxu0 %v1269
      %1273 = vmatprep.subr.bf16.mxu0 0
      %1274 = vmatpush1.bf16.msra.mxu0 0
      %1275 = vmatprep.subr.bf16.mxu0 0
      %1276 = vmatpush1.bf16.msra.mxu0 0
      %1277 = vmatprep.subr.bf16.mxu0 0
      %1278 = vmatpush1.bf16.msra.mxu0 0
      %1279 = vmatprep.subr.bf16.mxu0 0
      %1280 = vmatpush1.bf16.msra.mxu0 0
      %1281 = vmatprep.subr.bf16.mxu0 0
      %1282 = vmatpush1.bf16.msra.mxu0 0
      %1283 = vmatprep.subr.bf16.mxu0 0
      %1284 = vmatpush1.bf16.msra.mxu0 0
      %1285 = vmatprep.subr.bf16.mxu0 0
      %1286 = vmatpush1.bf16.msra.mxu0 0
      %1287 = vmatprep.subr.bf16.mxu0 0
      %1288 = vmatpush1.bf16.msra.mxu0 0
      %1289 = vmatprep.subr.bf16.mxu0 0
      %1290 = vmatpush1.bf16.msra.mxu0 0
      %1291 = vmatprep.subr.bf16.mxu0 0
      %1292 = vmatpush1.bf16.msra.mxu0 0
      %1293 = vmatprep.subr.bf16.mxu0 0
      %1294 = vmatpush1.bf16.msra.mxu0 0
      %1295 = vmatprep.subr.bf16.mxu0 0
      %1296 = vmatpush1.bf16.msra.mxu0 0
      %1297 = vmatprep.subr.bf16.mxu0 0
      %1298 = vmatpush1.bf16.msra.mxu0 0
      %1299 = vmatprep.subr.bf16.mxu0 0
      %1300 = vmatpush1.bf16.msra.mxu0 0
      %1301 = vmatprep.subr.bf16.mxu0 0
      %1302 = vmatpush1.bf16.msra.mxu0 0
      %1303 = vmatprep.mubr.bf16.mxu0 0
      %1304 = vmatmul.mubr.bf16.gmra.mrb[0].mxu0 %v1221
      %v1305 = vpop.f32.mrb[0].mxu0
      %v1306 = vadd.f32 0.0, %v1305
      %v1307 = vpop.f32.mrb[0].mxu0
      %v1308 = vpop.f32.mrb[0].mxu0
      %v1309 = vadd.f32 0.0, %v1308
      %v1310 = vpop.f32.mrb[0].mxu0
      %1311 = vmatprep.mubr.bf16.mxu0 0
      %1312 = vmatmul.mubr.bf16.gmra.mrb[0].mxu0 %v1224
      %v1313 = vpop.f32.mrb[0].mxu0
      %v1314 = vadd.f32 0.0, %v1313
      %v1315 = vpop.f32.mrb[0].mxu0
      %v1316 = vpop.f32.mrb[0].mxu0
      %v1317 = vadd.f32 0.0, %v1316
      %v1318 = vpop.f32.mrb[0].mxu0
      %1319 = vmatprep.mubr.bf16.mxu0 0
      %1320 = vmatmul.mubr.bf16.gmra.mrb[0].mxu0 %v1227
      %v1321 = vpop.f32.mrb[0].mxu0
      %v1322 = vadd.f32 0.0, %v1321
      %v1323 = vpop.f32.mrb[0].mxu0
      %v1324 = vpop.f32.mrb[0].mxu0
      %v1325 = vadd.f32 0.0, %v1324
      %v1326 = vpop.f32.mrb[0].mxu0
      %1327 = vmatprep.mubr.bf16.mxu0 0
      %1328 = vmatmul.mubr.bf16.gmra.mrb[0].mxu0 %v1230
      %v1329 = vpop.f32.mrb[0].mxu0
      %v1330 = vadd.f32 0.0, %v1329
      %v1331 = vpop.f32.mrb[0].mxu0
      %v1332 = vpop.f32.mrb[0].mxu0
      %v1333 = vadd.f32 0.0, %v1332
      %v1334 = vpop.f32.mrb[0].mxu0
      %1335 = vmatprep.mubr.bf16.mxu0 0
      %1336 = vmatmul.mubr.bf16.gmra.mrb[0].mxu0 %v1233
      %v1337 = vpop.f32.mrb[0].mxu0
      %v1338 = vadd.f32 0.0, %v1337
      %v1339 = vpop.f32.mrb[0].mxu0
      %v1340 = vpop.f32.mrb[0].mxu0
      %v1341 = vadd.f32 0.0, %v1340
      %v1342 = vpop.f32.mrb[0].mxu0
      %1343 = vmatprep.mubr.bf16.mxu0 0
      %1344 = vmatmul.mubr.bf16.gmra.mrb[0].mxu0 %v1236
      %v1345 = vpop.f32.mrb[0].mxu0
      %v1346 = vadd.f32 0.0, %v1345
      %v1347 = vpop.f32.mrb[0].mxu0
      %v1348 = vpop.f32.mrb[0].mxu0
      %v1349 = vadd.f32 0.0, %v1348
      %v1350 = vpop.f32.mrb[0].mxu0
      %1351 = vmatprep.mubr.bf16.mxu0 0
      %1352 = vmatmul.mubr.bf16.gmra.mrb[0].mxu0 %v1239
      %v1353 = vpop.f32.mrb[0].mxu0
      %v1354 = vadd.f32 0.0, %v1353
      %v1355 = vpop.f32.mrb[0].mxu0
      %v1356 = vpop.f32.mrb[0].mxu0
      %v1357 = vadd.f32 0.0, %v1356
      %v1358 = vpop.f32.mrb[0].mxu0
      %1359 = vmatprep.mubr.bf16.mxu0 0
      %1360 = vmatmul.mubr.bf16.gmra.mrb[0].mxu0 %v1242
      %v1361 = vpop.f32.mrb[0].mxu0
      %v1362 = vadd.f32 0.0, %v1361
      %v1363 = vpop.f32.mrb[0].mxu0
      %v1364 = vpop.f32.mrb[0].mxu0
      %v1365 = vadd.f32 0.0, %v1364
      %v1366 = vpop.f32.mrb[0].mxu0
      %1367 = vmatprep.mubr.bf16.mxu0 0
      %1368 = vmatmul.mubr.bf16.gmra.mrb[0].mxu0 %v1245
      %v1369 = vpop.f32.mrb[0].mxu0
      %v1370 = vadd.f32 0.0, %v1369
      %v1371 = vpop.f32.mrb[0].mxu0
      %v1372 = vpop.f32.mrb[0].mxu0
      %v1373 = vadd.f32 0.0, %v1372
      %v1374 = vpop.f32.mrb[0].mxu0
      %1375 = vmatprep.mubr.bf16.mxu0 0
      %1376 = vmatmul.mubr.bf16.gmra.mrb[0].mxu0 %v1248
      %v1377 = vpop.f32.mrb[0].mxu0
      %v1378 = vadd.f32 0.0, %v1377
      %v1379 = vpop.f32.mrb[0].mxu0
      %v1380 = vpop.f32.mrb[0].mxu0
      %v1381 = vadd.f32 0.0, %v1380
      %v1382 = vpop.f32.mrb[0].mxu0
      %1383 = vmatprep.mubr.bf16.mxu0 0
      %1384 = vmatmul.mubr.bf16.gmra.mrb[0].mxu0 %v1251
      %v1385 = vpop.f32.mrb[0].mxu0
      %v1386 = vadd.f32 0.0, %v1385
      %v1387 = vpop.f32.mrb[0].mxu0
      %v1388 = vpop.f32.mrb[0].mxu0
      %v1389 = vadd.f32 0.0, %v1388
      %v1390 = vpop.f32.mrb[0].mxu0
      %1391 = vmatprep.mubr.bf16.mxu0 0
      %1392 = vmatmul.mubr.bf16.gmra.mrb[0].mxu0 %v1254
      %v1393 = vpop.f32.mrb[0].mxu0
      %v1394 = vadd.f32 0.0, %v1393
      %v1395 = vpop.f32.mrb[0].mxu0
      %v1396 = vpop.f32.mrb[0].mxu0
      %v1397 = vadd.f32 0.0, %v1396
      %v1398 = vpop.f32.mrb[0].mxu0
      %1399 = vmatprep.mubr.bf16.mxu0 0
      %1400 = vmatmul.mubr.bf16.gmra.mrb[0].mxu0 %v1257
      %v1401 = vpop.f32.mrb[0].mxu0
      %v1402 = vadd.f32 0.0, %v1401
      %v1403 = vpop.f32.mrb[0].mxu0
      %v1404 = vpop.f32.mrb[0].mxu0
      %v1405 = vadd.f32 0.0, %v1404
      %v1406 = vpop.f32.mrb[0].mxu0
      %1407 = vmatprep.mubr.bf16.mxu0 0
      %1408 = vmatmul.mubr.bf16.gmra.mrb[0].mxu0 %v1260
      %v1409 = vpop.f32.mrb[0].mxu0
      %v1410 = vadd.f32 0.0, %v1409
      %v1411 = vpop.f32.mrb[0].mxu0
      %v1412 = vpop.f32.mrb[0].mxu0
      %v1413 = vadd.f32 0.0, %v1412
      %v1414 = vpop.f32.mrb[0].mxu0
      %1415 = vmatprep.mubr.bf16.mxu0 0
      %1416 = vmatmul.mubr.bf16.gmra.mrb[0].mxu0 %v1263
      %v1417 = vpop.f32.mrb[0].mxu0
      %v1418 = vadd.f32 0.0, %v1417
      %v1419 = vpop.f32.mrb[0].mxu0
      %v1420 = vpop.f32.mrb[0].mxu0
      %v1421 = vadd.f32 0.0, %v1420
      %v1422 = vpop.f32.mrb[0].mxu0
      %1423 = vmatprep.mubr.bf16.mxu0 0
      %1424 = vmatmul.mubr.bf16.gmra.mrb[0].mxu0 %v1266
      %v1425 = vpop.f32.mrb[0].mxu0
      %v1426 = vadd.f32 0.0, %v1425
      %v1427 = vpop.f32.mrb[0].mxu0
      %v1428 = vpop.f32.mrb[0].mxu0
      %v1429 = vadd.f32 0.0, %v1428
      %v1430 = vpop.f32.mrb[0].mxu0
      %1431 = vdwg.mxu0
      %v1432 = vadd.f32 %v865, %v1306
      %v1433 = vadd.f32 %v868, %v1309
      %v1434 = vadd.f32 %v873, %v1314
      %v1435 = vadd.f32 %v876, %v1317
      %v1436 = vadd.f32 %v881, %v1322
      %v1437 = vadd.f32 %v884, %v1325
      %v1438 = vadd.f32 %v889, %v1330
      %v1439 = vadd.f32 %v892, %v1333
      %v1440 = vadd.f32 %v897, %v1338
      %v1441 = vadd.f32 %v900, %v1341
      %v1442 = vadd.f32 %v905, %v1346
      %v1443 = vadd.f32 %v908, %v1349
      %v1444 = vadd.f32 %v913, %v1354
      %v1445 = vadd.f32 %v916, %v1357
      %v1446 = vadd.f32 %v921, %v1362
      %v1447 = vadd.f32 %v924, %v1365
      %v1448 = vadd.f32 %v929, %v1370
      %v1449 = vadd.f32 %v932, %v1373
      %v1450 = vadd.f32 %v937, %v1378
      %v1451 = vadd.f32 %v940, %v1381
      %v1452 = vadd.f32 %v945, %v1386
      %v1453 = vadd.f32 %v948, %v1389
      %v1454 = vadd.f32 %v953, %v1394
      %v1455 = vadd.f32 %v956, %v1397
      %v1456 = vadd.f32 %v961, %v1402
      %v1457 = vadd.f32 %v964, %v1405
      %v1458 = vadd.f32 %v969, %v1410
      %v1459 = vadd.f32 %v972, %v1413
      %v1460 = vadd.f32 %v977, %v1418
      %v1461 = vadd.f32 %v980, %v1421
      %v1462 = vadd.f32 %v985, %v1426
      %v1463 = vadd.f32 %v988, %v1429
      %s1464 = scalar_lea.vmem %s206, 24
      %v1465 = vld [vmem:[%s1464] sm:$0xf]
      %v1466 = vld [vmem:[%s1464 + $0x4] sm:$0xf]
      %v1467 = vld [vmem:[%s1464 + $0xc] sm:$0xf]
      %v1468 = vld [vmem:[%s1464 + $0x10] sm:$0xf]
      %v1469 = vld [vmem:[%s1464 + $0x18] sm:$0xf]
      %v1470 = vld [vmem:[%s1464 + $0x1c] sm:$0xf]
      %v1471 = vld [vmem:[%s1464 + $0x24] sm:$0xf]
      %v1472 = vld [vmem:[%s1464 + $0x28] sm:$0xf]
      %v1473 = vld [vmem:[%s1464 + $0x30] sm:$0xf]
      %v1474 = vld [vmem:[%s1464 + $0x34] sm:$0xf]
      %v1475 = vld [vmem:[%s1464 + $0x3c] sm:$0xf]
      %v1476 = vld [vmem:[%s1464 + $0x40] sm:$0xf]
      %v1477 = vld [vmem:[%s1464 + $0x48] sm:$0xf]
      %v1478 = vld [vmem:[%s1464 + $0x4c] sm:$0xf]
      %v1479 = vld [vmem:[%s1464 + $0x54] sm:$0xf]
      %v1480 = vld [vmem:[%s1464 + $0x58] sm:$0xf]
      %v1481 = vld [vmem:[%s1464 + $0x60] sm:$0xf]
      %v1482 = vld [vmem:[%s1464 + $0x64] sm:$0xf]
      %v1483 = vld [vmem:[%s1464 + $0x6c] sm:$0xf]
      %v1484 = vld [vmem:[%s1464 + $0x70] sm:$0xf]
      %v1485 = vld [vmem:[%s1464 + $0x78] sm:$0xf]
      %v1486 = vld [vmem:[%s1464 + $0x7c] sm:$0xf]
      %v1487 = vld [vmem:[%s1464 + $0x84] sm:$0xf]
      %v1488 = vld [vmem:[%s1464 + $0x88] sm:$0xf]
      %v1489 = vld [vmem:[%s1464 + $0x90] sm:$0xf]
      %v1490 = vld [vmem:[%s1464 + $0x94] sm:$0xf]
      %v1491 = vld [vmem:[%s1464 + $0x9c] sm:$0xf]
      %v1492 = vld [vmem:[%s1464 + $0xa0] sm:$0xf]
      %v1493 = vld [vmem:[%s1464 + $0xa8] sm:$0xf]
      %v1494 = vld [vmem:[%s1464 + $0xac] sm:$0xf]
      %v1495 = vld [vmem:[%s1464 + $0xb4] sm:$0xf]
      %v1496 = vld [vmem:[%s1464 + $0xb8] sm:$0xf]
      %s1497 = scalar_lea.vmem %s210, 6
      %v1498 = vld [vmem:[%s1497] sm:$0x3]
      %v1531 = vunpack.c.l.b16 %v1465
      %v1532 = vunpack.c.l.b16 %v1466
      %v1533 = vunpack.c.l.b16 %v1467
      %v1534 = vunpack.c.l.b16 %v1468
      %v1535 = vunpack.c.l.b16 %v1469
      %v1536 = vunpack.c.l.b16 %v1470
      %v1537 = vunpack.c.l.b16 %v1471
      %v1538 = vunpack.c.l.b16 %v1472
      %v1539 = vunpack.c.l.b16 %v1473
      %v1540 = vunpack.c.l.b16 %v1474
      %v1541 = vunpack.c.l.b16 %v1475
      %v1542 = vunpack.c.l.b16 %v1476
      %v1543 = vunpack.c.l.b16 %v1477
      %v1544 = vunpack.c.l.b16 %v1478
      %v1545 = vunpack.c.l.b16 %v1479
      %v1546 = vunpack.c.l.b16 %v1480
      %v1547 = vunpack.c.l.b16 %v1481
      %v1548 = vunpack.c.l.b16 %v1482
      %v1549 = vunpack.c.l.b16 %v1483
      %v1550 = vunpack.c.l.b16 %v1484
      %v1551 = vunpack.c.l.b16 %v1485
      %v1552 = vunpack.c.l.b16 %v1486
      %v1553 = vunpack.c.l.b16 %v1487
      %v1554 = vunpack.c.l.b16 %v1488
      %v1555 = vunpack.c.l.b16 %v1489
      %v1556 = vunpack.c.l.b16 %v1490
      %v1557 = vunpack.c.l.b16 %v1491
      %v1558 = vunpack.c.l.b16 %v1492
      %v1559 = vunpack.c.l.b16 %v1493
      %v1560 = vunpack.c.l.b16 %v1494
      %v1561 = vunpack.c.l.b16 %v1495
      %v1562 = vunpack.c.l.b16 %v1496
      %v1563 = vpack.c.b16 %v1532, %v1531
      %v1564 = vpack.c.b16 %v1534, %v1533
      %v1565 = vpack.c.b16 %v1536, %v1535
      %v1566 = vpack.c.b16 %v1538, %v1537
      %v1567 = vpack.c.b16 %v1540, %v1539
      %v1568 = vpack.c.b16 %v1542, %v1541
      %v1569 = vpack.c.b16 %v1544, %v1543
      %v1570 = vpack.c.b16 %v1546, %v1545
      %v1571 = vpack.c.b16 %v1548, %v1547
      %v1572 = vpack.c.b16 %v1550, %v1549
      %v1573 = vpack.c.b16 %v1552, %v1551
      %v1574 = vpack.c.b16 %v1554, %v1553
      %v1575 = vpack.c.b16 %v1556, %v1555
      %v1576 = vpack.c.b16 %v1558, %v1557
      %v1577 = vpack.c.b16 %v1560, %v1559
      %v1578 = vpack.c.b16 %v1562, %v1561
      %v1580 = vsel %vm501, %v1563, 0
      %v1583 = vsel %vm501, %v1564, 0
      %v1586 = vsel %vm501, %v1565, 0
      %v1589 = vsel %vm501, %v1566, 0
      %v1592 = vsel %vm501, %v1567, 0
      %v1595 = vsel %vm501, %v1568, 0
      %v1598 = vsel %vm501, %v1569, 0
      %v1601 = vsel %vm501, %v1570, 0
      %v1604 = vsel %vm501, %v1571, 0
      %v1607 = vsel %vm501, %v1572, 0
      %v1610 = vsel %vm501, %v1573, 0
      %v1613 = vsel %vm501, %v1574, 0
      %v1616 = vsel %vm501, %v1575, 0
      %v1619 = vsel %vm501, %v1576, 0
      %v1622 = vsel %vm501, %v1577, 0
      %v1625 = vsel %vm501, %v1578, 0
      %v1628 = vsel %vm550, %v1498, 0
      %1630 = vmatprep.subr.bf16.mxu0 0
      %1631 = vmatpush1.bf16.msra.mxu0 %v1628
      %1632 = vmatprep.subr.bf16.mxu0 0
      %1633 = vmatpush1.bf16.msra.mxu0 0
      %1634 = vmatprep.subr.bf16.mxu0 0
      %1635 = vmatpush1.bf16.msra.mxu0 0
      %1636 = vmatprep.subr.bf16.mxu0 0
      %1637 = vmatpush1.bf16.msra.mxu0 0
      %1638 = vmatprep.subr.bf16.mxu0 0
      %1639 = vmatpush1.bf16.msra.mxu0 0
      %1640 = vmatprep.subr.bf16.mxu0 0
      %1641 = vmatpush1.bf16.msra.mxu0 0
      %1642 = vmatprep.subr.bf16.mxu0 0
      %1643 = vmatpush1.bf16.msra.mxu0 0
      %1644 = vmatprep.subr.bf16.mxu0 0
      %1645 = vmatpush1.bf16.msra.mxu0 0
      %1646 = vmatprep.subr.bf16.mxu0 0
      %1647 = vmatpush1.bf16.msra.mxu0 0
      %1648 = vmatprep.subr.bf16.mxu0 0
      %1649 = vmatpush1.bf16.msra.mxu0 0
      %1650 = vmatprep.subr.bf16.mxu0 0
      %1651 = vmatpush1.bf16.msra.mxu0 0
      %1652 = vmatprep.subr.bf16.mxu0 0
      %1653 = vmatpush1.bf16.msra.mxu0 0
      %1654 = vmatprep.subr.bf16.mxu0 0
      %1655 = vmatpush1.bf16.msra.mxu0 0
      %1656 = vmatprep.subr.bf16.mxu0 0
      %1657 = vmatpush1.bf16.msra.mxu0 0
      %1658 = vmatprep.subr.bf16.mxu0 0
      %1659 = vmatpush1.bf16.msra.mxu0 0
      %1660 = vmatprep.subr.bf16.mxu0 0
      %1661 = vmatpush1.bf16.msra.mxu0 0
      %1662 = vmatprep.mubr.bf16.mxu0 0
      %1663 = vmatmul.mubr.bf16.gmra.mrb[0].mxu0 %v1580
      %v1664 = vpop.f32.mrb[0].mxu0
      %v1665 = vadd.f32 0.0, %v1664
      %v1666 = vpop.f32.mrb[0].mxu0
      %v1667 = vpop.f32.mrb[0].mxu0
      %v1668 = vadd.f32 0.0, %v1667
      %v1669 = vpop.f32.mrb[0].mxu0
      %1670 = vmatprep.mubr.bf16.mxu0 0
      %1671 = vmatmul.mubr.bf16.gmra.mrb[0].mxu0 %v1583
      %v1672 = vpop.f32.mrb[0].mxu0
      %v1673 = vadd.f32 0.0, %v1672
      %v1674 = vpop.f32.mrb[0].mxu0
      %v1675 = vpop.f32.mrb[0].mxu0
      %v1676 = vadd.f32 0.0, %v1675
      %v1677 = vpop.f32.mrb[0].mxu0
      %1678 = vmatprep.mubr.bf16.mxu0 0
      %1679 = vmatmul.mubr.bf16.gmra.mrb[0].mxu0 %v1586
      %v1680 = vpop.f32.mrb[0].mxu0
      %v1681 = vadd.f32 0.0, %v1680
      %v1682 = vpop.f32.mrb[0].mxu0
      %v1683 = vpop.f32.mrb[0].mxu0
      %v1684 = vadd.f32 0.0, %v1683
      %v1685 = vpop.f32.mrb[0].mxu0
      %1686 = vmatprep.mubr.bf16.mxu0 0
      %1687 = vmatmul.mubr.bf16.gmra.mrb[0].mxu0 %v1589
      %v1688 = vpop.f32.mrb[0].mxu0
      %v1689 = vadd.f32 0.0, %v1688
      %v1690 = vpop.f32.mrb[0].mxu0
      %v1691 = vpop.f32.mrb[0].mxu0
      %v1692 = vadd.f32 0.0, %v1691
      %v1693 = vpop.f32.mrb[0].mxu0
      %1694 = vmatprep.mubr.bf16.mxu0 0
      %1695 = vmatmul.mubr.bf16.gmra.mrb[0].mxu0 %v1592
      %v1696 = vpop.f32.mrb[0].mxu0
      %v1697 = vadd.f32 0.0, %v1696
      %v1698 = vpop.f32.mrb[0].mxu0
      %v1699 = vpop.f32.mrb[0].mxu0
      %v1700 = vadd.f32 0.0, %v1699
      %v1701 = vpop.f32.mrb[0].mxu0
      %1702 = vmatprep.mubr.bf16.mxu0 0
      %1703 = vmatmul.mubr.bf16.gmra.mrb[0].mxu0 %v1595
      %v1704 = vpop.f32.mrb[0].mxu0
      %v1705 = vadd.f32 0.0, %v1704
      %v1706 = vpop.f32.mrb[0].mxu0
      %v1707 = vpop.f32.mrb[0].mxu0
      %v1708 = vadd.f32 0.0, %v1707
      %v1709 = vpop.f32.mrb[0].mxu0
      %1710 = vmatprep.mubr.bf16.mxu0 0
      %1711 = vmatmul.mubr.bf16.gmra.mrb[0].mxu0 %v1598
      %v1712 = vpop.f32.mrb[0].mxu0
      %v1713 = vadd.f32 0.0, %v1712
      %v1714 = vpop.f32.mrb[0].mxu0
      %v1715 = vpop.f32.mrb[0].mxu0
      %v1716 = vadd.f32 0.0, %v1715
      %v1717 = vpop.f32.mrb[0].mxu0
      %1718 = vmatprep.mubr.bf16.mxu0 0
      %1719 = vmatmul.mubr.bf16.gmra.mrb[0].mxu0 %v1601
      %v1720 = vpop.f32.mrb[0].mxu0
      %v1721 = vadd.f32 0.0, %v1720
      %v1722 = vpop.f32.mrb[0].mxu0
      %v1723 = vpop.f32.mrb[0].mxu0
      %v1724 = vadd.f32 0.0, %v1723
      %v1725 = vpop.f32.mrb[0].mxu0
      %1726 = vmatprep.mubr.bf16.mxu0 0
      %1727 = vmatmul.mubr.bf16.gmra.mrb[0].mxu0 %v1604
      %v1728 = vpop.f32.mrb[0].mxu0
      %v1729 = vadd.f32 0.0, %v1728
      %v1730 = vpop.f32.mrb[0].mxu0
      %v1731 = vpop.f32.mrb[0].mxu0
      %v1732 = vadd.f32 0.0, %v1731
      %v1733 = vpop.f32.mrb[0].mxu0
      %1734 = vmatprep.mubr.bf16.mxu0 0
      %1735 = vmatmul.mubr.bf16.gmra.mrb[0].mxu0 %v1607
      %v1736 = vpop.f32.mrb[0].mxu0
      %v1737 = vadd.f32 0.0, %v1736
      %v1738 = vpop.f32.mrb[0].mxu0
      %v1739 = vpop.f32.mrb[0].mxu0
      %v1740 = vadd.f32 0.0, %v1739
      %v1741 = vpop.f32.mrb[0].mxu0
      %1742 = vmatprep.mubr.bf16.mxu0 0
      %1743 = vmatmul.mubr.bf16.gmra.mrb[0].mxu0 %v1610
      %v1744 = vpop.f32.mrb[0].mxu0
      %v1745 = vadd.f32 0.0, %v1744
      %v1746 = vpop.f32.mrb[0].mxu0
      %v1747 = vpop.f32.mrb[0].mxu0
      %v1748 = vadd.f32 0.0, %v1747
      %v1749 = vpop.f32.mrb[0].mxu0
      %1750 = vmatprep.mubr.bf16.mxu0 0
      %1751 = vmatmul.mubr.bf16.gmra.mrb[0].mxu0 %v1613
      %v1752 = vpop.f32.mrb[0].mxu0
      %v1753 = vadd.f32 0.0, %v1752
      %v1754 = vpop.f32.mrb[0].mxu0
      %v1755 = vpop.f32.mrb[0].mxu0
      %v1756 = vadd.f32 0.0, %v1755
      %v1757 = vpop.f32.mrb[0].mxu0
      %1758 = vmatprep.mubr.bf16.mxu0 0
      %1759 = vmatmul.mubr.bf16.gmra.mrb[0].mxu0 %v1616
      %v1760 = vpop.f32.mrb[0].mxu0
      %v1761 = vadd.f32 0.0, %v1760
      %v1762 = vpop.f32.mrb[0].mxu0
      %v1763 = vpop.f32.mrb[0].mxu0
      %v1764 = vadd.f32 0.0, %v1763
      %v1765 = vpop.f32.mrb[0].mxu0
      %1766 = vmatprep.mubr.bf16.mxu0 0
      %1767 = vmatmul.mubr.bf16.gmra.mrb[0].mxu0 %v1619
      %v1768 = vpop.f32.mrb[0].mxu0
      %v1769 = vadd.f32 0.0, %v1768
      %v1770 = vpop.f32.mrb[0].mxu0
      %v1771 = vpop.f32.mrb[0].mxu0
      %v1772 = vadd.f32 0.0, %v1771
      %v1773 = vpop.f32.mrb[0].mxu0
      %1774 = vmatprep.mubr.bf16.mxu0 0
      %1775 = vmatmul.mubr.bf16.gmra.mrb[0].mxu0 %v1622
      %v1776 = vpop.f32.mrb[0].mxu0
      %v1777 = vadd.f32 0.0, %v1776
      %v1778 = vpop.f32.mrb[0].mxu0
      %v1779 = vpop.f32.mrb[0].mxu0
      %v1780 = vadd.f32 0.0, %v1779
      %v1781 = vpop.f32.mrb[0].mxu0
      %1782 = vmatprep.mubr.bf16.mxu0 0
      %1783 = vmatmul.mubr.bf16.gmra.mrb[0].mxu0 %v1625
      %v1784 = vpop.f32.mrb[0].mxu0
      %v1785 = vadd.f32 0.0, %v1784
      %v1786 = vpop.f32.mrb[0].mxu0
      %v1787 = vpop.f32.mrb[0].mxu0
      %v1788 = vadd.f32 0.0, %v1787
      %v1789 = vpop.f32.mrb[0].mxu0
      %1790 = vdwg.mxu0
      %v1791 = vadd.f32 %v1432, %v1665
      %v1792 = vadd.f32 %v1433, %v1668
      %v1793 = vadd.f32 %v1434, %v1673
      %v1794 = vadd.f32 %v1435, %v1676
      %v1795 = vadd.f32 %v1436, %v1681
      %v1796 = vadd.f32 %v1437, %v1684
      %v1797 = vadd.f32 %v1438, %v1689
      %v1798 = vadd.f32 %v1439, %v1692
      %v1799 = vadd.f32 %v1440, %v1697
      %v1800 = vadd.f32 %v1441, %v1700
      %v1801 = vadd.f32 %v1442, %v1705
      %v1802 = vadd.f32 %v1443, %v1708
      %v1803 = vadd.f32 %v1444, %v1713
      %v1804 = vadd.f32 %v1445, %v1716
      %v1805 = vadd.f32 %v1446, %v1721
      %v1806 = vadd.f32 %v1447, %v1724
      %v1807 = vadd.f32 %v1448, %v1729
      %v1808 = vadd.f32 %v1449, %v1732
      %v1809 = vadd.f32 %v1450, %v1737
      %v1810 = vadd.f32 %v1451, %v1740
      %v1811 = vadd.f32 %v1452, %v1745
      %v1812 = vadd.f32 %v1453, %v1748
      %v1813 = vadd.f32 %v1454, %v1753
      %v1814 = vadd.f32 %v1455, %v1756
      %v1815 = vadd.f32 %v1456, %v1761
      %v1816 = vadd.f32 %v1457, %v1764
      %v1817 = vadd.f32 %v1458, %v1769
      %v1818 = vadd.f32 %v1459, %v1772
      %v1819 = vadd.f32 %v1460, %v1777
      %v1820 = vadd.f32 %v1461, %v1780
      %v1821 = vadd.f32 %v1462, %v1785
      %v1822 = vadd.f32 %v1463, %v1788
      %v1823 = vld [vmem:[%s1464] sm:$0xe]
      %v1824 = vld [vmem:[%s1464 + $0x4] sm:$0xf]
      %v1825 = vld [vmem:[%s1464 + $0x8] sm:$0x1]
      %v1826 = vld [vmem:[%s1464 + $0xc] sm:$0xe]
      %v1827 = vld [vmem:[%s1464 + $0x10] sm:$0xf]
      %v1828 = vld [vmem:[%s1464 + $0x14] sm:$0x1]
      %v1829 = vld [vmem:[%s1464 + $0x18] sm:$0xe]
      %v1830 = vld [vmem:[%s1464 + $0x1c] sm:$0xf]
      %v1831 = vld [vmem:[%s1464 + $0x20] sm:$0x1]
      %v1832 = vld [vmem:[%s1464 + $0x24] sm:$0xe]
      %v1833 = vld [vmem:[%s1464 + $0x28] sm:$0xf]
      %v1834 = vld [vmem:[%s1464 + $0x2c] sm:$0x1]
      %v1835 = vld [vmem:[%s1464 + $0x30] sm:$0xe]
      %v1836 = vld [vmem:[%s1464 + $0x34] sm:$0xf]
      %v1837 = vld [vmem:[%s1464 + $0x38] sm:$0x1]
      %v1838 = vld [vmem:[%s1464 + $0x3c] sm:$0xe]
      %v1839 = vld [vmem:[%s1464 + $0x40] sm:$0xf]
      %v1840 = vld [vmem:[%s1464 + $0x44] sm:$0x1]
      %v1841 = vld [vmem:[%s1464 + $0x48] sm:$0xe]
      %v1842 = vld [vmem:[%s1464 + $0x4c] sm:$0xf]
      %v1843 = vld [vmem:[%s1464 + $0x50] sm:$0x1]
      %v1844 = vld [vmem:[%s1464 + $0x54] sm:$0xe]
      %v1845 = vld [vmem:[%s1464 + $0x58] sm:$0xf]
      %v1846 = vld [vmem:[%s1464 + $0x5c] sm:$0x1]
      %v1847 = vld [vmem:[%s1464 + $0x60] sm:$0xe]
      %v1848 = vld [vmem:[%s1464 + $0x64] sm:$0xf]
      %v1849 = vld [vmem:[%s1464 + $0x68] sm:$0x1]
      %v1850 = vld [vmem:[%s1464 + $0x6c] sm:$0xe]
      %v1851 = vld [vmem:[%s1464 + $0x70] sm:$0xf]
      %v1852 = vld [vmem:[%s1464 + $0x74] sm:$0x1]
      %v1853 = vld [vmem:[%s1464 + $0x78] sm:$0xe]
      %v1854 = vld [vmem:[%s1464 + $0x7c] sm:$0xf]
      %v1855 = vld [vmem:[%s1464 + $0x80] sm:$0x1]
      %v1856 = vld [vmem:[%s1464 + $0x84] sm:$0xe]
      %v1857 = vld [vmem:[%s1464 + $0x88] sm:$0xf]
      %v1858 = vld [vmem:[%s1464 + $0x8c] sm:$0x1]
      %v1859 = vld [vmem:[%s1464 + $0x90] sm:$0xe]
      %v1860 = vld [vmem:[%s1464 + $0x94] sm:$0xf]
      %v1861 = vld [vmem:[%s1464 + $0x98] sm:$0x1]
      %v1862 = vld [vmem:[%s1464 + $0x9c] sm:$0xe]
      %v1863 = vld [vmem:[%s1464 + $0xa0] sm:$0xf]
      %v1864 = vld [vmem:[%s1464 + $0xa4] sm:$0x1]
      %v1865 = vld [vmem:[%s1464 + $0xa8] sm:$0xe]
      %v1866 = vld [vmem:[%s1464 + $0xac] sm:$0xf]
      %v1867 = vld [vmem:[%s1464 + $0xb0] sm:$0x1]
      %v1868 = vld [vmem:[%s1464 + $0xb4] sm:$0xe]
      %v1869 = vld [vmem:[%s1464 + $0xb8] sm:$0xf]
      %v1870 = vld [vmem:[%s1464 + $0xbc] sm:$0x1]
      %v1919 = vrot.slane %v1823, 5
      %v1920 = vrot.slane %v1919, 4
      %v1921 = vrot.slane %v1824, 5
      %v1922 = vsel %vm338, %v1920, %v1921
      %v1923 = vrot.slane %v1921, 4
      %v1924 = vrot.slane %v1825, 5
      %v1925 = vsel %vm338, %v1923, %v1924
      %v1926 = vrot.slane %v1826, 5
      %v1927 = vrot.slane %v1926, 4
      %v1928 = vrot.slane %v1827, 5
      %v1929 = vsel %vm338, %v1927, %v1928
      %v1930 = vrot.slane %v1928, 4
      %v1931 = vrot.slane %v1828, 5
      %v1932 = vsel %vm338, %v1930, %v1931
      %v1933 = vrot.slane %v1829, 5
      %v1934 = vrot.slane %v1933, 4
      %v1935 = vrot.slane %v1830, 5
      %v1936 = vsel %vm338, %v1934, %v1935
      %v1937 = vrot.slane %v1935, 4
      %v1938 = vrot.slane %v1831, 5
      %v1939 = vsel %vm338, %v1937, %v1938
      %v1940 = vrot.slane %v1832, 5
      %v1941 = vrot.slane %v1940, 4
      %v1942 = vrot.slane %v1833, 5
      %v1943 = vsel %vm338, %v1941, %v1942
      %v1944 = vrot.slane %v1942, 4
      %v1945 = vrot.slane %v1834, 5
      %v1946 = vsel %vm338, %v1944, %v1945
      %v1947 = vrot.slane %v1835, 5
      %v1948 = vrot.slane %v1947, 4
      %v1949 = vrot.slane %v1836, 5
      %v1950 = vsel %vm338, %v1948, %v1949
      %v1951 = vrot.slane %v1949, 4
      %v1952 = vrot.slane %v1837, 5
      %v1953 = vsel %vm338, %v1951, %v1952
      %v1954 = vrot.slane %v1838, 5
      %v1955 = vrot.slane %v1954, 4
      %v1956 = vrot.slane %v1839, 5
      %v1957 = vsel %vm338, %v1955, %v1956
      %v1958 = vrot.slane %v1956, 4
      %v1959 = vrot.slane %v1840, 5
      %v1960 = vsel %vm338, %v1958, %v1959
      %v1961 = vrot.slane %v1841, 5
      %v1962 = vrot.slane %v1961, 4
      %v1963 = vrot.slane %v1842, 5
      %v1964 = vsel %vm338, %v1962, %v1963
      %v1965 = vrot.slane %v1963, 4
      %v1966 = vrot.slane %v1843, 5
      %v1967 = vsel %vm338, %v1965, %v1966
      %v1968 = vrot.slane %v1844, 5
      %v1969 = vrot.slane %v1968, 4
      %v1970 = vrot.slane %v1845, 5
      %v1971 = vsel %vm338, %v1969, %v1970
      %v1972 = vrot.slane %v1970, 4
      %v1973 = vrot.slane %v1846, 5
      %v1974 = vsel %vm338, %v1972, %v1973
      %v1975 = vrot.slane %v1847, 5
      %v1976 = vrot.slane %v1975, 4
      %v1977 = vrot.slane %v1848, 5
      %v1978 = vsel %vm338, %v1976, %v1977
      %v1979 = vrot.slane %v1977, 4
      %v1980 = vrot.slane %v1849, 5
      %v1981 = vsel %vm338, %v1979, %v1980
      %v1982 = vrot.slane %v1850, 5
      %v1983 = vrot.slane %v1982, 4
      %v1984 = vrot.slane %v1851, 5
      %v1985 = vsel %vm338, %v1983, %v1984
      %v1986 = vrot.slane %v1984, 4
      %v1987 = vrot.slane %v1852, 5
      %v1988 = vsel %vm338, %v1986, %v1987
      %v1989 = vrot.slane %v1853, 5
      %v1990 = vrot.slane %v1989, 4
      %v1991 = vrot.slane %v1854, 5
      %v1992 = vsel %vm338, %v1990, %v1991
      %v1993 = vrot.slane %v1991, 4
      %v1994 = vrot.slane %v1855, 5
      %v1995 = vsel %vm338, %v1993, %v1994
      %v1996 = vrot.slane %v1856, 5
      %v1997 = vrot.slane %v1996, 4
      %v1998 = vrot.slane %v1857, 5
      %v1999 = vsel %vm338, %v1997, %v1998
      %v2000 = vrot.slane %v1998, 4
      %v2001 = vrot.slane %v1858, 5
      %v2002 = vsel %vm338, %v2000, %v2001
      %v2003 = vrot.slane %v1859, 5
      %v2004 = vrot.slane %v2003, 4
      %v2005 = vrot.slane %v1860, 5
      %v2006 = vsel %vm338, %v2004, %v2005
      %v2007 = vrot.slane %v2005, 4
      %v2008 = vrot.slane %v1861, 5
      %v2009 = vsel %vm338, %v2007, %v2008
      %v2010 = vrot.slane %v1862, 5
      %v2011 = vrot.slane %v2010, 4
      %v2012 = vrot.slane %v1863, 5
      %v2013 = vsel %vm338, %v2011, %v2012
      %v2014 = vrot.slane %v2012, 4
      %v2015 = vrot.slane %v1864, 5
      %v2016 = vsel %vm338, %v2014, %v2015
      %v2017 = vrot.slane %v1865, 5
      %v2018 = vrot.slane %v2017, 4
      %v2019 = vrot.slane %v1866, 5
      %v2020 = vsel %vm338, %v2018, %v2019
      %v2021 = vrot.slane %v2019, 4
      %v2022 = vrot.slane %v1867, 5
      %v2023 = vsel %vm338, %v2021, %v2022
      %v2024 = vrot.slane %v1868, 5
      %v2025 = vrot.slane %v2024, 4
      %v2026 = vrot.slane %v1869, 5
      %v2027 = vsel %vm338, %v2025, %v2026
      %v2028 = vrot.slane %v2026, 4
      %v2029 = vrot.slane %v1870, 5
      %v2030 = vsel %vm338, %v2028, %v2029
      %s2031 = scalar_lea.vmem %s210, 8
      %v2032 = vld [vmem:[%s2031] sm:$0x3]
      %v2033 = vunpack.c.l.b16 %v1922
      %v2034 = vunpack.c.l.b16 %v1925
      %v2035 = vunpack.c.l.b16 %v1929
      %v2036 = vunpack.c.l.b16 %v1932
      %v2037 = vunpack.c.l.b16 %v1936
      %v2038 = vunpack.c.l.b16 %v1939
      %v2039 = vunpack.c.l.b16 %v1943
      %v2040 = vunpack.c.l.b16 %v1946
      %v2041 = vunpack.c.l.b16 %v1950
      %v2042 = vunpack.c.l.b16 %v1953
      %v2043 = vunpack.c.l.b16 %v1957
      %v2044 = vunpack.c.l.b16 %v1960
      %v2045 = vunpack.c.l.b16 %v1964
      %v2046 = vunpack.c.l.b16 %v1967
      %v2047 = vunpack.c.l.b16 %v1971
      %v2048 = vunpack.c.l.b16 %v1974
      %v2049 = vunpack.c.l.b16 %v1978
      %v2050 = vunpack.c.l.b16 %v1981
      %v2051 = vunpack.c.l.b16 %v1985
      %v2052 = vunpack.c.l.b16 %v1988
      %v2053 = vunpack.c.l.b16 %v1992
      %v2054 = vunpack.c.l.b16 %v1995
      %v2055 = vunpack.c.l.b16 %v1999
      %v2056 = vunpack.c.l.b16 %v2002
      %v2057 = vunpack.c.l.b16 %v2006
      %v2058 = vunpack.c.l.b16 %v2009
      %v2059 = vunpack.c.l.b16 %v2013
      %v2060 = vunpack.c.l.b16 %v2016
      %v2061 = vunpack.c.l.b16 %v2020
      %v2062 = vunpack.c.l.b16 %v2023
      %v2063 = vunpack.c.l.b16 %v2027
      %v2064 = vunpack.c.l.b16 %v2030
      %v2065 = vpack.c.b16 %v2034, %v2033
      %v2066 = vpack.c.b16 %v2036, %v2035
      %v2067 = vpack.c.b16 %v2038, %v2037
      %v2068 = vpack.c.b16 %v2040, %v2039
      %v2069 = vpack.c.b16 %v2042, %v2041
      %v2070 = vpack.c.b16 %v2044, %v2043
      %v2071 = vpack.c.b16 %v2046, %v2045
      %v2072 = vpack.c.b16 %v2048, %v2047
      %v2073 = vpack.c.b16 %v2050, %v2049
      %v2074 = vpack.c.b16 %v2052, %v2051
      %v2075 = vpack.c.b16 %v2054, %v2053
      %v2076 = vpack.c.b16 %v2056, %v2055
      %v2077 = vpack.c.b16 %v2058, %v2057
      %v2078 = vpack.c.b16 %v2060, %v2059
      %v2079 = vpack.c.b16 %v2062, %v2061
      %v2080 = vpack.c.b16 %v2064, %v2063
      %v2082 = vsel %vm501, %v2065, 0
      %v2085 = vsel %vm501, %v2066, 0
      %v2088 = vsel %vm501, %v2067, 0
      %v2091 = vsel %vm501, %v2068, 0
      %v2094 = vsel %vm501, %v2069, 0
      %v2097 = vsel %vm501, %v2070, 0
      %v2100 = vsel %vm501, %v2071, 0
      %v2103 = vsel %vm501, %v2072, 0
      %v2106 = vsel %vm501, %v2073, 0
      %v2109 = vsel %vm501, %v2074, 0
      %v2112 = vsel %vm501, %v2075, 0
      %v2115 = vsel %vm501, %v2076, 0
      %v2118 = vsel %vm501, %v2077, 0
      %v2121 = vsel %vm501, %v2078, 0
      %v2124 = vsel %vm501, %v2079, 0
      %v2127 = vsel %vm501, %v2080, 0
      %v2130 = vsel %vm550, %v2032, 0
      %2132 = vmatprep.subr.bf16.mxu0 0
      %2133 = vmatpush1.bf16.msra.mxu0 %v2130
      %2134 = vmatprep.subr.bf16.mxu0 0
      %2135 = vmatpush1.bf16.msra.mxu0 0
      %2136 = vmatprep.subr.bf16.mxu0 0
      %2137 = vmatpush1.bf16.msra.mxu0 0
      %2138 = vmatprep.subr.bf16.mxu0 0
      %2139 = vmatpush1.bf16.msra.mxu0 0
      %2140 = vmatprep.subr.bf16.mxu0 0
      %2141 = vmatpush1.bf16.msra.mxu0 0
      %2142 = vmatprep.subr.bf16.mxu0 0
      %2143 = vmatpush1.bf16.msra.mxu0 0
      %2144 = vmatprep.subr.bf16.mxu0 0
      %2145 = vmatpush1.bf16.msra.mxu0 0
      %2146 = vmatprep.subr.bf16.mxu0 0
      %2147 = vmatpush1.bf16.msra.mxu0 0
      %2148 = vmatprep.subr.bf16.mxu0 0
      %2149 = vmatpush1.bf16.msra.mxu0 0
      %2150 = vmatprep.subr.bf16.mxu0 0
      %2151 = vmatpush1.bf16.msra.mxu0 0
      %2152 = vmatprep.subr.bf16.mxu0 0
      %2153 = vmatpush1.bf16.msra.mxu0 0
      %2154 = vmatprep.subr.bf16.mxu0 0
      %2155 = vmatpush1.bf16.msra.mxu0 0
      %2156 = vmatprep.subr.bf16.mxu0 0
      %2157 = vmatpush1.bf16.msra.mxu0 0
      %2158 = vmatprep.subr.bf16.mxu0 0
      %2159 = vmatpush1.bf16.msra.mxu0 0
      %2160 = vmatprep.subr.bf16.mxu0 0
      %2161 = vmatpush1.bf16.msra.mxu0 0
      %2162 = vmatprep.subr.bf16.mxu0 0
      %2163 = vmatpush1.bf16.msra.mxu0 0
      %2164 = vmatprep.mubr.bf16.mxu0 0
      %2165 = vmatmul.mubr.bf16.gmra.mrb[0].mxu0 %v2082
      %v2166 = vpop.f32.mrb[0].mxu0
      %v2167 = vadd.f32 0.0, %v2166
      %v2168 = vpop.f32.mrb[0].mxu0
      %v2169 = vpop.f32.mrb[0].mxu0
      %v2170 = vadd.f32 0.0, %v2169
      %v2171 = vpop.f32.mrb[0].mxu0
      %2172 = vmatprep.mubr.bf16.mxu0 0
      %2173 = vmatmul.mubr.bf16.gmra.mrb[0].mxu0 %v2085
      %v2174 = vpop.f32.mrb[0].mxu0
      %v2175 = vadd.f32 0.0, %v2174
      %v2176 = vpop.f32.mrb[0].mxu0
      %v2177 = vpop.f32.mrb[0].mxu0
      %v2178 = vadd.f32 0.0, %v2177
      %v2179 = vpop.f32.mrb[0].mxu0
      %2180 = vmatprep.mubr.bf16.mxu0 0
      %2181 = vmatmul.mubr.bf16.gmra.mrb[0].mxu0 %v2088
      %v2182 = vpop.f32.mrb[0].mxu0
      %v2183 = vadd.f32 0.0, %v2182
      %v2184 = vpop.f32.mrb[0].mxu0
      %v2185 = vpop.f32.mrb[0].mxu0
      %v2186 = vadd.f32 0.0, %v2185
      %v2187 = vpop.f32.mrb[0].mxu0
      %2188 = vmatprep.mubr.bf16.mxu0 0
      %2189 = vmatmul.mubr.bf16.gmra.mrb[0].mxu0 %v2091
      %v2190 = vpop.f32.mrb[0].mxu0
      %v2191 = vadd.f32 0.0, %v2190
      %v2192 = vpop.f32.mrb[0].mxu0
      %v2193 = vpop.f32.mrb[0].mxu0
      %v2194 = vadd.f32 0.0, %v2193
      %v2195 = vpop.f32.mrb[0].mxu0
      %2196 = vmatprep.mubr.bf16.mxu0 0
      %2197 = vmatmul.mubr.bf16.gmra.mrb[0].mxu0 %v2094
      %v2198 = vpop.f32.mrb[0].mxu0
      %v2199 = vadd.f32 0.0, %v2198
      %v2200 = vpop.f32.mrb[0].mxu0
      %v2201 = vpop.f32.mrb[0].mxu0
      %v2202 = vadd.f32 0.0, %v2201
      %v2203 = vpop.f32.mrb[0].mxu0
      %2204 = vmatprep.mubr.bf16.mxu0 0
      %2205 = vmatmul.mubr.bf16.gmra.mrb[0].mxu0 %v2097
      %v2206 = vpop.f32.mrb[0].mxu0
      %v2207 = vadd.f32 0.0, %v2206
      %v2208 = vpop.f32.mrb[0].mxu0
      %v2209 = vpop.f32.mrb[0].mxu0
      %v2210 = vadd.f32 0.0, %v2209
      %v2211 = vpop.f32.mrb[0].mxu0
      %2212 = vmatprep.mubr.bf16.mxu0 0
      %2213 = vmatmul.mubr.bf16.gmra.mrb[0].mxu0 %v2100
      %v2214 = vpop.f32.mrb[0].mxu0
      %v2215 = vadd.f32 0.0, %v2214
      %v2216 = vpop.f32.mrb[0].mxu0
      %v2217 = vpop.f32.mrb[0].mxu0
      %v2218 = vadd.f32 0.0, %v2217
      %v2219 = vpop.f32.mrb[0].mxu0
      %2220 = vmatprep.mubr.bf16.mxu0 0
      %2221 = vmatmul.mubr.bf16.gmra.mrb[0].mxu0 %v2103
      %v2222 = vpop.f32.mrb[0].mxu0
      %v2223 = vadd.f32 0.0, %v2222
      %v2224 = vpop.f32.mrb[0].mxu0
      %v2225 = vpop.f32.mrb[0].mxu0
      %v2226 = vadd.f32 0.0, %v2225
      %v2227 = vpop.f32.mrb[0].mxu0
      %2228 = vmatprep.mubr.bf16.mxu0 0
      %2229 = vmatmul.mubr.bf16.gmra.mrb[0].mxu0 %v2106
      %v2230 = vpop.f32.mrb[0].mxu0
      %v2231 = vadd.f32 0.0, %v2230
      %v2232 = vpop.f32.mrb[0].mxu0
      %v2233 = vpop.f32.mrb[0].mxu0
      %v2234 = vadd.f32 0.0, %v2233
      %v2235 = vpop.f32.mrb[0].mxu0
      %2236 = vmatprep.mubr.bf16.mxu0 0
      %2237 = vmatmul.mubr.bf16.gmra.mrb[0].mxu0 %v2109
      %v2238 = vpop.f32.mrb[0].mxu0
      %v2239 = vadd.f32 0.0, %v2238
      %v2240 = vpop.f32.mrb[0].mxu0
      %v2241 = vpop.f32.mrb[0].mxu0
      %v2242 = vadd.f32 0.0, %v2241
      %v2243 = vpop.f32.mrb[0].mxu0
      %2244 = vmatprep.mubr.bf16.mxu0 0
      %2245 = vmatmul.mubr.bf16.gmra.mrb[0].mxu0 %v2112
      %v2246 = vpop.f32.mrb[0].mxu0
      %v2247 = vadd.f32 0.0, %v2246
      %v2248 = vpop.f32.mrb[0].mxu0
      %v2249 = vpop.f32.mrb[0].mxu0
      %v2250 = vadd.f32 0.0, %v2249
      %v2251 = vpop.f32.mrb[0].mxu0
      %2252 = vmatprep.mubr.bf16.mxu0 0
      %2253 = vmatmul.mubr.bf16.gmra.mrb[0].mxu0 %v2115
      %v2254 = vpop.f32.mrb[0].mxu0
      %v2255 = vadd.f32 0.0, %v2254
      %v2256 = vpop.f32.mrb[0].mxu0
      %v2257 = vpop.f32.mrb[0].mxu0
      %v2258 = vadd.f32 0.0, %v2257
      %v2259 = vpop.f32.mrb[0].mxu0
      %2260 = vmatprep.mubr.bf16.mxu0 0
      %2261 = vmatmul.mubr.bf16.gmra.mrb[0].mxu0 %v2118
      %v2262 = vpop.f32.mrb[0].mxu0
      %v2263 = vadd.f32 0.0, %v2262
      %v2264 = vpop.f32.mrb[0].mxu0
      %v2265 = vpop.f32.mrb[0].mxu0
      %v2266 = vadd.f32 0.0, %v2265
      %v2267 = vpop.f32.mrb[0].mxu0
      %2268 = vmatprep.mubr.bf16.mxu0 0
      %2269 = vmatmul.mubr.bf16.gmra.mrb[0].mxu0 %v2121
      %v2270 = vpop.f32.mrb[0].mxu0
      %v2271 = vadd.f32 0.0, %v2270
      %v2272 = vpop.f32.mrb[0].mxu0
      %v2273 = vpop.f32.mrb[0].mxu0
      %v2274 = vadd.f32 0.0, %v2273
      %v2275 = vpop.f32.mrb[0].mxu0
      %2276 = vmatprep.mubr.bf16.mxu0 0
      %2277 = vmatmul.mubr.bf16.gmra.mrb[0].mxu0 %v2124
      %v2278 = vpop.f32.mrb[0].mxu0
      %v2279 = vadd.f32 0.0, %v2278
      %v2280 = vpop.f32.mrb[0].mxu0
      %v2281 = vpop.f32.mrb[0].mxu0
      %v2282 = vadd.f32 0.0, %v2281
      %v2283 = vpop.f32.mrb[0].mxu0
      %2284 = vmatprep.mubr.bf16.mxu0 0
      %2285 = vmatmul.mubr.bf16.gmra.mrb[0].mxu0 %v2127
      %v2286 = vpop.f32.mrb[0].mxu0
      %v2287 = vadd.f32 0.0, %v2286
      %v2288 = vpop.f32.mrb[0].mxu0
      %v2289 = vpop.f32.mrb[0].mxu0
      %v2290 = vadd.f32 0.0, %v2289
      %v2291 = vpop.f32.mrb[0].mxu0
      %2292 = vdwg.mxu0
      %v2293 = vadd.f32 %v1791, %v2167
      %v2294 = vadd.f32 %v1792, %v2170
      %v2295 = vadd.f32 %v1793, %v2175
      %v2296 = vadd.f32 %v1794, %v2178
      %v2297 = vadd.f32 %v1795, %v2183
      %v2298 = vadd.f32 %v1796, %v2186
      %v2299 = vadd.f32 %v1797, %v2191
      %v2300 = vadd.f32 %v1798, %v2194
      %v2301 = vadd.f32 %v1799, %v2199
      %v2302 = vadd.f32 %v1800, %v2202
      %v2303 = vadd.f32 %v1801, %v2207
      %v2304 = vadd.f32 %v1802, %v2210
      %v2305 = vadd.f32 %v1803, %v2215
      %v2306 = vadd.f32 %v1804, %v2218
      %v2307 = vadd.f32 %v1805, %v2223
      %v2308 = vadd.f32 %v1806, %v2226
      %v2309 = vadd.f32 %v1807, %v2231
      %v2310 = vadd.f32 %v1808, %v2234
      %v2311 = vadd.f32 %v1809, %v2239
      %v2312 = vadd.f32 %v1810, %v2242
      %v2313 = vadd.f32 %v1811, %v2247
      %v2314 = vadd.f32 %v1812, %v2250
      %v2315 = vadd.f32 %v1813, %v2255
      %v2316 = vadd.f32 %v1814, %v2258
      %v2317 = vadd.f32 %v1815, %v2263
      %v2318 = vadd.f32 %v1816, %v2266
      %v2319 = vadd.f32 %v1817, %v2271
      %v2320 = vadd.f32 %v1818, %v2274
      %v2321 = vadd.f32 %v1819, %v2279
      %v2322 = vadd.f32 %v1820, %v2282
      %v2323 = vadd.f32 %v1821, %v2287
      %v2324 = vadd.f32 %v1822, %v2290
      %v2325 = vld [vmem:[%s1464] sm:$0xc]
      %v2326 = vld [vmem:[%s1464 + $0x8] sm:$0x3]
      %v2327 = vld [vmem:[%s1464 + $0xc] sm:$0xc]
      %v2328 = vld [vmem:[%s1464 + $0x14] sm:$0x3]
      %v2329 = vld [vmem:[%s1464 + $0x18] sm:$0xc]
      %v2330 = vld [vmem:[%s1464 + $0x20] sm:$0x3]
      %v2331 = vld [vmem:[%s1464 + $0x24] sm:$0xc]
      %v2332 = vld [vmem:[%s1464 + $0x2c] sm:$0x3]
      %v2333 = vld [vmem:[%s1464 + $0x30] sm:$0xc]
      %v2334 = vld [vmem:[%s1464 + $0x38] sm:$0x3]
      %v2335 = vld [vmem:[%s1464 + $0x3c] sm:$0xc]
      %v2336 = vld [vmem:[%s1464 + $0x44] sm:$0x3]
      %v2337 = vld [vmem:[%s1464 + $0x48] sm:$0xc]
      %v2338 = vld [vmem:[%s1464 + $0x50] sm:$0x3]
      %v2339 = vld [vmem:[%s1464 + $0x54] sm:$0xc]
      %v2340 = vld [vmem:[%s1464 + $0x5c] sm:$0x3]
      %v2341 = vld [vmem:[%s1464 + $0x60] sm:$0xc]
      %v2342 = vld [vmem:[%s1464 + $0x68] sm:$0x3]
      %v2343 = vld [vmem:[%s1464 + $0x6c] sm:$0xc]
      %v2344 = vld [vmem:[%s1464 + $0x74] sm:$0x3]
      %v2345 = vld [vmem:[%s1464 + $0x78] sm:$0xc]
      %v2346 = vld [vmem:[%s1464 + $0x80] sm:$0x3]
      %v2347 = vld [vmem:[%s1464 + $0x84] sm:$0xc]
      %v2348 = vld [vmem:[%s1464 + $0x8c] sm:$0x3]
      %v2349 = vld [vmem:[%s1464 + $0x90] sm:$0xc]
      %v2350 = vld [vmem:[%s1464 + $0x98] sm:$0x3]
      %v2351 = vld [vmem:[%s1464 + $0x9c] sm:$0xc]
      %v2352 = vld [vmem:[%s1464 + $0xa4] sm:$0x3]
      %v2353 = vld [vmem:[%s1464 + $0xa8] sm:$0xc]
      %v2354 = vld [vmem:[%s1464 + $0xb0] sm:$0x3]
      %v2355 = vld [vmem:[%s1464 + $0xb4] sm:$0xc]
      %v2356 = vld [vmem:[%s1464 + $0xbc] sm:$0x3]
      %v2389 = vrot.slane %v2325, 6
      %v2390 = vrot.slane %v2389, 4
      %v2391 = vrot.slane %v1824, 6
      %v2392 = vsel %vm1057, %v2390, %v2391
      %v2393 = vrot.slane %v2391, 4
      %v2394 = vrot.slane %v2326, 6
      %v2395 = vsel %vm1057, %v2393, %v2394
      %v2396 = vrot.slane %v2327, 6
      %v2397 = vrot.slane %v2396, 4
      %v2398 = vrot.slane %v1827, 6
      %v2399 = vsel %vm1057, %v2397, %v2398
      %v2400 = vrot.slane %v2398, 4
      %v2401 = vrot.slane %v2328, 6
      %v2402 = vsel %vm1057, %v2400, %v2401
      %v2403 = vrot.slane %v2329, 6
      %v2404 = vrot.slane %v2403, 4
      %v2405 = vrot.slane %v1830, 6
      %v2406 = vsel %vm1057, %v2404, %v2405
      %v2407 = vrot.slane %v2405, 4
      %v2408 = vrot.slane %v2330, 6
      %v2409 = vsel %vm1057, %v2407, %v2408
      %v2410 = vrot.slane %v2331, 6
      %v2411 = vrot.slane %v2410, 4
      %v2412 = vrot.slane %v1833, 6
      %v2413 = vsel %vm1057, %v2411, %v2412
      %v2414 = vrot.slane %v2412, 4
      %v2415 = vrot.slane %v2332, 6
      %v2416 = vsel %vm1057, %v2414, %v2415
      %v2417 = vrot.slane %v2333, 6
      %v2418 = vrot.slane %v2417, 4
      %v2419 = vrot.slane %v1836, 6
      %v2420 = vsel %vm1057, %v2418, %v2419
      %v2421 = vrot.slane %v2419, 4
      %v2422 = vrot.slane %v2334, 6
      %v2423 = vsel %vm1057, %v2421, %v2422
      %v2424 = vrot.slane %v2335, 6
      %v2425 = vrot.slane %v2424, 4
      %v2426 = vrot.slane %v1839, 6
      %v2427 = vsel %vm1057, %v2425, %v2426
      %v2428 = vrot.slane %v2426, 4
      %v2429 = vrot.slane %v2336, 6
      %v2430 = vsel %vm1057, %v2428, %v2429
      %v2431 = vrot.slane %v2337, 6
      %v2432 = vrot.slane %v2431, 4
      %v2433 = vrot.slane %v1842, 6
      %v2434 = vsel %vm1057, %v2432, %v2433
      %v2435 = vrot.slane %v2433, 4
      %v2436 = vrot.slane %v2338, 6
      %v2437 = vsel %vm1057, %v2435, %v2436
      %v2438 = vrot.slane %v2339, 6
      %v2439 = vrot.slane %v2438, 4
      %v2440 = vrot.slane %v1845, 6
      %v2441 = vsel %vm1057, %v2439, %v2440
      %v2442 = vrot.slane %v2440, 4
      %v2443 = vrot.slane %v2340, 6
      %v2444 = vsel %vm1057, %v2442, %v2443
      %v2445 = vrot.slane %v2341, 6
      %v2446 = vrot.slane %v2445, 4
      %v2447 = vrot.slane %v1848, 6
      %v2448 = vsel %vm1057, %v2446, %v2447
      %v2449 = vrot.slane %v2447, 4
      %v2450 = vrot.slane %v2342, 6
      %v2451 = vsel %vm1057, %v2449, %v2450
      %v2452 = vrot.slane %v2343, 6
      %v2453 = vrot.slane %v2452, 4
      %v2454 = vrot.slane %v1851, 6
      %v2455 = vsel %vm1057, %v2453, %v2454
      %v2456 = vrot.slane %v2454, 4
      %v2457 = vrot.slane %v2344, 6
      %v2458 = vsel %vm1057, %v2456, %v2457
      %v2459 = vrot.slane %v2345, 6
      %v2460 = vrot.slane %v2459, 4
      %v2461 = vrot.slane %v1854, 6
      %v2462 = vsel %vm1057, %v2460, %v2461
      %v2463 = vrot.slane %v2461, 4
      %v2464 = vrot.slane %v2346, 6
      %v2465 = vsel %vm1057, %v2463, %v2464
      %v2466 = vrot.slane %v2347, 6
      %v2467 = vrot.slane %v2466, 4
      %v2468 = vrot.slane %v1857, 6
      %v2469 = vsel %vm1057, %v2467, %v2468
      %v2470 = vrot.slane %v2468, 4
      %v2471 = vrot.slane %v2348, 6
      %v2472 = vsel %vm1057, %v2470, %v2471
      %v2473 = vrot.slane %v2349, 6
      %v2474 = vrot.slane %v2473, 4
      %v2475 = vrot.slane %v1860, 6
      %v2476 = vsel %vm1057, %v2474, %v2475
      %v2477 = vrot.slane %v2475, 4
      %v2478 = vrot.slane %v2350, 6
      %v2479 = vsel %vm1057, %v2477, %v2478
      %v2480 = vrot.slane %v2351, 6
      %v2481 = vrot.slane %v2480, 4
      %v2482 = vrot.slane %v1863, 6
      %v2483 = vsel %vm1057, %v2481, %v2482
      %v2484 = vrot.slane %v2482, 4
      %v2485 = vrot.slane %v2352, 6
      %v2486 = vsel %vm1057, %v2484, %v2485
      %v2487 = vrot.slane %v2353, 6
      %v2488 = vrot.slane %v2487, 4
      %v2489 = vrot.slane %v1866, 6
      %v2490 = vsel %vm1057, %v2488, %v2489
      %v2491 = vrot.slane %v2489, 4
      %v2492 = vrot.slane %v2354, 6
      %v2493 = vsel %vm1057, %v2491, %v2492
      %v2494 = vrot.slane %v2355, 6
      %v2495 = vrot.slane %v2494, 4
      %v2496 = vrot.slane %v1869, 6
      %v2497 = vsel %vm1057, %v2495, %v2496
      %v2498 = vrot.slane %v2496, 4
      %v2499 = vrot.slane %v2356, 6
      %v2500 = vsel %vm1057, %v2498, %v2499
      %s2501 = scalar_lea.vmem %s210, 10
      %v2502 = vld [vmem:[%s2501] sm:$0x3]
      %v2503 = vunpack.c.l.b16 %v2392
      %v2504 = vunpack.c.l.b16 %v2395
      %v2505 = vunpack.c.l.b16 %v2399
      %v2506 = vunpack.c.l.b16 %v2402
      %v2507 = vunpack.c.l.b16 %v2406
      %v2508 = vunpack.c.l.b16 %v2409
      %v2509 = vunpack.c.l.b16 %v2413
      %v2510 = vunpack.c.l.b16 %v2416
      %v2511 = vunpack.c.l.b16 %v2420
      %v2512 = vunpack.c.l.b16 %v2423
      %v2513 = vunpack.c.l.b16 %v2427
      %v2514 = vunpack.c.l.b16 %v2430
      %v2515 = vunpack.c.l.b16 %v2434
      %v2516 = vunpack.c.l.b16 %v2437
      %v2517 = vunpack.c.l.b16 %v2441
      %v2518 = vunpack.c.l.b16 %v2444
      %v2519 = vunpack.c.l.b16 %v2448
      %v2520 = vunpack.c.l.b16 %v2451
      %v2521 = vunpack.c.l.b16 %v2455
      %v2522 = vunpack.c.l.b16 %v2458
      %v2523 = vunpack.c.l.b16 %v2462
      %v2524 = vunpack.c.l.b16 %v2465
      %v2525 = vunpack.c.l.b16 %v2469
      %v2526 = vunpack.c.l.b16 %v2472
      %v2527 = vunpack.c.l.b16 %v2476
      %v2528 = vunpack.c.l.b16 %v2479
      %v2529 = vunpack.c.l.b16 %v2483
      %v2530 = vunpack.c.l.b16 %v2486
      %v2531 = vunpack.c.l.b16 %v2490
      %v2532 = vunpack.c.l.b16 %v2493
      %v2533 = vunpack.c.l.b16 %v2497
      %v2534 = vunpack.c.l.b16 %v2500
      %v2535 = vpack.c.b16 %v2504, %v2503
      %v2536 = vpack.c.b16 %v2506, %v2505
      %v2537 = vpack.c.b16 %v2508, %v2507
      %v2538 = vpack.c.b16 %v2510, %v2509
      %v2539 = vpack.c.b16 %v2512, %v2511
      %v2540 = vpack.c.b16 %v2514, %v2513
      %v2541 = vpack.c.b16 %v2516, %v2515
      %v2542 = vpack.c.b16 %v2518, %v2517
      %v2543 = vpack.c.b16 %v2520, %v2519
      %v2544 = vpack.c.b16 %v2522, %v2521
      %v2545 = vpack.c.b16 %v2524, %v2523
      %v2546 = vpack.c.b16 %v2526, %v2525
      %v2547 = vpack.c.b16 %v2528, %v2527
      %v2548 = vpack.c.b16 %v2530, %v2529
      %v2549 = vpack.c.b16 %v2532, %v2531
      %v2550 = vpack.c.b16 %v2534, %v2533
      %v2552 = vsel %vm501, %v2535, 0
      %v2555 = vsel %vm501, %v2536, 0
      %v2558 = vsel %vm501, %v2537, 0
      %v2561 = vsel %vm501, %v2538, 0
      %v2564 = vsel %vm501, %v2539, 0
      %v2567 = vsel %vm501, %v2540, 0
      %v2570 = vsel %vm501, %v2541, 0
      %v2573 = vsel %vm501, %v2542, 0
      %v2576 = vsel %vm501, %v2543, 0
      %v2579 = vsel %vm501, %v2544, 0
      %v2582 = vsel %vm501, %v2545, 0
      %v2585 = vsel %vm501, %v2546, 0
      %v2588 = vsel %vm501, %v2547, 0
      %v2591 = vsel %vm501, %v2548, 0
      %v2594 = vsel %vm501, %v2549, 0
      %v2597 = vsel %vm501, %v2550, 0
      %v2600 = vsel %vm550, %v2502, 0
      %2602 = vmatprep.subr.bf16.mxu0 0
      %2603 = vmatpush1.bf16.msra.mxu0 %v2600
      %2604 = vmatprep.subr.bf16.mxu0 0
      %2605 = vmatpush1.bf16.msra.mxu0 0
      %2606 = vmatprep.subr.bf16.mxu0 0
      %2607 = vmatpush1.bf16.msra.mxu0 0
      %2608 = vmatprep.subr.bf16.mxu0 0
      %2609 = vmatpush1.bf16.msra.mxu0 0
      %2610 = vmatprep.subr.bf16.mxu0 0
      %2611 = vmatpush1.bf16.msra.mxu0 0
      %2612 = vmatprep.subr.bf16.mxu0 0
      %2613 = vmatpush1.bf16.msra.mxu0 0
      %2614 = vmatprep.subr.bf16.mxu0 0
      %2615 = vmatpush1.bf16.msra.mxu0 0
      %2616 = vmatprep.subr.bf16.mxu0 0
      %2617 = vmatpush1.bf16.msra.mxu0 0
      %2618 = vmatprep.subr.bf16.mxu0 0
      %2619 = vmatpush1.bf16.msra.mxu0 0
      %2620 = vmatprep.subr.bf16.mxu0 0
      %2621 = vmatpush1.bf16.msra.mxu0 0
      %2622 = vmatprep.subr.bf16.mxu0 0
      %2623 = vmatpush1.bf16.msra.mxu0 0
      %2624 = vmatprep.subr.bf16.mxu0 0
      %2625 = vmatpush1.bf16.msra.mxu0 0
      %2626 = vmatprep.subr.bf16.mxu0 0
      %2627 = vmatpush1.bf16.msra.mxu0 0
      %2628 = vmatprep.subr.bf16.mxu0 0
      %2629 = vmatpush1.bf16.msra.mxu0 0
      %2630 = vmatprep.subr.bf16.mxu0 0
      %2631 = vmatpush1.bf16.msra.mxu0 0
      %2632 = vmatprep.subr.bf16.mxu0 0
      %2633 = vmatpush1.bf16.msra.mxu0 0
      %2634 = vmatprep.mubr.bf16.mxu0 0
      %2635 = vmatmul.mubr.bf16.gmra.mrb[0].mxu0 %v2552
      %v2636 = vpop.f32.mrb[0].mxu0
      %v2637 = vadd.f32 0.0, %v2636
      %v2638 = vpop.f32.mrb[0].mxu0
      %v2639 = vpop.f32.mrb[0].mxu0
      %v2640 = vadd.f32 0.0, %v2639
      %v2641 = vpop.f32.mrb[0].mxu0
      %2642 = vmatprep.mubr.bf16.mxu0 0
      %2643 = vmatmul.mubr.bf16.gmra.mrb[0].mxu0 %v2555
      %v2644 = vpop.f32.mrb[0].mxu0
      %v2645 = vadd.f32 0.0, %v2644
      %v2646 = vpop.f32.mrb[0].mxu0
      %v2647 = vpop.f32.mrb[0].mxu0
      %v2648 = vadd.f32 0.0, %v2647
      %v2649 = vpop.f32.mrb[0].mxu0
      %2650 = vmatprep.mubr.bf16.mxu0 0
      %2651 = vmatmul.mubr.bf16.gmra.mrb[0].mxu0 %v2558
      %v2652 = vpop.f32.mrb[0].mxu0
      %v2653 = vadd.f32 0.0, %v2652
      %v2654 = vpop.f32.mrb[0].mxu0
      %v2655 = vpop.f32.mrb[0].mxu0
      %v2656 = vadd.f32 0.0, %v2655
      %v2657 = vpop.f32.mrb[0].mxu0
      %2658 = vmatprep.mubr.bf16.mxu0 0
      %2659 = vmatmul.mubr.bf16.gmra.mrb[0].mxu0 %v2561
      %v2660 = vpop.f32.mrb[0].mxu0
      %v2661 = vadd.f32 0.0, %v2660
      %v2662 = vpop.f32.mrb[0].mxu0
      %v2663 = vpop.f32.mrb[0].mxu0
      %v2664 = vadd.f32 0.0, %v2663
      %v2665 = vpop.f32.mrb[0].mxu0
      %2666 = vmatprep.mubr.bf16.mxu0 0
      %2667 = vmatmul.mubr.bf16.gmra.mrb[0].mxu0 %v2564
      %v2668 = vpop.f32.mrb[0].mxu0
      %v2669 = vadd.f32 0.0, %v2668
      %v2670 = vpop.f32.mrb[0].mxu0
      %v2671 = vpop.f32.mrb[0].mxu0
      %v2672 = vadd.f32 0.0, %v2671
      %v2673 = vpop.f32.mrb[0].mxu0
      %2674 = vmatprep.mubr.bf16.mxu0 0
      %2675 = vmatmul.mubr.bf16.gmra.mrb[0].mxu0 %v2567
      %v2676 = vpop.f32.mrb[0].mxu0
      %v2677 = vadd.f32 0.0, %v2676
      %v2678 = vpop.f32.mrb[0].mxu0
      %v2679 = vpop.f32.mrb[0].mxu0
      %v2680 = vadd.f32 0.0, %v2679
      %v2681 = vpop.f32.mrb[0].mxu0
      %2682 = vmatprep.mubr.bf16.mxu0 0
      %2683 = vmatmul.mubr.bf16.gmra.mrb[0].mxu0 %v2570
      %v2684 = vpop.f32.mrb[0].mxu0
      %v2685 = vadd.f32 0.0, %v2684
      %v2686 = vpop.f32.mrb[0].mxu0
      %v2687 = vpop.f32.mrb[0].mxu0
      %v2688 = vadd.f32 0.0, %v2687
      %v2689 = vpop.f32.mrb[0].mxu0
      %2690 = vmatprep.mubr.bf16.mxu0 0
      %2691 = vmatmul.mubr.bf16.gmra.mrb[0].mxu0 %v2573
      %v2692 = vpop.f32.mrb[0].mxu0
      %v2693 = vadd.f32 0.0, %v2692
      %v2694 = vpop.f32.mrb[0].mxu0
      %v2695 = vpop.f32.mrb[0].mxu0
      %v2696 = vadd.f32 0.0, %v2695
      %v2697 = vpop.f32.mrb[0].mxu0
      %2698 = vmatprep.mubr.bf16.mxu0 0
      %2699 = vmatmul.mubr.bf16.gmra.mrb[0].mxu0 %v2576
      %v2700 = vpop.f32.mrb[0].mxu0
      %v2701 = vadd.f32 0.0, %v2700
      %v2702 = vpop.f32.mrb[0].mxu0
      %v2703 = vpop.f32.mrb[0].mxu0
      %v2704 = vadd.f32 0.0, %v2703
      %v2705 = vpop.f32.mrb[0].mxu0
      %2706 = vmatprep.mubr.bf16.mxu0 0
      %2707 = vmatmul.mubr.bf16.gmra.mrb[0].mxu0 %v2579
      %v2708 = vpop.f32.mrb[0].mxu0
      %v2709 = vadd.f32 0.0, %v2708
      %v2710 = vpop.f32.mrb[0].mxu0
      %v2711 = vpop.f32.mrb[0].mxu0
      %v2712 = vadd.f32 0.0, %v2711
      %v2713 = vpop.f32.mrb[0].mxu0
      %2714 = vmatprep.mubr.bf16.mxu0 0
      %2715 = vmatmul.mubr.bf16.gmra.mrb[0].mxu0 %v2582
      %v2716 = vpop.f32.mrb[0].mxu0
      %v2717 = vadd.f32 0.0, %v2716
      %v2718 = vpop.f32.mrb[0].mxu0
      %v2719 = vpop.f32.mrb[0].mxu0
      %v2720 = vadd.f32 0.0, %v2719
      %v2721 = vpop.f32.mrb[0].mxu0
      %2722 = vmatprep.mubr.bf16.mxu0 0
      %2723 = vmatmul.mubr.bf16.gmra.mrb[0].mxu0 %v2585
      %v2724 = vpop.f32.mrb[0].mxu0
      %v2725 = vadd.f32 0.0, %v2724
      %v2726 = vpop.f32.mrb[0].mxu0
      %v2727 = vpop.f32.mrb[0].mxu0
      %v2728 = vadd.f32 0.0, %v2727
      %v2729 = vpop.f32.mrb[0].mxu0
      %2730 = vmatprep.mubr.bf16.mxu0 0
      %2731 = vmatmul.mubr.bf16.gmra.mrb[0].mxu0 %v2588
      %v2732 = vpop.f32.mrb[0].mxu0
      %v2733 = vadd.f32 0.0, %v2732
      %v2734 = vpop.f32.mrb[0].mxu0
      %v2735 = vpop.f32.mrb[0].mxu0
      %v2736 = vadd.f32 0.0, %v2735
      %v2737 = vpop.f32.mrb[0].mxu0
      %2738 = vmatprep.mubr.bf16.mxu0 0
      %2739 = vmatmul.mubr.bf16.gmra.mrb[0].mxu0 %v2591
      %v2740 = vpop.f32.mrb[0].mxu0
      %v2741 = vadd.f32 0.0, %v2740
      %v2742 = vpop.f32.mrb[0].mxu0
      %v2743 = vpop.f32.mrb[0].mxu0
      %v2744 = vadd.f32 0.0, %v2743
      %v2745 = vpop.f32.mrb[0].mxu0
      %2746 = vmatprep.mubr.bf16.mxu0 0
      %2747 = vmatmul.mubr.bf16.gmra.mrb[0].mxu0 %v2594
      %v2748 = vpop.f32.mrb[0].mxu0
      %v2749 = vadd.f32 0.0, %v2748
      %v2750 = vpop.f32.mrb[0].mxu0
      %v2751 = vpop.f32.mrb[0].mxu0
      %v2752 = vadd.f32 0.0, %v2751
      %v2753 = vpop.f32.mrb[0].mxu0
      %2754 = vmatprep.mubr.bf16.mxu0 0
      %2755 = vmatmul.mubr.bf16.gmra.mrb[0].mxu0 %v2597
      %v2756 = vpop.f32.mrb[0].mxu0
      %v2757 = vadd.f32 0.0, %v2756
      %v2758 = vpop.f32.mrb[0].mxu0
      %v2759 = vpop.f32.mrb[0].mxu0
      %v2760 = vadd.f32 0.0, %v2759
      %v2761 = vpop.f32.mrb[0].mxu0
      %2762 = vdwg.mxu0
      %v2763 = vadd.f32 %v2293, %v2637
      %v2764 = vadd.f32 %v2294, %v2640
      %v2765 = vadd.f32 %v2295, %v2645
      %v2766 = vadd.f32 %v2296, %v2648
      %v2767 = vadd.f32 %v2297, %v2653
      %v2768 = vadd.f32 %v2298, %v2656
      %v2769 = vadd.f32 %v2299, %v2661
      %v2770 = vadd.f32 %v2300, %v2664
      %v2771 = vadd.f32 %v2301, %v2669
      %v2772 = vadd.f32 %v2302, %v2672
      %v2773 = vadd.f32 %v2303, %v2677
      %v2774 = vadd.f32 %v2304, %v2680
      %v2775 = vadd.f32 %v2305, %v2685
      %v2776 = vadd.f32 %v2306, %v2688
      %v2777 = vadd.f32 %v2307, %v2693
      %v2778 = vadd.f32 %v2308, %v2696
      %v2779 = vadd.f32 %v2309, %v2701
      %v2780 = vadd.f32 %v2310, %v2704
      %v2781 = vadd.f32 %v2311, %v2709
      %v2782 = vadd.f32 %v2312, %v2712
      %v2783 = vadd.f32 %v2313, %v2717
      %v2784 = vadd.f32 %v2314, %v2720
      %v2785 = vadd.f32 %v2315, %v2725
      %v2786 = vadd.f32 %v2316, %v2728
      %v2787 = vadd.f32 %v2317, %v2733
      %v2788 = vadd.f32 %v2318, %v2736
      %v2789 = vadd.f32 %v2319, %v2741
      %v2790 = vadd.f32 %v2320, %v2744
      %v2791 = vadd.f32 %v2321, %v2749
      %v2792 = vadd.f32 %v2322, %v2752
      %v2793 = vadd.f32 %v2323, %v2757
      %v2794 = vadd.f32 %v2324, %v2760
      %s2795 = scalar_lea.vmem %s206, 48
      %v2796 = vld [vmem:[%s2795] sm:$0xf]
      %v2797 = vld [vmem:[%s2795 + $0x4] sm:$0xf]
      %v2798 = vld [vmem:[%s2795 + $0xc] sm:$0xf]
      %v2799 = vld [vmem:[%s2795 + $0x10] sm:$0xf]
      %v2800 = vld [vmem:[%s2795 + $0x18] sm:$0xf]
      %v2801 = vld [vmem:[%s2795 + $0x1c] sm:$0xf]
      %v2802 = vld [vmem:[%s2795 + $0x24] sm:$0xf]
      %v2803 = vld [vmem:[%s2795 + $0x28] sm:$0xf]
      %v2804 = vld [vmem:[%s2795 + $0x30] sm:$0xf]
      %v2805 = vld [vmem:[%s2795 + $0x34] sm:$0xf]
      %v2806 = vld [vmem:[%s2795 + $0x3c] sm:$0xf]
      %v2807 = vld [vmem:[%s2795 + $0x40] sm:$0xf]
      %v2808 = vld [vmem:[%s2795 + $0x48] sm:$0xf]
      %v2809 = vld [vmem:[%s2795 + $0x4c] sm:$0xf]
      %v2810 = vld [vmem:[%s2795 + $0x54] sm:$0xf]
      %v2811 = vld [vmem:[%s2795 + $0x58] sm:$0xf]
      %v2812 = vld [vmem:[%s2795 + $0x60] sm:$0xf]
      %v2813 = vld [vmem:[%s2795 + $0x64] sm:$0xf]
      %v2814 = vld [vmem:[%s2795 + $0x6c] sm:$0xf]
      %v2815 = vld [vmem:[%s2795 + $0x70] sm:$0xf]
      %v2816 = vld [vmem:[%s2795 + $0x78] sm:$0xf]
      %v2817 = vld [vmem:[%s2795 + $0x7c] sm:$0xf]
      %v2818 = vld [vmem:[%s2795 + $0x84] sm:$0xf]
      %v2819 = vld [vmem:[%s2795 + $0x88] sm:$0xf]
      %v2820 = vld [vmem:[%s2795 + $0x90] sm:$0xf]
      %v2821 = vld [vmem:[%s2795 + $0x94] sm:$0xf]
      %v2822 = vld [vmem:[%s2795 + $0x9c] sm:$0xf]
      %v2823 = vld [vmem:[%s2795 + $0xa0] sm:$0xf]
      %v2824 = vld [vmem:[%s2795 + $0xa8] sm:$0xf]
      %v2825 = vld [vmem:[%s2795 + $0xac] sm:$0xf]
      %v2826 = vld [vmem:[%s2795 + $0xb4] sm:$0xf]
      %v2827 = vld [vmem:[%s2795 + $0xb8] sm:$0xf]
      %s2828 = scalar_lea.vmem %s210, 12
      %v2829 = vld [vmem:[%s2828] sm:$0x3]
      %v2862 = vunpack.c.l.b16 %v2796
      %v2863 = vunpack.c.l.b16 %v2797
      %v2864 = vunpack.c.l.b16 %v2798
      %v2865 = vunpack.c.l.b16 %v2799
      %v2866 = vunpack.c.l.b16 %v2800
      %v2867 = vunpack.c.l.b16 %v2801
      %v2868 = vunpack.c.l.b16 %v2802
      %v2869 = vunpack.c.l.b16 %v2803
      %v2870 = vunpack.c.l.b16 %v2804
      %v2871 = vunpack.c.l.b16 %v2805
      %v2872 = vunpack.c.l.b16 %v2806
      %v2873 = vunpack.c.l.b16 %v2807
      %v2874 = vunpack.c.l.b16 %v2808
      %v2875 = vunpack.c.l.b16 %v2809
      %v2876 = vunpack.c.l.b16 %v2810
      %v2877 = vunpack.c.l.b16 %v2811
      %v2878 = vunpack.c.l.b16 %v2812
      %v2879 = vunpack.c.l.b16 %v2813
      %v2880 = vunpack.c.l.b16 %v2814
      %v2881 = vunpack.c.l.b16 %v2815
      %v2882 = vunpack.c.l.b16 %v2816
      %v2883 = vunpack.c.l.b16 %v2817
      %v2884 = vunpack.c.l.b16 %v2818
      %v2885 = vunpack.c.l.b16 %v2819
      %v2886 = vunpack.c.l.b16 %v2820
      %v2887 = vunpack.c.l.b16 %v2821
      %v2888 = vunpack.c.l.b16 %v2822
      %v2889 = vunpack.c.l.b16 %v2823
      %v2890 = vunpack.c.l.b16 %v2824
      %v2891 = vunpack.c.l.b16 %v2825
      %v2892 = vunpack.c.l.b16 %v2826
      %v2893 = vunpack.c.l.b16 %v2827
      %v2894 = vpack.c.b16 %v2863, %v2862
      %v2895 = vpack.c.b16 %v2865, %v2864
      %v2896 = vpack.c.b16 %v2867, %v2866
      %v2897 = vpack.c.b16 %v2869, %v2868
      %v2898 = vpack.c.b16 %v2871, %v2870
      %v2899 = vpack.c.b16 %v2873, %v2872
      %v2900 = vpack.c.b16 %v2875, %v2874
      %v2901 = vpack.c.b16 %v2877, %v2876
      %v2902 = vpack.c.b16 %v2879, %v2878
      %v2903 = vpack.c.b16 %v2881, %v2880
      %v2904 = vpack.c.b16 %v2883, %v2882
      %v2905 = vpack.c.b16 %v2885, %v2884
      %v2906 = vpack.c.b16 %v2887, %v2886
      %v2907 = vpack.c.b16 %v2889, %v2888
      %v2908 = vpack.c.b16 %v2891, %v2890
      %v2909 = vpack.c.b16 %v2893, %v2892
      %v2911 = vsel %vm501, %v2894, 0
      %v2914 = vsel %vm501, %v2895, 0
      %v2917 = vsel %vm501, %v2896, 0
      %v2920 = vsel %vm501, %v2897, 0
      %v2923 = vsel %vm501, %v2898, 0
      %v2926 = vsel %vm501, %v2899, 0
      %v2929 = vsel %vm501, %v2900, 0
      %v2932 = vsel %vm501, %v2901, 0
      %v2935 = vsel %vm501, %v2902, 0
      %v2938 = vsel %vm501, %v2903, 0
      %v2941 = vsel %vm501, %v2904, 0
      %v2944 = vsel %vm501, %v2905, 0
      %v2947 = vsel %vm501, %v2906, 0
      %v2950 = vsel %vm501, %v2907, 0
      %v2953 = vsel %vm501, %v2908, 0
      %v2956 = vsel %vm501, %v2909, 0
      %v2959 = vsel %vm550, %v2829, 0
      %2961 = vmatprep.subr.bf16.mxu0 0
      %2962 = vmatpush1.bf16.msra.mxu0 %v2959
      %2963 = vmatprep.subr.bf16.mxu0 0
      %2964 = vmatpush1.bf16.msra.mxu0 0
      %2965 = vmatprep.subr.bf16.mxu0 0
      %2966 = vmatpush1.bf16.msra.mxu0 0
      %2967 = vmatprep.subr.bf16.mxu0 0
      %2968 = vmatpush1.bf16.msra.mxu0 0
      %2969 = vmatprep.subr.bf16.mxu0 0
      %2970 = vmatpush1.bf16.msra.mxu0 0
      %2971 = vmatprep.subr.bf16.mxu0 0
      %2972 = vmatpush1.bf16.msra.mxu0 0
      %2973 = vmatprep.subr.bf16.mxu0 0
      %2974 = vmatpush1.bf16.msra.mxu0 0
      %2975 = vmatprep.subr.bf16.mxu0 0
      %2976 = vmatpush1.bf16.msra.mxu0 0
      %2977 = vmatprep.subr.bf16.mxu0 0
      %2978 = vmatpush1.bf16.msra.mxu0 0
      %2979 = vmatprep.subr.bf16.mxu0 0
      %2980 = vmatpush1.bf16.msra.mxu0 0
      %2981 = vmatprep.subr.bf16.mxu0 0
      %2982 = vmatpush1.bf16.msra.mxu0 0
      %2983 = vmatprep.subr.bf16.mxu0 0
      %2984 = vmatpush1.bf16.msra.mxu0 0
      %2985 = vmatprep.subr.bf16.mxu0 0
      %2986 = vmatpush1.bf16.msra.mxu0 0
      %2987 = vmatprep.subr.bf16.mxu0 0
      %2988 = vmatpush1.bf16.msra.mxu0 0
      %2989 = vmatprep.subr.bf16.mxu0 0
      %2990 = vmatpush1.bf16.msra.mxu0 0
      %2991 = vmatprep.subr.bf16.mxu0 0
      %2992 = vmatpush1.bf16.msra.mxu0 0
      %2993 = vmatprep.mubr.bf16.mxu0 0
      %2994 = vmatmul.mubr.bf16.gmra.mrb[0].mxu0 %v2911
      %v2995 = vpop.f32.mrb[0].mxu0
      %v2996 = vadd.f32 0.0, %v2995
      %v2997 = vpop.f32.mrb[0].mxu0
      %v2998 = vpop.f32.mrb[0].mxu0
      %v2999 = vadd.f32 0.0, %v2998
      %v3000 = vpop.f32.mrb[0].mxu0
      %3001 = vmatprep.mubr.bf16.mxu0 0
      %3002 = vmatmul.mubr.bf16.gmra.mrb[0].mxu0 %v2914
      %v3003 = vpop.f32.mrb[0].mxu0
      %v3004 = vadd.f32 0.0, %v3003
      %v3005 = vpop.f32.mrb[0].mxu0
      %v3006 = vpop.f32.mrb[0].mxu0
      %v3007 = vadd.f32 0.0, %v3006
      %v3008 = vpop.f32.mrb[0].mxu0
      %3009 = vmatprep.mubr.bf16.mxu0 0
      %3010 = vmatmul.mubr.bf16.gmra.mrb[0].mxu0 %v2917
      %v3011 = vpop.f32.mrb[0].mxu0
      %v3012 = vadd.f32 0.0, %v3011
      %v3013 = vpop.f32.mrb[0].mxu0
      %v3014 = vpop.f32.mrb[0].mxu0
      %v3015 = vadd.f32 0.0, %v3014
      %v3016 = vpop.f32.mrb[0].mxu0
      %3017 = vmatprep.mubr.bf16.mxu0 0
      %3018 = vmatmul.mubr.bf16.gmra.mrb[0].mxu0 %v2920
      %v3019 = vpop.f32.mrb[0].mxu0
      %v3020 = vadd.f32 0.0, %v3019
      %v3021 = vpop.f32.mrb[0].mxu0
      %v3022 = vpop.f32.mrb[0].mxu0
      %v3023 = vadd.f32 0.0, %v3022
      %v3024 = vpop.f32.mrb[0].mxu0
      %3025 = vmatprep.mubr.bf16.mxu0 0
      %3026 = vmatmul.mubr.bf16.gmra.mrb[0].mxu0 %v2923
      %v3027 = vpop.f32.mrb[0].mxu0
      %v3028 = vadd.f32 0.0, %v3027
      %v3029 = vpop.f32.mrb[0].mxu0
      %v3030 = vpop.f32.mrb[0].mxu0
      %v3031 = vadd.f32 0.0, %v3030
      %v3032 = vpop.f32.mrb[0].mxu0
      %3033 = vmatprep.mubr.bf16.mxu0 0
      %3034 = vmatmul.mubr.bf16.gmra.mrb[0].mxu0 %v2926
      %v3035 = vpop.f32.mrb[0].mxu0
      %v3036 = vadd.f32 0.0, %v3035
      %v3037 = vpop.f32.mrb[0].mxu0
      %v3038 = vpop.f32.mrb[0].mxu0
      %v3039 = vadd.f32 0.0, %v3038
      %v3040 = vpop.f32.mrb[0].mxu0
      %3041 = vmatprep.mubr.bf16.mxu0 0
      %3042 = vmatmul.mubr.bf16.gmra.mrb[0].mxu0 %v2929
      %v3043 = vpop.f32.mrb[0].mxu0
      %v3044 = vadd.f32 0.0, %v3043
      %v3045 = vpop.f32.mrb[0].mxu0
      %v3046 = vpop.f32.mrb[0].mxu0
      %v3047 = vadd.f32 0.0, %v3046
      %v3048 = vpop.f32.mrb[0].mxu0
      %3049 = vmatprep.mubr.bf16.mxu0 0
      %3050 = vmatmul.mubr.bf16.gmra.mrb[0].mxu0 %v2932
      %v3051 = vpop.f32.mrb[0].mxu0
      %v3052 = vadd.f32 0.0, %v3051
      %v3053 = vpop.f32.mrb[0].mxu0
      %v3054 = vpop.f32.mrb[0].mxu0
      %v3055 = vadd.f32 0.0, %v3054
      %v3056 = vpop.f32.mrb[0].mxu0
      %3057 = vmatprep.mubr.bf16.mxu0 0
      %3058 = vmatmul.mubr.bf16.gmra.mrb[0].mxu0 %v2935
      %v3059 = vpop.f32.mrb[0].mxu0
      %v3060 = vadd.f32 0.0, %v3059
      %v3061 = vpop.f32.mrb[0].mxu0
      %v3062 = vpop.f32.mrb[0].mxu0
      %v3063 = vadd.f32 0.0, %v3062
      %v3064 = vpop.f32.mrb[0].mxu0
      %3065 = vmatprep.mubr.bf16.mxu0 0
      %3066 = vmatmul.mubr.bf16.gmra.mrb[0].mxu0 %v2938
      %v3067 = vpop.f32.mrb[0].mxu0
      %v3068 = vadd.f32 0.0, %v3067
      %v3069 = vpop.f32.mrb[0].mxu0
      %v3070 = vpop.f32.mrb[0].mxu0
      %v3071 = vadd.f32 0.0, %v3070
      %v3072 = vpop.f32.mrb[0].mxu0
      %3073 = vmatprep.mubr.bf16.mxu0 0
      %3074 = vmatmul.mubr.bf16.gmra.mrb[0].mxu0 %v2941
      %v3075 = vpop.f32.mrb[0].mxu0
      %v3076 = vadd.f32 0.0, %v3075
      %v3077 = vpop.f32.mrb[0].mxu0
      %v3078 = vpop.f32.mrb[0].mxu0
      %v3079 = vadd.f32 0.0, %v3078
      %v3080 = vpop.f32.mrb[0].mxu0
      %3081 = vmatprep.mubr.bf16.mxu0 0
      %3082 = vmatmul.mubr.bf16.gmra.mrb[0].mxu0 %v2944
      %v3083 = vpop.f32.mrb[0].mxu0
      %v3084 = vadd.f32 0.0, %v3083
      %v3085 = vpop.f32.mrb[0].mxu0
      %v3086 = vpop.f32.mrb[0].mxu0
      %v3087 = vadd.f32 0.0, %v3086
      %v3088 = vpop.f32.mrb[0].mxu0
      %3089 = vmatprep.mubr.bf16.mxu0 0
      %3090 = vmatmul.mubr.bf16.gmra.mrb[0].mxu0 %v2947
      %v3091 = vpop.f32.mrb[0].mxu0
      %v3092 = vadd.f32 0.0, %v3091
      %v3093 = vpop.f32.mrb[0].mxu0
      %v3094 = vpop.f32.mrb[0].mxu0
      %v3095 = vadd.f32 0.0, %v3094
      %v3096 = vpop.f32.mrb[0].mxu0
      %3097 = vmatprep.mubr.bf16.mxu0 0
      %3098 = vmatmul.mubr.bf16.gmra.mrb[0].mxu0 %v2950
      %v3099 = vpop.f32.mrb[0].mxu0
      %v3100 = vadd.f32 0.0, %v3099
      %v3101 = vpop.f32.mrb[0].mxu0
      %v3102 = vpop.f32.mrb[0].mxu0
      %v3103 = vadd.f32 0.0, %v3102
      %v3104 = vpop.f32.mrb[0].mxu0
      %3105 = vmatprep.mubr.bf16.mxu0 0
      %3106 = vmatmul.mubr.bf16.gmra.mrb[0].mxu0 %v2953
      %v3107 = vpop.f32.mrb[0].mxu0
      %v3108 = vadd.f32 0.0, %v3107
      %v3109 = vpop.f32.mrb[0].mxu0
      %v3110 = vpop.f32.mrb[0].mxu0
      %v3111 = vadd.f32 0.0, %v3110
      %v3112 = vpop.f32.mrb[0].mxu0
      %3113 = vmatprep.mubr.bf16.mxu0 0
      %3114 = vmatmul.mubr.bf16.gmra.mrb[0].mxu0 %v2956
      %v3115 = vpop.f32.mrb[0].mxu0
      %v3116 = vadd.f32 0.0, %v3115
      %v3117 = vpop.f32.mrb[0].mxu0
      %v3118 = vpop.f32.mrb[0].mxu0
      %v3119 = vadd.f32 0.0, %v3118
      %v3120 = vpop.f32.mrb[0].mxu0
      %3121 = vdwg.mxu0
      %v3122 = vadd.f32 %v2763, %v2996
      %v3123 = vadd.f32 %v2764, %v2999
      %v3124 = vadd.f32 %v2765, %v3004
      %v3125 = vadd.f32 %v2766, %v3007
      %v3126 = vadd.f32 %v2767, %v3012
      %v3127 = vadd.f32 %v2768, %v3015
      %v3128 = vadd.f32 %v2769, %v3020
      %v3129 = vadd.f32 %v2770, %v3023
      %v3130 = vadd.f32 %v2771, %v3028
      %v3131 = vadd.f32 %v2772, %v3031
      %v3132 = vadd.f32 %v2773, %v3036
      %v3133 = vadd.f32 %v2774, %v3039
      %v3134 = vadd.f32 %v2775, %v3044
      %v3135 = vadd.f32 %v2776, %v3047
      %v3136 = vadd.f32 %v2777, %v3052
      %v3137 = vadd.f32 %v2778, %v3055
      %v3138 = vadd.f32 %v2779, %v3060
      %v3139 = vadd.f32 %v2780, %v3063
      %v3140 = vadd.f32 %v2781, %v3068
      %v3141 = vadd.f32 %v2782, %v3071
      %v3142 = vadd.f32 %v2783, %v3076
      %v3143 = vadd.f32 %v2784, %v3079
      %v3144 = vadd.f32 %v2785, %v3084
      %v3145 = vadd.f32 %v2786, %v3087
      %v3146 = vadd.f32 %v2787, %v3092
      %v3147 = vadd.f32 %v2788, %v3095
      %v3148 = vadd.f32 %v2789, %v3100
      %v3149 = vadd.f32 %v2790, %v3103
      %v3150 = vadd.f32 %v2791, %v3108
      %v3151 = vadd.f32 %v2792, %v3111
      %v3152 = vadd.f32 %v2793, %v3116
      %v3153 = vadd.f32 %v2794, %v3119
      %v3154 = vld [vmem:[%s2795] sm:$0xe]
      %v3155 = vld [vmem:[%s2795 + $0x4] sm:$0xf]
      %v3156 = vld [vmem:[%s2795 + $0x8] sm:$0x1]
      %v3157 = vld [vmem:[%s2795 + $0xc] sm:$0xe]
      %v3158 = vld [vmem:[%s2795 + $0x10] sm:$0xf]
      %v3159 = vld [vmem:[%s2795 + $0x14] sm:$0x1]
      %v3160 = vld [vmem:[%s2795 + $0x18] sm:$0xe]
      %v3161 = vld [vmem:[%s2795 + $0x1c] sm:$0xf]
      %v3162 = vld [vmem:[%s2795 + $0x20] sm:$0x1]
      %v3163 = vld [vmem:[%s2795 + $0x24] sm:$0xe]
      %v3164 = vld [vmem:[%s2795 + $0x28] sm:$0xf]
      %v3165 = vld [vmem:[%s2795 + $0x2c] sm:$0x1]
      %v3166 = vld [vmem:[%s2795 + $0x30] sm:$0xe]
      %v3167 = vld [vmem:[%s2795 + $0x34] sm:$0xf]
      %v3168 = vld [vmem:[%s2795 + $0x38] sm:$0x1]
      %v3169 = vld [vmem:[%s2795 + $0x3c] sm:$0xe]
      %v3170 = vld [vmem:[%s2795 + $0x40] sm:$0xf]
      %v3171 = vld [vmem:[%s2795 + $0x44] sm:$0x1]
      %v3172 = vld [vmem:[%s2795 + $0x48] sm:$0xe]
      %v3173 = vld [vmem:[%s2795 + $0x4c] sm:$0xf]
      %v3174 = vld [vmem:[%s2795 + $0x50] sm:$0x1]
      %v3175 = vld [vmem:[%s2795 + $0x54] sm:$0xe]
      %v3176 = vld [vmem:[%s2795 + $0x58] sm:$0xf]
      %v3177 = vld [vmem:[%s2795 + $0x5c] sm:$0x1]
      %v3178 = vld [vmem:[%s2795 + $0x60] sm:$0xe]
      %v3179 = vld [vmem:[%s2795 + $0x64] sm:$0xf]
      %v3180 = vld [vmem:[%s2795 + $0x68] sm:$0x1]
      %v3181 = vld [vmem:[%s2795 + $0x6c] sm:$0xe]
      %v3182 = vld [vmem:[%s2795 + $0x70] sm:$0xf]
      %v3183 = vld [vmem:[%s2795 + $0x74] sm:$0x1]
      %v3184 = vld [vmem:[%s2795 + $0x78] sm:$0xe]
      %v3185 = vld [vmem:[%s2795 + $0x7c] sm:$0xf]
      %v3186 = vld [vmem:[%s2795 + $0x80] sm:$0x1]
      %v3187 = vld [vmem:[%s2795 + $0x84] sm:$0xe]
      %v3188 = vld [vmem:[%s2795 + $0x88] sm:$0xf]
      %v3189 = vld [vmem:[%s2795 + $0x8c] sm:$0x1]
      %v3190 = vld [vmem:[%s2795 + $0x90] sm:$0xe]
      %v3191 = vld [vmem:[%s2795 + $0x94] sm:$0xf]
      %v3192 = vld [vmem:[%s2795 + $0x98] sm:$0x1]
      %v3193 = vld [vmem:[%s2795 + $0x9c] sm:$0xe]
      %v3194 = vld [vmem:[%s2795 + $0xa0] sm:$0xf]
      %v3195 = vld [vmem:[%s2795 + $0xa4] sm:$0x1]
      %v3196 = vld [vmem:[%s2795 + $0xa8] sm:$0xe]
      %v3197 = vld [vmem:[%s2795 + $0xac] sm:$0xf]
      %v3198 = vld [vmem:[%s2795 + $0xb0] sm:$0x1]
      %v3199 = vld [vmem:[%s2795 + $0xb4] sm:$0xe]
      %v3200 = vld [vmem:[%s2795 + $0xb8] sm:$0xf]
      %v3201 = vld [vmem:[%s2795 + $0xbc] sm:$0x1]
      %v3250 = vrot.slane %v3154, 5
      %v3251 = vrot.slane %v3250, 4
      %v3252 = vrot.slane %v3155, 5
      %v3253 = vsel %vm338, %v3251, %v3252
      %v3254 = vrot.slane %v3252, 4
      %v3255 = vrot.slane %v3156, 5
      %v3256 = vsel %vm338, %v3254, %v3255
      %v3257 = vrot.slane %v3157, 5
      %v3258 = vrot.slane %v3257, 4
      %v3259 = vrot.slane %v3158, 5
      %v3260 = vsel %vm338, %v3258, %v3259
      %v3261 = vrot.slane %v3259, 4
      %v3262 = vrot.slane %v3159, 5
      %v3263 = vsel %vm338, %v3261, %v3262
      %v3264 = vrot.slane %v3160, 5
      %v3265 = vrot.slane %v3264, 4
      %v3266 = vrot.slane %v3161, 5
      %v3267 = vsel %vm338, %v3265, %v3266
      %v3268 = vrot.slane %v3266, 4
      %v3269 = vrot.slane %v3162, 5
      %v3270 = vsel %vm338, %v3268, %v3269
      %v3271 = vrot.slane %v3163, 5
      %v3272 = vrot.slane %v3271, 4
      %v3273 = vrot.slane %v3164, 5
      %v3274 = vsel %vm338, %v3272, %v3273
      %v3275 = vrot.slane %v3273, 4
      %v3276 = vrot.slane %v3165, 5
      %v3277 = vsel %vm338, %v3275, %v3276
      %v3278 = vrot.slane %v3166, 5
      %v3279 = vrot.slane %v3278, 4
      %v3280 = vrot.slane %v3167, 5
      %v3281 = vsel %vm338, %v3279, %v3280
      %v3282 = vrot.slane %v3280, 4
      %v3283 = vrot.slane %v3168, 5
      %v3284 = vsel %vm338, %v3282, %v3283
      %v3285 = vrot.slane %v3169, 5
      %v3286 = vrot.slane %v3285, 4
      %v3287 = vrot.slane %v3170, 5
      %v3288 = vsel %vm338, %v3286, %v3287
      %v3289 = vrot.slane %v3287, 4
      %v3290 = vrot.slane %v3171, 5
      %v3291 = vsel %vm338, %v3289, %v3290
      %v3292 = vrot.slane %v3172, 5
      %v3293 = vrot.slane %v3292, 4
      %v3294 = vrot.slane %v3173, 5
      %v3295 = vsel %vm338, %v3293, %v3294
      %v3296 = vrot.slane %v3294, 4
      %v3297 = vrot.slane %v3174, 5
      %v3298 = vsel %vm338, %v3296, %v3297
      %v3299 = vrot.slane %v3175, 5
      %v3300 = vrot.slane %v3299, 4
      %v3301 = vrot.slane %v3176, 5
      %v3302 = vsel %vm338, %v3300, %v3301
      %v3303 = vrot.slane %v3301, 4
      %v3304 = vrot.slane %v3177, 5
      %v3305 = vsel %vm338, %v3303, %v3304
      %v3306 = vrot.slane %v3178, 5
      %v3307 = vrot.slane %v3306, 4
      %v3308 = vrot.slane %v3179, 5
      %v3309 = vsel %vm338, %v3307, %v3308
      %v3310 = vrot.slane %v3308, 4
      %v3311 = vrot.slane %v3180, 5
      %v3312 = vsel %vm338, %v3310, %v3311
      %v3313 = vrot.slane %v3181, 5
      %v3314 = vrot.slane %v3313, 4
      %v3315 = vrot.slane %v3182, 5
      %v3316 = vsel %vm338, %v3314, %v3315
      %v3317 = vrot.slane %v3315, 4
      %v3318 = vrot.slane %v3183, 5
      %v3319 = vsel %vm338, %v3317, %v3318
      %v3320 = vrot.slane %v3184, 5
      %v3321 = vrot.slane %v3320, 4
      %v3322 = vrot.slane %v3185, 5
      %v3323 = vsel %vm338, %v3321, %v3322
      %v3324 = vrot.slane %v3322, 4
      %v3325 = vrot.slane %v3186, 5
      %v3326 = vsel %vm338, %v3324, %v3325
      %v3327 = vrot.slane %v3187, 5
      %v3328 = vrot.slane %v3327, 4
      %v3329 = vrot.slane %v3188, 5
      %v3330 = vsel %vm338, %v3328, %v3329
      %v3331 = vrot.slane %v3329, 4
      %v3332 = vrot.slane %v3189, 5
      %v3333 = vsel %vm338, %v3331, %v3332
      %v3334 = vrot.slane %v3190, 5
      %v3335 = vrot.slane %v3334, 4
      %v3336 = vrot.slane %v3191, 5
      %v3337 = vsel %vm338, %v3335, %v3336
      %v3338 = vrot.slane %v3336, 4
      %v3339 = vrot.slane %v3192, 5
      %v3340 = vsel %vm338, %v3338, %v3339
      %v3341 = vrot.slane %v3193, 5
      %v3342 = vrot.slane %v3341, 4
      %v3343 = vrot.slane %v3194, 5
      %v3344 = vsel %vm338, %v3342, %v3343
      %v3345 = vrot.slane %v3343, 4
      %v3346 = vrot.slane %v3195, 5
      %v3347 = vsel %vm338, %v3345, %v3346
      %v3348 = vrot.slane %v3196, 5
      %v3349 = vrot.slane %v3348, 4
      %v3350 = vrot.slane %v3197, 5
      %v3351 = vsel %vm338, %v3349, %v3350
      %v3352 = vrot.slane %v3350, 4
      %v3353 = vrot.slane %v3198, 5
      %v3354 = vsel %vm338, %v3352, %v3353
      %v3355 = vrot.slane %v3199, 5
      %v3356 = vrot.slane %v3355, 4
      %v3357 = vrot.slane %v3200, 5
      %v3358 = vsel %vm338, %v3356, %v3357
      %v3359 = vrot.slane %v3357, 4
      %v3360 = vrot.slane %v3201, 5
      %v3361 = vsel %vm338, %v3359, %v3360
      %s3362 = scalar_lea.vmem %s210, 14
      %v3363 = vld [vmem:[%s3362] sm:$0x3]
      %v3364 = vunpack.c.l.b16 %v3253
      %v3365 = vunpack.c.l.b16 %v3256
      %v3366 = vunpack.c.l.b16 %v3260
      %v3367 = vunpack.c.l.b16 %v3263
      %v3368 = vunpack.c.l.b16 %v3267
      %v3369 = vunpack.c.l.b16 %v3270
      %v3370 = vunpack.c.l.b16 %v3274
      %v3371 = vunpack.c.l.b16 %v3277
      %v3372 = vunpack.c.l.b16 %v3281
      %v3373 = vunpack.c.l.b16 %v3284
      %v3374 = vunpack.c.l.b16 %v3288
      %v3375 = vunpack.c.l.b16 %v3291
      %v3376 = vunpack.c.l.b16 %v3295
      %v3377 = vunpack.c.l.b16 %v3298
      %v3378 = vunpack.c.l.b16 %v3302
      %v3379 = vunpack.c.l.b16 %v3305
      %v3380 = vunpack.c.l.b16 %v3309
      %v3381 = vunpack.c.l.b16 %v3312
      %v3382 = vunpack.c.l.b16 %v3316
      %v3383 = vunpack.c.l.b16 %v3319
      %v3384 = vunpack.c.l.b16 %v3323
      %v3385 = vunpack.c.l.b16 %v3326
      %v3386 = vunpack.c.l.b16 %v3330
      %v3387 = vunpack.c.l.b16 %v3333
      %v3388 = vunpack.c.l.b16 %v3337
      %v3389 = vunpack.c.l.b16 %v3340
      %v3390 = vunpack.c.l.b16 %v3344
      %v3391 = vunpack.c.l.b16 %v3347
      %v3392 = vunpack.c.l.b16 %v3351
      %v3393 = vunpack.c.l.b16 %v3354
      %v3394 = vunpack.c.l.b16 %v3358
      %v3395 = vunpack.c.l.b16 %v3361
      %v3396 = vpack.c.b16 %v3365, %v3364
      %v3397 = vpack.c.b16 %v3367, %v3366
      %v3398 = vpack.c.b16 %v3369, %v3368
      %v3399 = vpack.c.b16 %v3371, %v3370
      %v3400 = vpack.c.b16 %v3373, %v3372
      %v3401 = vpack.c.b16 %v3375, %v3374
      %v3402 = vpack.c.b16 %v3377, %v3376
      %v3403 = vpack.c.b16 %v3379, %v3378
      %v3404 = vpack.c.b16 %v3381, %v3380
      %v3405 = vpack.c.b16 %v3383, %v3382
      %v3406 = vpack.c.b16 %v3385, %v3384
      %v3407 = vpack.c.b16 %v3387, %v3386
      %v3408 = vpack.c.b16 %v3389, %v3388
      %v3409 = vpack.c.b16 %v3391, %v3390
      %v3410 = vpack.c.b16 %v3393, %v3392
      %v3411 = vpack.c.b16 %v3395, %v3394
      %v3413 = vsel %vm501, %v3396, 0
      %v3416 = vsel %vm501, %v3397, 0
      %v3419 = vsel %vm501, %v3398, 0
      %v3422 = vsel %vm501, %v3399, 0
      %v3425 = vsel %vm501, %v3400, 0
      %v3428 = vsel %vm501, %v3401, 0
      %v3431 = vsel %vm501, %v3402, 0
      %v3434 = vsel %vm501, %v3403, 0
      %v3437 = vsel %vm501, %v3404, 0
      %v3440 = vsel %vm501, %v3405, 0
      %v3443 = vsel %vm501, %v3406, 0
      %v3446 = vsel %vm501, %v3407, 0
      %v3449 = vsel %vm501, %v3408, 0
      %v3452 = vsel %vm501, %v3409, 0
      %v3455 = vsel %vm501, %v3410, 0
      %v3458 = vsel %vm501, %v3411, 0
      %v3461 = vsel %vm550, %v3363, 0
      %3463 = vmatprep.subr.bf16.mxu0 0
      %3464 = vmatpush1.bf16.msra.mxu0 %v3461
      %3465 = vmatprep.subr.bf16.mxu0 0
      %3466 = vmatpush1.bf16.msra.mxu0 0
      %3467 = vmatprep.subr.bf16.mxu0 0
      %3468 = vmatpush1.bf16.msra.mxu0 0
      %3469 = vmatprep.subr.bf16.mxu0 0
      %3470 = vmatpush1.bf16.msra.mxu0 0
      %3471 = vmatprep.subr.bf16.mxu0 0
      %3472 = vmatpush1.bf16.msra.mxu0 0
      %3473 = vmatprep.subr.bf16.mxu0 0
      %3474 = vmatpush1.bf16.msra.mxu0 0
      %3475 = vmatprep.subr.bf16.mxu0 0
      %3476 = vmatpush1.bf16.msra.mxu0 0
      %3477 = vmatprep.subr.bf16.mxu0 0
      %3478 = vmatpush1.bf16.msra.mxu0 0
      %3479 = vmatprep.subr.bf16.mxu0 0
      %3480 = vmatpush1.bf16.msra.mxu0 0
      %3481 = vmatprep.subr.bf16.mxu0 0
      %3482 = vmatpush1.bf16.msra.mxu0 0
      %3483 = vmatprep.subr.bf16.mxu0 0
      %3484 = vmatpush1.bf16.msra.mxu0 0
      %3485 = vmatprep.subr.bf16.mxu0 0
      %3486 = vmatpush1.bf16.msra.mxu0 0
      %3487 = vmatprep.subr.bf16.mxu0 0
      %3488 = vmatpush1.bf16.msra.mxu0 0
      %3489 = vmatprep.subr.bf16.mxu0 0
      %3490 = vmatpush1.bf16.msra.mxu0 0
      %3491 = vmatprep.subr.bf16.mxu0 0
      %3492 = vmatpush1.bf16.msra.mxu0 0
      %3493 = vmatprep.subr.bf16.mxu0 0
      %3494 = vmatpush1.bf16.msra.mxu0 0
      %3495 = vmatprep.mubr.bf16.mxu0 0
      %3496 = vmatmul.mubr.bf16.gmra.mrb[0].mxu0 %v3413
      %v3497 = vpop.f32.mrb[0].mxu0
      %v3498 = vadd.f32 0.0, %v3497
      %v3499 = vpop.f32.mrb[0].mxu0
      %v3500 = vpop.f32.mrb[0].mxu0
      %v3501 = vadd.f32 0.0, %v3500
      %v3502 = vpop.f32.mrb[0].mxu0
      %3503 = vmatprep.mubr.bf16.mxu0 0
      %3504 = vmatmul.mubr.bf16.gmra.mrb[0].mxu0 %v3416
      %v3505 = vpop.f32.mrb[0].mxu0
      %v3506 = vadd.f32 0.0, %v3505
      %v3507 = vpop.f32.mrb[0].mxu0
      %v3508 = vpop.f32.mrb[0].mxu0
      %v3509 = vadd.f32 0.0, %v3508
      %v3510 = vpop.f32.mrb[0].mxu0
      %3511 = vmatprep.mubr.bf16.mxu0 0
      %3512 = vmatmul.mubr.bf16.gmra.mrb[0].mxu0 %v3419
      %v3513 = vpop.f32.mrb[0].mxu0
      %v3514 = vadd.f32 0.0, %v3513
      %v3515 = vpop.f32.mrb[0].mxu0
      %v3516 = vpop.f32.mrb[0].mxu0
      %v3517 = vadd.f32 0.0, %v3516
      %v3518 = vpop.f32.mrb[0].mxu0
      %3519 = vmatprep.mubr.bf16.mxu0 0
      %3520 = vmatmul.mubr.bf16.gmra.mrb[0].mxu0 %v3422
      %v3521 = vpop.f32.mrb[0].mxu0
      %v3522 = vadd.f32 0.0, %v3521
      %v3523 = vpop.f32.mrb[0].mxu0
      %v3524 = vpop.f32.mrb[0].mxu0
      %v3525 = vadd.f32 0.0, %v3524
      %v3526 = vpop.f32.mrb[0].mxu0
      %3527 = vmatprep.mubr.bf16.mxu0 0
      %3528 = vmatmul.mubr.bf16.gmra.mrb[0].mxu0 %v3425
      %v3529 = vpop.f32.mrb[0].mxu0
      %v3530 = vadd.f32 0.0, %v3529
      %v3531 = vpop.f32.mrb[0].mxu0
      %v3532 = vpop.f32.mrb[0].mxu0
      %v3533 = vadd.f32 0.0, %v3532
      %v3534 = vpop.f32.mrb[0].mxu0
      %3535 = vmatprep.mubr.bf16.mxu0 0
      %3536 = vmatmul.mubr.bf16.gmra.mrb[0].mxu0 %v3428
      %v3537 = vpop.f32.mrb[0].mxu0
      %v3538 = vadd.f32 0.0, %v3537
      %v3539 = vpop.f32.mrb[0].mxu0
      %v3540 = vpop.f32.mrb[0].mxu0
      %v3541 = vadd.f32 0.0, %v3540
      %v3542 = vpop.f32.mrb[0].mxu0
      %3543 = vmatprep.mubr.bf16.mxu0 0
      %3544 = vmatmul.mubr.bf16.gmra.mrb[0].mxu0 %v3431
      %v3545 = vpop.f32.mrb[0].mxu0
      %v3546 = vadd.f32 0.0, %v3545
      %v3547 = vpop.f32.mrb[0].mxu0
      %v3548 = vpop.f32.mrb[0].mxu0
      %v3549 = vadd.f32 0.0, %v3548
      %v3550 = vpop.f32.mrb[0].mxu0
      %3551 = vmatprep.mubr.bf16.mxu0 0
      %3552 = vmatmul.mubr.bf16.gmra.mrb[0].mxu0 %v3434
      %v3553 = vpop.f32.mrb[0].mxu0
      %v3554 = vadd.f32 0.0, %v3553
      %v3555 = vpop.f32.mrb[0].mxu0
      %v3556 = vpop.f32.mrb[0].mxu0
      %v3557 = vadd.f32 0.0, %v3556
      %v3558 = vpop.f32.mrb[0].mxu0
      %3559 = vmatprep.mubr.bf16.mxu0 0
      %3560 = vmatmul.mubr.bf16.gmra.mrb[0].mxu0 %v3437
      %v3561 = vpop.f32.mrb[0].mxu0
      %v3562 = vadd.f32 0.0, %v3561
      %v3563 = vpop.f32.mrb[0].mxu0
      %v3564 = vpop.f32.mrb[0].mxu0
      %v3565 = vadd.f32 0.0, %v3564
      %v3566 = vpop.f32.mrb[0].mxu0
      %3567 = vmatprep.mubr.bf16.mxu0 0
      %3568 = vmatmul.mubr.bf16.gmra.mrb[0].mxu0 %v3440
      %v3569 = vpop.f32.mrb[0].mxu0
      %v3570 = vadd.f32 0.0, %v3569
      %v3571 = vpop.f32.mrb[0].mxu0
      %v3572 = vpop.f32.mrb[0].mxu0
      %v3573 = vadd.f32 0.0, %v3572
      %v3574 = vpop.f32.mrb[0].mxu0
      %3575 = vmatprep.mubr.bf16.mxu0 0
      %3576 = vmatmul.mubr.bf16.gmra.mrb[0].mxu0 %v3443
      %v3577 = vpop.f32.mrb[0].mxu0
      %v3578 = vadd.f32 0.0, %v3577
      %v3579 = vpop.f32.mrb[0].mxu0
      %v3580 = vpop.f32.mrb[0].mxu0
      %v3581 = vadd.f32 0.0, %v3580
      %v3582 = vpop.f32.mrb[0].mxu0
      %3583 = vmatprep.mubr.bf16.mxu0 0
      %3584 = vmatmul.mubr.bf16.gmra.mrb[0].mxu0 %v3446
      %v3585 = vpop.f32.mrb[0].mxu0
      %v3586 = vadd.f32 0.0, %v3585
      %v3587 = vpop.f32.mrb[0].mxu0
      %v3588 = vpop.f32.mrb[0].mxu0
      %v3589 = vadd.f32 0.0, %v3588
      %v3590 = vpop.f32.mrb[0].mxu0
      %3591 = vmatprep.mubr.bf16.mxu0 0
      %3592 = vmatmul.mubr.bf16.gmra.mrb[0].mxu0 %v3449
      %v3593 = vpop.f32.mrb[0].mxu0
      %v3594 = vadd.f32 0.0, %v3593
      %v3595 = vpop.f32.mrb[0].mxu0
      %v3596 = vpop.f32.mrb[0].mxu0
      %v3597 = vadd.f32 0.0, %v3596
      %v3598 = vpop.f32.mrb[0].mxu0
      %3599 = vmatprep.mubr.bf16.mxu0 0
      %3600 = vmatmul.mubr.bf16.gmra.mrb[0].mxu0 %v3452
      %v3601 = vpop.f32.mrb[0].mxu0
      %v3602 = vadd.f32 0.0, %v3601
      %v3603 = vpop.f32.mrb[0].mxu0
      %v3604 = vpop.f32.mrb[0].mxu0
      %v3605 = vadd.f32 0.0, %v3604
      %v3606 = vpop.f32.mrb[0].mxu0
      %3607 = vmatprep.mubr.bf16.mxu0 0
      %3608 = vmatmul.mubr.bf16.gmra.mrb[0].mxu0 %v3455
      %v3609 = vpop.f32.mrb[0].mxu0
      %v3610 = vadd.f32 0.0, %v3609
      %v3611 = vpop.f32.mrb[0].mxu0
      %v3612 = vpop.f32.mrb[0].mxu0
      %v3613 = vadd.f32 0.0, %v3612
      %v3614 = vpop.f32.mrb[0].mxu0
      %3615 = vmatprep.mubr.bf16.mxu0 0
      %3616 = vmatmul.mubr.bf16.gmra.mrb[0].mxu0 %v3458
      %v3617 = vpop.f32.mrb[0].mxu0
      %v3618 = vadd.f32 0.0, %v3617
      %v3619 = vpop.f32.mrb[0].mxu0
      %v3620 = vpop.f32.mrb[0].mxu0
      %v3621 = vadd.f32 0.0, %v3620
      %v3622 = vpop.f32.mrb[0].mxu0
      %3623 = vdwg.mxu0
      %v3624 = vadd.f32 %v3122, %v3498
      %v3625 = vadd.f32 %v3123, %v3501
      %v3626 = vadd.f32 %v3124, %v3506
      %v3627 = vadd.f32 %v3125, %v3509
      %v3628 = vadd.f32 %v3126, %v3514
      %v3629 = vadd.f32 %v3127, %v3517
      %v3630 = vadd.f32 %v3128, %v3522
      %v3631 = vadd.f32 %v3129, %v3525
      %v3632 = vadd.f32 %v3130, %v3530
      %v3633 = vadd.f32 %v3131, %v3533
      %v3634 = vadd.f32 %v3132, %v3538
      %v3635 = vadd.f32 %v3133, %v3541
      %v3636 = vadd.f32 %v3134, %v3546
      %v3637 = vadd.f32 %v3135, %v3549
      %v3638 = vadd.f32 %v3136, %v3554
      %v3639 = vadd.f32 %v3137, %v3557
      %v3640 = vadd.f32 %v3138, %v3562
      %v3641 = vadd.f32 %v3139, %v3565
      %v3642 = vadd.f32 %v3140, %v3570
      %v3643 = vadd.f32 %v3141, %v3573
      %v3644 = vadd.f32 %v3142, %v3578
      %v3645 = vadd.f32 %v3143, %v3581
      %v3646 = vadd.f32 %v3144, %v3586
      %v3647 = vadd.f32 %v3145, %v3589
      %v3648 = vadd.f32 %v3146, %v3594
      %v3649 = vadd.f32 %v3147, %v3597
      %v3650 = vadd.f32 %v3148, %v3602
      %v3651 = vadd.f32 %v3149, %v3605
      %v3652 = vadd.f32 %v3150, %v3610
      %v3653 = vadd.f32 %v3151, %v3613
      %v3654 = vadd.f32 %v3152, %v3618
      %v3655 = vadd.f32 %v3153, %v3621
      %v3656 = vld [vmem:[%s2795] sm:$0xc]
      %v3657 = vld [vmem:[%s2795 + $0x8] sm:$0x3]
      %v3658 = vld [vmem:[%s2795 + $0xc] sm:$0xc]
      %v3659 = vld [vmem:[%s2795 + $0x14] sm:$0x3]
      %v3660 = vld [vmem:[%s2795 + $0x18] sm:$0xc]
      %v3661 = vld [vmem:[%s2795 + $0x20] sm:$0x3]
      %v3662 = vld [vmem:[%s2795 + $0x24] sm:$0xc]
      %v3663 = vld [vmem:[%s2795 + $0x2c] sm:$0x3]
      %v3664 = vld [vmem:[%s2795 + $0x30] sm:$0xc]
      %v3665 = vld [vmem:[%s2795 + $0x38] sm:$0x3]
      %v3666 = vld [vmem:[%s2795 + $0x3c] sm:$0xc]
      %v3667 = vld [vmem:[%s2795 + $0x44] sm:$0x3]
      %v3668 = vld [vmem:[%s2795 + $0x48] sm:$0xc]
      %v3669 = vld [vmem:[%s2795 + $0x50] sm:$0x3]
      %v3670 = vld [vmem:[%s2795 + $0x54] sm:$0xc]
      %v3671 = vld [vmem:[%s2795 + $0x5c] sm:$0x3]
      %v3672 = vld [vmem:[%s2795 + $0x60] sm:$0xc]
      %v3673 = vld [vmem:[%s2795 + $0x68] sm:$0x3]
      %v3674 = vld [vmem:[%s2795 + $0x6c] sm:$0xc]
      %v3675 = vld [vmem:[%s2795 + $0x74] sm:$0x3]
      %v3676 = vld [vmem:[%s2795 + $0x78] sm:$0xc]
      %v3677 = vld [vmem:[%s2795 + $0x80] sm:$0x3]
      %v3678 = vld [vmem:[%s2795 + $0x84] sm:$0xc]
      %v3679 = vld [vmem:[%s2795 + $0x8c] sm:$0x3]
      %v3680 = vld [vmem:[%s2795 + $0x90] sm:$0xc]
      %v3681 = vld [vmem:[%s2795 + $0x98] sm:$0x3]
      %v3682 = vld [vmem:[%s2795 + $0x9c] sm:$0xc]
      %v3683 = vld [vmem:[%s2795 + $0xa4] sm:$0x3]
      %v3684 = vld [vmem:[%s2795 + $0xa8] sm:$0xc]
      %v3685 = vld [vmem:[%s2795 + $0xb0] sm:$0x3]
      %v3686 = vld [vmem:[%s2795 + $0xb4] sm:$0xc]
      %v3687 = vld [vmem:[%s2795 + $0xbc] sm:$0x3]
      %v3720 = vrot.slane %v3656, 6
      %v3721 = vrot.slane %v3720, 4
      %v3722 = vrot.slane %v3155, 6
      %v3723 = vsel %vm1057, %v3721, %v3722
      %v3724 = vrot.slane %v3722, 4
      %v3725 = vrot.slane %v3657, 6
      %v3726 = vsel %vm1057, %v3724, %v3725
      %v3727 = vrot.slane %v3658, 6
      %v3728 = vrot.slane %v3727, 4
      %v3729 = vrot.slane %v3158, 6
      %v3730 = vsel %vm1057, %v3728, %v3729
      %v3731 = vrot.slane %v3729, 4
      %v3732 = vrot.slane %v3659, 6
      %v3733 = vsel %vm1057, %v3731, %v3732
      %v3734 = vrot.slane %v3660, 6
      %v3735 = vrot.slane %v3734, 4
      %v3736 = vrot.slane %v3161, 6
      %v3737 = vsel %vm1057, %v3735, %v3736
      %v3738 = vrot.slane %v3736, 4
      %v3739 = vrot.slane %v3661, 6
      %v3740 = vsel %vm1057, %v3738, %v3739
      %v3741 = vrot.slane %v3662, 6
      %v3742 = vrot.slane %v3741, 4
      %v3743 = vrot.slane %v3164, 6
      %v3744 = vsel %vm1057, %v3742, %v3743
      %v3745 = vrot.slane %v3743, 4
      %v3746 = vrot.slane %v3663, 6
      %v3747 = vsel %vm1057, %v3745, %v3746
      %v3748 = vrot.slane %v3664, 6
      %v3749 = vrot.slane %v3748, 4
      %v3750 = vrot.slane %v3167, 6
      %v3751 = vsel %vm1057, %v3749, %v3750
      %v3752 = vrot.slane %v3750, 4
      %v3753 = vrot.slane %v3665, 6
      %v3754 = vsel %vm1057, %v3752, %v3753
      %v3755 = vrot.slane %v3666, 6
      %v3756 = vrot.slane %v3755, 4
      %v3757 = vrot.slane %v3170, 6
      %v3758 = vsel %vm1057, %v3756, %v3757
      %v3759 = vrot.slane %v3757, 4
      %v3760 = vrot.slane %v3667, 6
      %v3761 = vsel %vm1057, %v3759, %v3760
      %v3762 = vrot.slane %v3668, 6
      %v3763 = vrot.slane %v3762, 4
      %v3764 = vrot.slane %v3173, 6
      %v3765 = vsel %vm1057, %v3763, %v3764
      %v3766 = vrot.slane %v3764, 4
      %v3767 = vrot.slane %v3669, 6
      %v3768 = vsel %vm1057, %v3766, %v3767
      %v3769 = vrot.slane %v3670, 6
      %v3770 = vrot.slane %v3769, 4
      %v3771 = vrot.slane %v3176, 6
      %v3772 = vsel %vm1057, %v3770, %v3771
      %v3773 = vrot.slane %v3771, 4
      %v3774 = vrot.slane %v3671, 6
      %v3775 = vsel %vm1057, %v3773, %v3774
      %v3776 = vrot.slane %v3672, 6
      %v3777 = vrot.slane %v3776, 4
      %v3778 = vrot.slane %v3179, 6
      %v3779 = vsel %vm1057, %v3777, %v3778
      %v3780 = vrot.slane %v3778, 4
      %v3781 = vrot.slane %v3673, 6
      %v3782 = vsel %vm1057, %v3780, %v3781
      %v3783 = vrot.slane %v3674, 6
      %v3784 = vrot.slane %v3783, 4
      %v3785 = vrot.slane %v3182, 6
      %v3786 = vsel %vm1057, %v3784, %v3785
      %v3787 = vrot.slane %v3785, 4
      %v3788 = vrot.slane %v3675, 6
      %v3789 = vsel %vm1057, %v3787, %v3788
      %v3790 = vrot.slane %v3676, 6
      %v3791 = vrot.slane %v3790, 4
      %v3792 = vrot.slane %v3185, 6
      %v3793 = vsel %vm1057, %v3791, %v3792
      %v3794 = vrot.slane %v3792, 4
      %v3795 = vrot.slane %v3677, 6
      %v3796 = vsel %vm1057, %v3794, %v3795
      %v3797 = vrot.slane %v3678, 6
      %v3798 = vrot.slane %v3797, 4
      %v3799 = vrot.slane %v3188, 6
      %v3800 = vsel %vm1057, %v3798, %v3799
      %v3801 = vrot.slane %v3799, 4
      %v3802 = vrot.slane %v3679, 6
      %v3803 = vsel %vm1057, %v3801, %v3802
      %v3804 = vrot.slane %v3680, 6
      %v3805 = vrot.slane %v3804, 4
      %v3806 = vrot.slane %v3191, 6
      %v3807 = vsel %vm1057, %v3805, %v3806
      %v3808 = vrot.slane %v3806, 4
      %v3809 = vrot.slane %v3681, 6
      %v3810 = vsel %vm1057, %v3808, %v3809
      %v3811 = vrot.slane %v3682, 6
      %v3812 = vrot.slane %v3811, 4
      %v3813 = vrot.slane %v3194, 6
      %v3814 = vsel %vm1057, %v3812, %v3813
      %v3815 = vrot.slane %v3813, 4
      %v3816 = vrot.slane %v3683, 6
      %v3817 = vsel %vm1057, %v3815, %v3816
      %v3818 = vrot.slane %v3684, 6
      %v3819 = vrot.slane %v3818, 4
      %v3820 = vrot.slane %v3197, 6
      %v3821 = vsel %vm1057, %v3819, %v3820
      %v3822 = vrot.slane %v3820, 4
      %v3823 = vrot.slane %v3685, 6
      %v3824 = vsel %vm1057, %v3822, %v3823
      %v3825 = vrot.slane %v3686, 6
      %v3826 = vrot.slane %v3825, 4
      %v3827 = vrot.slane %v3200, 6
      %v3828 = vsel %vm1057, %v3826, %v3827
      %v3829 = vrot.slane %v3827, 4
      %v3830 = vrot.slane %v3687, 6
      %v3831 = vsel %vm1057, %v3829, %v3830
      %s3832 = scalar_lea.vmem %s210, 16
      %v3833 = vld [vmem:[%s3832] sm:$0x3]
      %v3834 = vunpack.c.l.b16 %v3723
      %v3835 = vunpack.c.l.b16 %v3726
      %v3836 = vunpack.c.l.b16 %v3730
      %v3837 = vunpack.c.l.b16 %v3733
      %v3838 = vunpack.c.l.b16 %v3737
      %v3839 = vunpack.c.l.b16 %v3740
      %v3840 = vunpack.c.l.b16 %v3744
      %v3841 = vunpack.c.l.b16 %v3747
      %v3842 = vunpack.c.l.b16 %v3751
      %v3843 = vunpack.c.l.b16 %v3754
      %v3844 = vunpack.c.l.b16 %v3758
      %v3845 = vunpack.c.l.b16 %v3761
      %v3846 = vunpack.c.l.b16 %v3765
      %v3847 = vunpack.c.l.b16 %v3768
      %v3848 = vunpack.c.l.b16 %v3772
      %v3849 = vunpack.c.l.b16 %v3775
      %v3850 = vunpack.c.l.b16 %v3779
      %v3851 = vunpack.c.l.b16 %v3782
      %v3852 = vunpack.c.l.b16 %v3786
      %v3853 = vunpack.c.l.b16 %v3789
      %v3854 = vunpack.c.l.b16 %v3793
      %v3855 = vunpack.c.l.b16 %v3796
      %v3856 = vunpack.c.l.b16 %v3800
      %v3857 = vunpack.c.l.b16 %v3803
      %v3858 = vunpack.c.l.b16 %v3807
      %v3859 = vunpack.c.l.b16 %v3810
      %v3860 = vunpack.c.l.b16 %v3814
      %v3861 = vunpack.c.l.b16 %v3817
      %v3862 = vunpack.c.l.b16 %v3821
      %v3863 = vunpack.c.l.b16 %v3824
      %v3864 = vunpack.c.l.b16 %v3828
      %v3865 = vunpack.c.l.b16 %v3831
      %v3866 = vpack.c.b16 %v3835, %v3834
      %v3867 = vpack.c.b16 %v3837, %v3836
      %v3868 = vpack.c.b16 %v3839, %v3838
      %v3869 = vpack.c.b16 %v3841, %v3840
      %v3870 = vpack.c.b16 %v3843, %v3842
      %v3871 = vpack.c.b16 %v3845, %v3844
      %v3872 = vpack.c.b16 %v3847, %v3846
      %v3873 = vpack.c.b16 %v3849, %v3848
      %v3874 = vpack.c.b16 %v3851, %v3850
      %v3875 = vpack.c.b16 %v3853, %v3852
      %v3876 = vpack.c.b16 %v3855, %v3854
      %v3877 = vpack.c.b16 %v3857, %v3856
      %v3878 = vpack.c.b16 %v3859, %v3858
      %v3879 = vpack.c.b16 %v3861, %v3860
      %v3880 = vpack.c.b16 %v3863, %v3862
      %v3881 = vpack.c.b16 %v3865, %v3864
      %v3883 = vsel %vm501, %v3866, 0
      %v3886 = vsel %vm501, %v3867, 0
      %v3889 = vsel %vm501, %v3868, 0
      %v3892 = vsel %vm501, %v3869, 0
      %v3895 = vsel %vm501, %v3870, 0
      %v3898 = vsel %vm501, %v3871, 0
      %v3901 = vsel %vm501, %v3872, 0
      %v3904 = vsel %vm501, %v3873, 0
      %v3907 = vsel %vm501, %v3874, 0
      %v3910 = vsel %vm501, %v3875, 0
      %v3913 = vsel %vm501, %v3876, 0
      %v3916 = vsel %vm501, %v3877, 0
      %v3919 = vsel %vm501, %v3878, 0
      %v3922 = vsel %vm501, %v3879, 0
      %v3925 = vsel %vm501, %v3880, 0
      %v3928 = vsel %vm501, %v3881, 0
      %v3931 = vsel %vm550, %v3833, 0
      %3933 = vmatprep.subr.bf16.mxu0 0
      %3934 = vmatpush1.bf16.msra.mxu0 %v3931
      %3935 = vmatprep.subr.bf16.mxu0 0
      %3936 = vmatpush1.bf16.msra.mxu0 0
      %3937 = vmatprep.subr.bf16.mxu0 0
      %3938 = vmatpush1.bf16.msra.mxu0 0
      %3939 = vmatprep.subr.bf16.mxu0 0
      %3940 = vmatpush1.bf16.msra.mxu0 0
      %3941 = vmatprep.subr.bf16.mxu0 0
      %3942 = vmatpush1.bf16.msra.mxu0 0
      %3943 = vmatprep.subr.bf16.mxu0 0
      %3944 = vmatpush1.bf16.msra.mxu0 0
      %3945 = vmatprep.subr.bf16.mxu0 0
      %3946 = vmatpush1.bf16.msra.mxu0 0
      %3947 = vmatprep.subr.bf16.mxu0 0
      %3948 = vmatpush1.bf16.msra.mxu0 0
      %3949 = vmatprep.subr.bf16.mxu0 0
      %3950 = vmatpush1.bf16.msra.mxu0 0
      %3951 = vmatprep.subr.bf16.mxu0 0
      %3952 = vmatpush1.bf16.msra.mxu0 0
      %3953 = vmatprep.subr.bf16.mxu0 0
      %3954 = vmatpush1.bf16.msra.mxu0 0
      %3955 = vmatprep.subr.bf16.mxu0 0
      %3956 = vmatpush1.bf16.msra.mxu0 0
      %3957 = vmatprep.subr.bf16.mxu0 0
      %3958 = vmatpush1.bf16.msra.mxu0 0
      %3959 = vmatprep.subr.bf16.mxu0 0
      %3960 = vmatpush1.bf16.msra.mxu0 0
      %3961 = vmatprep.subr.bf16.mxu0 0
      %3962 = vmatpush1.bf16.msra.mxu0 0
      %3963 = vmatprep.subr.bf16.mxu0 0
      %3964 = vmatpush1.bf16.msra.mxu0 0
      %3965 = vmatprep.mubr.bf16.mxu0 0
      %3966 = vmatmul.mubr.bf16.gmra.mrb[0].mxu0 %v3883
      %v3967 = vpop.f32.mrb[0].mxu0
      %v3968 = vadd.f32 0.0, %v3967
      %v3969 = vpop.f32.mrb[0].mxu0
      %v3970 = vpop.f32.mrb[0].mxu0
      %v3971 = vadd.f32 0.0, %v3970
      %v3972 = vpop.f32.mrb[0].mxu0
      %3973 = vmatprep.mubr.bf16.mxu0 0
      %3974 = vmatmul.mubr.bf16.gmra.mrb[0].mxu0 %v3886
      %v3975 = vpop.f32.mrb[0].mxu0
      %v3976 = vadd.f32 0.0, %v3975
      %v3977 = vpop.f32.mrb[0].mxu0
      %v3978 = vpop.f32.mrb[0].mxu0
      %v3979 = vadd.f32 0.0, %v3978
      %v3980 = vpop.f32.mrb[0].mxu0
      %3981 = vmatprep.mubr.bf16.mxu0 0
      %3982 = vmatmul.mubr.bf16.gmra.mrb[0].mxu0 %v3889
      %v3983 = vpop.f32.mrb[0].mxu0
      %v3984 = vadd.f32 0.0, %v3983
      %v3985 = vpop.f32.mrb[0].mxu0
      %v3986 = vpop.f32.mrb[0].mxu0
      %v3987 = vadd.f32 0.0, %v3986
      %v3988 = vpop.f32.mrb[0].mxu0
      %3989 = vmatprep.mubr.bf16.mxu0 0
      %3990 = vmatmul.mubr.bf16.gmra.mrb[0].mxu0 %v3892
      %v3991 = vpop.f32.mrb[0].mxu0
      %v3992 = vadd.f32 0.0, %v3991
      %v3993 = vpop.f32.mrb[0].mxu0
      %v3994 = vpop.f32.mrb[0].mxu0
      %v3995 = vadd.f32 0.0, %v3994
      %v3996 = vpop.f32.mrb[0].mxu0
      %3997 = vmatprep.mubr.bf16.mxu0 0
      %3998 = vmatmul.mubr.bf16.gmra.mrb[0].mxu0 %v3895
      %v3999 = vpop.f32.mrb[0].mxu0
      %v4000 = vadd.f32 0.0, %v3999
      %v4001 = vpop.f32.mrb[0].mxu0
      %v4002 = vpop.f32.mrb[0].mxu0
      %v4003 = vadd.f32 0.0, %v4002
      %v4004 = vpop.f32.mrb[0].mxu0
      %4005 = vmatprep.mubr.bf16.mxu0 0
      %4006 = vmatmul.mubr.bf16.gmra.mrb[0].mxu0 %v3898
      %v4007 = vpop.f32.mrb[0].mxu0
      %v4008 = vadd.f32 0.0, %v4007
      %v4009 = vpop.f32.mrb[0].mxu0
      %v4010 = vpop.f32.mrb[0].mxu0
      %v4011 = vadd.f32 0.0, %v4010
      %v4012 = vpop.f32.mrb[0].mxu0
      %4013 = vmatprep.mubr.bf16.mxu0 0
      %4014 = vmatmul.mubr.bf16.gmra.mrb[0].mxu0 %v3901
      %v4015 = vpop.f32.mrb[0].mxu0
      %v4016 = vadd.f32 0.0, %v4015
      %v4017 = vpop.f32.mrb[0].mxu0
      %v4018 = vpop.f32.mrb[0].mxu0
      %v4019 = vadd.f32 0.0, %v4018
      %v4020 = vpop.f32.mrb[0].mxu0
      %4021 = vmatprep.mubr.bf16.mxu0 0
      %4022 = vmatmul.mubr.bf16.gmra.mrb[0].mxu0 %v3904
      %v4023 = vpop.f32.mrb[0].mxu0
      %v4024 = vadd.f32 0.0, %v4023
      %v4025 = vpop.f32.mrb[0].mxu0
      %v4026 = vpop.f32.mrb[0].mxu0
      %v4027 = vadd.f32 0.0, %v4026
      %v4028 = vpop.f32.mrb[0].mxu0
      %4029 = vmatprep.mubr.bf16.mxu0 0
      %4030 = vmatmul.mubr.bf16.gmra.mrb[0].mxu0 %v3907
      %v4031 = vpop.f32.mrb[0].mxu0
      %v4032 = vadd.f32 0.0, %v4031
      %v4033 = vpop.f32.mrb[0].mxu0
      %v4034 = vpop.f32.mrb[0].mxu0
      %v4035 = vadd.f32 0.0, %v4034
      %v4036 = vpop.f32.mrb[0].mxu0
      %4037 = vmatprep.mubr.bf16.mxu0 0
      %4038 = vmatmul.mubr.bf16.gmra.mrb[0].mxu0 %v3910
      %v4039 = vpop.f32.mrb[0].mxu0
      %v4040 = vadd.f32 0.0, %v4039
      %v4041 = vpop.f32.mrb[0].mxu0
      %v4042 = vpop.f32.mrb[0].mxu0
      %v4043 = vadd.f32 0.0, %v4042
      %v4044 = vpop.f32.mrb[0].mxu0
      %4045 = vmatprep.mubr.bf16.mxu0 0
      %4046 = vmatmul.mubr.bf16.gmra.mrb[0].mxu0 %v3913
      %v4047 = vpop.f32.mrb[0].mxu0
      %v4048 = vadd.f32 0.0, %v4047
      %v4049 = vpop.f32.mrb[0].mxu0
      %v4050 = vpop.f32.mrb[0].mxu0
      %v4051 = vadd.f32 0.0, %v4050
      %v4052 = vpop.f32.mrb[0].mxu0
      %4053 = vmatprep.mubr.bf16.mxu0 0
      %4054 = vmatmul.mubr.bf16.gmra.mrb[0].mxu0 %v3916
      %v4055 = vpop.f32.mrb[0].mxu0
      %v4056 = vadd.f32 0.0, %v4055
      %v4057 = vpop.f32.mrb[0].mxu0
      %v4058 = vpop.f32.mrb[0].mxu0
      %v4059 = vadd.f32 0.0, %v4058
      %v4060 = vpop.f32.mrb[0].mxu0
      %4061 = vmatprep.mubr.bf16.mxu0 0
      %4062 = vmatmul.mubr.bf16.gmra.mrb[0].mxu0 %v3919
      %v4063 = vpop.f32.mrb[0].mxu0
      %v4064 = vadd.f32 0.0, %v4063
      %v4065 = vpop.f32.mrb[0].mxu0
      %v4066 = vpop.f32.mrb[0].mxu0
      %v4067 = vadd.f32 0.0, %v4066
      %v4068 = vpop.f32.mrb[0].mxu0
      %4069 = vmatprep.mubr.bf16.mxu0 0
      %4070 = vmatmul.mubr.bf16.gmra.mrb[0].mxu0 %v3922
      %v4071 = vpop.f32.mrb[0].mxu0
      %v4072 = vadd.f32 0.0, %v4071
      %v4073 = vpop.f32.mrb[0].mxu0
      %v4074 = vpop.f32.mrb[0].mxu0
      %v4075 = vadd.f32 0.0, %v4074
      %v4076 = vpop.f32.mrb[0].mxu0
      %4077 = vmatprep.mubr.bf16.mxu0 0
      %4078 = vmatmul.mubr.bf16.gmra.mrb[0].mxu0 %v3925
      %v4079 = vpop.f32.mrb[0].mxu0
      %v4080 = vadd.f32 0.0, %v4079
      %v4081 = vpop.f32.mrb[0].mxu0
      %v4082 = vpop.f32.mrb[0].mxu0
      %v4083 = vadd.f32 0.0, %v4082
      %v4084 = vpop.f32.mrb[0].mxu0
      %4085 = vmatprep.mubr.bf16.mxu0 0
      %4086 = vmatmul.mubr.bf16.gmra.mrb[0].mxu0 %v3928
      %v4087 = vpop.f32.mrb[0].mxu0
      %v4088 = vadd.f32 0.0, %v4087
      %v4089 = vpop.f32.mrb[0].mxu0
      %v4090 = vpop.f32.mrb[0].mxu0
      %v4091 = vadd.f32 0.0, %v4090
      %v4092 = vpop.f32.mrb[0].mxu0
      %4093 = vdwg.mxu0
      %v4094 = vadd.f32 %v3624, %v3968
      %v4095 = vadd.f32 %v3625, %v3971
      %v4096 = vadd.f32 %v3626, %v3976
      %v4097 = vadd.f32 %v3627, %v3979
      %v4098 = vadd.f32 %v3628, %v3984
      %v4099 = vadd.f32 %v3629, %v3987
      %v4100 = vadd.f32 %v3630, %v3992
      %v4101 = vadd.f32 %v3631, %v3995
      %v4102 = vadd.f32 %v3632, %v4000
      %v4103 = vadd.f32 %v3633, %v4003
      %v4104 = vadd.f32 %v3634, %v4008
      %v4105 = vadd.f32 %v3635, %v4011
      %v4106 = vadd.f32 %v3636, %v4016
      %v4107 = vadd.f32 %v3637, %v4019
      %v4108 = vadd.f32 %v3638, %v4024
      %v4109 = vadd.f32 %v3639, %v4027
      %v4110 = vadd.f32 %v3640, %v4032
      %v4111 = vadd.f32 %v3641, %v4035
      %v4112 = vadd.f32 %v3642, %v4040
      %v4113 = vadd.f32 %v3643, %v4043
      %v4114 = vadd.f32 %v3644, %v4048
      %v4115 = vadd.f32 %v3645, %v4051
      %v4116 = vadd.f32 %v3646, %v4056
      %v4117 = vadd.f32 %v3647, %v4059
      %v4118 = vadd.f32 %v3648, %v4064
      %v4119 = vadd.f32 %v3649, %v4067
      %v4120 = vadd.f32 %v3650, %v4072
      %v4121 = vadd.f32 %v3651, %v4075
      %v4122 = vadd.f32 %v3652, %v4080
      %v4123 = vadd.f32 %v3653, %v4083
      %v4124 = vadd.f32 %v3654, %v4088
      %v4125 = vadd.f32 %v3655, %v4091
      %v4126 = vld [vmem:[%s213] sm:$0x1]
      %v4128 = vlaneseq
      %v4129 = vshrl.u32 %v4128, 7
      %v4130 = vsub.s32 0, %v4129
      %v4131 = vrot.slane %v4126, %v4130
      %v4133 = vadd.f32 %v4094, %v4131
      %v4134 = vadd.f32 %v4095, %v4131
      %v4135 = vadd.f32 %v4096, %v4131
      %v4136 = vadd.f32 %v4097, %v4131
      %v4137 = vadd.f32 %v4098, %v4131
      %v4138 = vadd.f32 %v4099, %v4131
      %v4139 = vadd.f32 %v4100, %v4131
      %v4140 = vadd.f32 %v4101, %v4131
      %v4141 = vadd.f32 %v4102, %v4131
      %v4142 = vadd.f32 %v4103, %v4131
      %v4143 = vadd.f32 %v4104, %v4131
      %v4144 = vadd.f32 %v4105, %v4131
      %v4145 = vadd.f32 %v4106, %v4131
      %v4146 = vadd.f32 %v4107, %v4131
      %v4147 = vadd.f32 %v4108, %v4131
      %v4148 = vadd.f32 %v4109, %v4131
      %v4149 = vadd.f32 %v4110, %v4131
      %v4150 = vadd.f32 %v4111, %v4131
      %v4151 = vadd.f32 %v4112, %v4131
      %v4152 = vadd.f32 %v4113, %v4131
      %v4153 = vadd.f32 %v4114, %v4131
      %v4154 = vadd.f32 %v4115, %v4131
      %v4155 = vadd.f32 %v4116, %v4131
      %v4156 = vadd.f32 %v4117, %v4131
      %v4157 = vadd.f32 %v4118, %v4131
      %v4158 = vadd.f32 %v4119, %v4131
      %v4159 = vadd.f32 %v4120, %v4131
      %v4160 = vadd.f32 %v4121, %v4131
      %v4161 = vadd.f32 %v4122, %v4131
      %v4162 = vadd.f32 %v4123, %v4131
      %v4163 = vadd.f32 %v4124, %v4131
      %v4164 = vadd.f32 %v4125, %v4131
      %vm4165 = vcmp.gt.f32.partialorder %v4133, 0.0
      %vm4166 = vcmp.gt.f32.partialorder %v4134, 0.0
      %vm4167 = vcmp.gt.f32.partialorder %v4135, 0.0
      %vm4168 = vcmp.gt.f32.partialorder %v4136, 0.0
      %vm4169 = vcmp.gt.f32.partialorder %v4137, 0.0
      %vm4170 = vcmp.gt.f32.partialorder %v4138, 0.0
      %vm4171 = vcmp.gt.f32.partialorder %v4139, 0.0
      %vm4172 = vcmp.gt.f32.partialorder %v4140, 0.0
      %vm4173 = vcmp.gt.f32.partialorder %v4141, 0.0
      %vm4174 = vcmp.gt.f32.partialorder %v4142, 0.0
      %vm4175 = vcmp.gt.f32.partialorder %v4143, 0.0
      %vm4176 = vcmp.gt.f32.partialorder %v4144, 0.0
      %vm4177 = vcmp.gt.f32.partialorder %v4145, 0.0
      %vm4178 = vcmp.gt.f32.partialorder %v4146, 0.0
      %vm4179 = vcmp.gt.f32.partialorder %v4147, 0.0
      %vm4180 = vcmp.gt.f32.partialorder %v4148, 0.0
      %vm4181 = vcmp.gt.f32.partialorder %v4149, 0.0
      %vm4182 = vcmp.gt.f32.partialorder %v4150, 0.0
      %vm4183 = vcmp.gt.f32.partialorder %v4151, 0.0
      %vm4184 = vcmp.gt.f32.partialorder %v4152, 0.0
      %vm4185 = vcmp.gt.f32.partialorder %v4153, 0.0
      %vm4186 = vcmp.gt.f32.partialorder %v4154, 0.0
      %vm4187 = vcmp.gt.f32.partialorder %v4155, 0.0
      %vm4188 = vcmp.gt.f32.partialorder %v4156, 0.0
      %vm4189 = vcmp.gt.f32.partialorder %v4157, 0.0
      %vm4190 = vcmp.gt.f32.partialorder %v4158, 0.0
      %vm4191 = vcmp.gt.f32.partialorder %v4159, 0.0
      %vm4192 = vcmp.gt.f32.partialorder %v4160, 0.0
      %vm4193 = vcmp.gt.f32.partialorder %v4161, 0.0
      %vm4194 = vcmp.gt.f32.partialorder %v4162, 0.0
      %vm4195 = vcmp.gt.f32.partialorder %v4163, 0.0
      %vm4196 = vcmp.gt.f32.partialorder %v4164, 0.0
      %v4197 = vmul.f32 %v4133, 1.442695
      %v4198 = vpow.pop %v4197
      %v4199 = vmul.f32 %v4134, 1.442695
      %v4200 = vpow.pop %v4199
      %v4201 = vmul.f32 %v4135, 1.442695
      %v4202 = vpow.pop %v4201
      %v4203 = vmul.f32 %v4136, 1.442695
      %v4204 = vpow.pop %v4203
      %v4205 = vmul.f32 %v4137, 1.442695
      %v4206 = vpow.pop %v4205
      %v4207 = vmul.f32 %v4138, 1.442695
      %v4208 = vpow.pop %v4207
      %v4209 = vmul.f32 %v4139, 1.442695
      %v4210 = vpow.pop %v4209
      %v4211 = vmul.f32 %v4140, 1.442695
      %v4212 = vpow.pop %v4211
      %v4213 = vmul.f32 %v4141, 1.442695
      %v4214 = vpow.pop %v4213
      %v4215 = vmul.f32 %v4142, 1.442695
      %v4216 = vpow.pop %v4215
      %v4217 = vmul.f32 %v4143, 1.442695
      %v4218 = vpow.pop %v4217
      %v4219 = vmul.f32 %v4144, 1.442695
      %v4220 = vpow.pop %v4219
      %v4221 = vmul.f32 %v4145, 1.442695
      %v4222 = vpow.pop %v4221
      %v4223 = vmul.f32 %v4146, 1.442695
      %v4224 = vpow.pop %v4223
      %v4225 = vmul.f32 %v4147, 1.442695
      %v4226 = vpow.pop %v4225
      %v4227 = vmul.f32 %v4148, 1.442695
      %v4228 = vpow.pop %v4227
      %v4229 = vmul.f32 %v4149, 1.442695
      %v4230 = vpow.pop %v4229
      %v4231 = vmul.f32 %v4150, 1.442695
      %v4232 = vpow.pop %v4231
      %v4233 = vmul.f32 %v4151, 1.442695
      %v4234 = vpow.pop %v4233
      %v4235 = vmul.f32 %v4152, 1.442695
      %v4236 = vpow.pop %v4235
      %v4237 = vmul.f32 %v4153, 1.442695
      %v4238 = vpow.pop %v4237
      %v4239 = vmul.f32 %v4154, 1.442695
      %v4240 = vpow.pop %v4239
      %v4241 = vmul.f32 %v4155, 1.442695
      %v4242 = vpow.pop %v4241
      %v4243 = vmul.f32 %v4156, 1.442695
      %v4244 = vpow.pop %v4243
      %v4245 = vmul.f32 %v4157, 1.442695
      %v4246 = vpow.pop %v4245
      %v4247 = vmul.f32 %v4158, 1.442695
      %v4248 = vpow.pop %v4247
      %v4249 = vmul.f32 %v4159, 1.442695
      %v4250 = vpow.pop %v4249
      %v4251 = vmul.f32 %v4160, 1.442695
      %v4252 = vpow.pop %v4251
      %v4253 = vmul.f32 %v4161, 1.442695
      %v4254 = vpow.pop %v4253
      %v4255 = vmul.f32 %v4162, 1.442695
      %v4256 = vpow.pop %v4255
      %v4257 = vmul.f32 %v4163, 1.442695
      %v4258 = vpow.pop %v4257
      %v4259 = vmul.f32 %v4164, 1.442695
      %v4260 = vpow.pop %v4259
      %v4261 = vsub.f32 %v4198, 1.0
      %v4262 = vsub.f32 %v4200, 1.0
      %v4263 = vsub.f32 %v4202, 1.0
      %v4264 = vsub.f32 %v4204, 1.0
      %v4265 = vsub.f32 %v4206, 1.0
      %v4266 = vsub.f32 %v4208, 1.0
      %v4267 = vsub.f32 %v4210, 1.0
      %v4268 = vsub.f32 %v4212, 1.0
      %v4269 = vsub.f32 %v4214, 1.0
      %v4270 = vsub.f32 %v4216, 1.0
      %v4271 = vsub.f32 %v4218, 1.0
      %v4272 = vsub.f32 %v4220, 1.0
      %v4273 = vsub.f32 %v4222, 1.0
      %v4274 = vsub.f32 %v4224, 1.0
      %v4275 = vsub.f32 %v4226, 1.0
      %v4276 = vsub.f32 %v4228, 1.0
      %v4277 = vsub.f32 %v4230, 1.0
      %v4278 = vsub.f32 %v4232, 1.0
      %v4279 = vsub.f32 %v4234, 1.0
      %v4280 = vsub.f32 %v4236, 1.0
      %v4281 = vsub.f32 %v4238, 1.0
      %v4282 = vsub.f32 %v4240, 1.0
      %v4283 = vsub.f32 %v4242, 1.0
      %v4284 = vsub.f32 %v4244, 1.0
      %v4285 = vsub.f32 %v4246, 1.0
      %v4286 = vsub.f32 %v4248, 1.0
      %v4287 = vsub.f32 %v4250, 1.0
      %v4288 = vsub.f32 %v4252, 1.0
      %v4289 = vsub.f32 %v4254, 1.0
      %v4290 = vsub.f32 %v4256, 1.0
      %v4291 = vsub.f32 %v4258, 1.0
      %v4292 = vsub.f32 %v4260, 1.0
      %v4293 = vsel %vm4165, %v4133, %v4261
      %v4294 = vsel %vm4166, %v4134, %v4262
      %v4295 = vsel %vm4167, %v4135, %v4263
      %v4296 = vsel %vm4168, %v4136, %v4264
      %v4297 = vsel %vm4169, %v4137, %v4265
      %v4298 = vsel %vm4170, %v4138, %v4266
      %v4299 = vsel %vm4171, %v4139, %v4267
      %v4300 = vsel %vm4172, %v4140, %v4268
      %v4301 = vsel %vm4173, %v4141, %v4269
      %v4302 = vsel %vm4174, %v4142, %v4270
      %v4303 = vsel %vm4175, %v4143, %v4271
      %v4304 = vsel %vm4176, %v4144, %v4272
      %v4305 = vsel %vm4177, %v4145, %v4273
      %v4306 = vsel %vm4178, %v4146, %v4274
      %v4307 = vsel %vm4179, %v4147, %v4275
      %v4308 = vsel %vm4180, %v4148, %v4276
      %v4309 = vsel %vm4181, %v4149, %v4277
      %v4310 = vsel %vm4182, %v4150, %v4278
      %v4311 = vsel %vm4183, %v4151, %v4279
      %v4312 = vsel %vm4184, %v4152, %v4280
      %v4313 = vsel %vm4185, %v4153, %v4281
      %v4314 = vsel %vm4186, %v4154, %v4282
      %v4315 = vsel %vm4187, %v4155, %v4283
      %v4316 = vsel %vm4188, %v4156, %v4284
      %v4317 = vsel %vm4189, %v4157, %v4285
      %v4318 = vsel %vm4190, %v4158, %v4286
      %v4319 = vsel %vm4191, %v4159, %v4287
      %v4320 = vsel %vm4192, %v4160, %v4288
      %v4321 = vsel %vm4193, %v4161, %v4289
      %v4322 = vsel %vm4194, %v4162, %v4290
      %v4323 = vsel %vm4195, %v4163, %v4291
      %v4324 = vsel %vm4196, %v4164, %v4292
      %4325 = vst [vmem:[%s221] sm:$0xff] %v4293
      %4326 = vst [vmem:[%s221 + $0x8] sm:$0xff] %v4294
      %4327 = vst [vmem:[%s221 + $0x10] sm:$0xff] %v4295
      %4328 = vst [vmem:[%s221 + $0x18] sm:$0xff] %v4296
      %4329 = vst [vmem:[%s221 + $0x20] sm:$0xff] %v4297
      %4330 = vst [vmem:[%s221 + $0x28] sm:$0xff] %v4298
      %4331 = vst [vmem:[%s221 + $0x30] sm:$0xff] %v4299
      %4332 = vst [vmem:[%s221 + $0x38] sm:$0xff] %v4300
      %4333 = vst [vmem:[%s221 + $0x40] sm:$0xff] %v4301
      %4334 = vst [vmem:[%s221 + $0x48] sm:$0xff] %v4302
      %4335 = vst [vmem:[%s221 + $0x50] sm:$0xff] %v4303
      %4336 = vst [vmem:[%s221 + $0x58] sm:$0xff] %v4304
      %4337 = vst [vmem:[%s221 + $0x60] sm:$0xff] %v4305
      %4338 = vst [vmem:[%s221 + $0x68] sm:$0xff] %v4306
      %4339 = vst [vmem:[%s221 + $0x70] sm:$0xff] %v4307
      %4340 = vst [vmem:[%s221 + $0x78] sm:$0xff] %v4308
      %4341 = vst [vmem:[%s221 + $0x80] sm:$0xff] %v4309
      %4342 = vst [vmem:[%s221 + $0x88] sm:$0xff] %v4310
      %4343 = vst [vmem:[%s221 + $0x90] sm:$0xff] %v4311
      %4344 = vst [vmem:[%s221 + $0x98] sm:$0xff] %v4312
      %4345 = vst [vmem:[%s221 + $0xa0] sm:$0xff] %v4313
      %4346 = vst [vmem:[%s221 + $0xa8] sm:$0xff] %v4314
      %4347 = vst [vmem:[%s221 + $0xb0] sm:$0xff] %v4315
      %4348 = vst [vmem:[%s221 + $0xb8] sm:$0xff] %v4316
      %4349 = vst [vmem:[%s221 + $0xc0] sm:$0xff] %v4317
      %4350 = vst [vmem:[%s221 + $0xc8] sm:$0xff] %v4318
      %4351 = vst [vmem:[%s221 + $0xd0] sm:$0xff] %v4319
      %4352 = vst [vmem:[%s221 + $0xd8] sm:$0xff] %v4320
      %4353 = vst [vmem:[%s221 + $0xe0] sm:$0xff] %v4321
      %4354 = vst [vmem:[%s221 + $0xe8] sm:$0xff] %v4322
      %4355 = vst [vmem:[%s221 + $0xf0] sm:$0xff] %v4323
      %4356 = vst [vmem:[%s221 + $0xf8] sm:$0xff] %v4324
      %p4357 = scmp.lt.s32.totalorder %s18, 1
      %s4358 = scalar_select %p4357, %s18, 1
      %p4359 = scmp.lt.s32.totalorder %s19, 0
      %s4360 = scalar_select %p4359, %s19, 0
      %s4361 = smul.addr %s4358, 32
      %s4362 = sadd.s32 %s4360, %s4361
      %s4363 = smul.addr %s4362, 8
      %s4364 = scalar_lea.vmem %s3, %s4363
      // Predicated region
      $region33: #{conv_elu.1} parent=31 // pred_check
        %p4365 = pneg %p124
      $region34: #{conv_elu.1} parent=31 // pred_check_branch
        %4367 = sbr.rel (%p4365) target = $region36
      $region35: #{conv_elu.1} parent=31 // pred_region
        _
      $region36: #{conv_elu.1} parent=31 // pred_fallthru
        _
    $region32: #{conv_elu.1} parent=5 // pred_fallthru
      _
    %p4368 = scmp.le.s32.totalorder 2, %s9
    // Predicated region
    $region37: #{conv_elu.1} parent=5 // pred_check
      %p4369 = pneg %p4368
    $region38: #{conv_elu.1} parent=5 // pred_check_branch
      %4371 = sbr.rel (%p4369) target = $region40
    $region39: #{conv_elu.1} parent=5 // pred_region
      %s4372 = ssub.s32 %s9, 2
      // Predicated region
      $region41: #{conv_elu.1} parent=39 // pred_check
        %p4373 = pneg %p130
      $region42: #{conv_elu.1} parent=39 // pred_check_branch
        %4375 = sbr.rel (%p4373) target = $region44
      $region43: #{conv_elu.1} parent=39 // pred_region
        %p4376 = scmp.lt.s32.totalorder %s20, 1
        %s4377 = scalar_select %p4376, %s20, 1
        %p4378 = scmp.lt.s32.totalorder %s21, 0
        %s4379 = scalar_select %p4378, %s21, 0
        %s4380 = smul.addr %s4377, 32
        %s4381 = sadd.s32 %s4379, %s4380
        %s4382 = smul.addr %s4381, 8
        %s4383 = scalar_lea.vmem %s3, %s4382
      $region44: #{conv_elu.1} parent=39 // pred_fallthru
        _
    $region40: #{conv_elu.1} parent=5 // pred_fallthru
      _
  $region6: #{conv_elu.1} parent=0 // loop_footer
    %s13 = sadd.s32 1, %s9
  $region7: #{conv_elu.1} parent=0 // loop_footer_branch
    %8 = sbr.rel target = $region3
  $region8: #{conv_elu.1} parent=0 // loop_exit
    _

</llo_original>
